<compile_context>
chip_gen: v5e
topology: v5e:2x2
jax: 0.10.0
libtpu: 0.0.40
codegen_flags: <defaults>
</compile_context>

<pallas_src>
import functools

import jax
import jax.numpy as jnp
from jax.experimental import pallas as pl
from jax.experimental.pallas import tpu as pltpu


# Column layout of the two consolidated per-channel parameter tensors:
#   pc (C, 8)   : gn0_w gn0_b fc2_b gn1a_w gn1a_b proj_b*ls1*(1+ls2) ls0 (1+ls2)
#   pe (HID, 4) : fc1_b exp_b gn1b_w gn1b_b      (HID == mlp_ratio*C == expand_ratio*C)
_GN0_W, _GN0_B, _FC2_B, _GN1A_W, _GN1A_B, _PROJ_B, _LS0, _LS2P1 = range(8)
_FC1_B, _EXP_B, _GN1B_W, _GN1B_B = range(4)

_SQRT_2_OVER_PI = 0.7978845608028654


def _gelu(v):
    # tanh-form GELU: the transcendental goes to the EUP slot, freeing the VALU.
    return 0.5 * v * (1.0 + jnp.tanh(_SQRT_2_OVER_PI * (v + 0.044715 * v * v * v)))


def _group_norm1(v, w, b, eps=1e-5):
    # nn.GroupNorm(1, C): stats over the whole (C, HW) sample, per-channel affine.
    # Two-pass (centered) variance -- robust when |mu| >> sigma (post-residual maps).
    mu = jnp.mean(v, keepdims=True)            # (1, 1)
    d = v - mu
    var = jnp.mean(d * d, keepdims=True)       # (1, 1)
    return d * (w * jax.lax.rsqrt(var + eps)) + b


def _block_kernel(x_ref, pc_ref, pe_ref, w1_ref, w2_ref, we_ref, wp_ref, o_ref,
                  *, images_per_step, bf16_act):
    pc = pc_ref[...]                           # (C, 8)    f32
    pe = pe_ref[...]                           # (HID, 4)  f32

    def col(a, j):                             # (rows, 1) static column slice
        return a[:, j:j + 1]

    def mm(w_ref, v):                          # bf16 MXU matmul, f32 accumulation
        return jnp.dot(w_ref[...], v.astype(jnp.bfloat16),
                       preferred_element_type=jnp.float32)

    def act_for_mxu(v):
        # GELU whose output feeds the next matmul.  On v6e/v7x (bf16 VALU/EUP) run it
        # in bf16 -- the value is cast to bf16 for the MXU anyway, so this halves the
        # element traffic through the saturating VALU/EUP slots.  f32 on v5e.
        if bf16_act:
            v = v.astype(jnp.bfloat16)
        return _gelu(v)

    # Hoist the per-channel column slices out of the per-image loop.
    gn0_w, gn0_b = col(pc, _GN0_W), col(pc, _GN0_B)
    fc2_b = col(pc, _FC2_B)
    gn1a_w, gn1a_b = col(pc, _GN1A_W), col(pc, _GN1A_B)
    proj_b = col(pc, _PROJ_B)                  # pre-scaled by ls1*(1+ls2) in the wrapper
    ls0 = col(pc, _LS0)
    ls2p1 = col(pc, _LS2P1)
    fc1_b, exp_b = col(pe, _FC1_B), col(pe, _EXP_B)
    gn1b_w, gn1b_b = col(pe, _GN1B_W), col(pe, _GN1B_B)

    # Static unrolled loop over the images of this block: amortizes the ~0.35 us
    # per-grid-step pipeline overhead across images_per_step images.
    for i in range(images_per_step):
        x0 = x_ref[i]                          # (C, HW)  f32

        # --- NormMixerActBlock 1: GN -> ChannelMlp(1x1, GELU, 1x1) -> GELU; skip 0->1
        h = _group_norm1(x0, gn0_w, gn0_b)
        h = act_for_mxu(mm(w1_ref, h) + fc1_b)             # (HID, HW), feeds fc2
        h = _gelu(mm(w2_ref, h) + fc2_b)                   # (C, HW), f32 (feeds residual)
        out1 = ls0 * h + x0

        # --- NormMixerActBlock 2 (use_expand=True):
        #     expand_start: GN -> 1x1 (C->4C) -> GELU ; ops: GN(4C) -> GELU ;
        #     expand_end:   1x1 (4C->C)            (skip 1->2 ; '0->2' is 'none')
        g = _group_norm1(out1, gn1a_w, gn1a_b)
        g = _gelu(mm(we_ref, g) + exp_b)                   # (EXP, HW), f32 (feeds GN stats)
        g = act_for_mxu(_group_norm1(g, gn1b_w, gn1b_b))   # feeds the projection matmul
        g = mm(wp_ref, g) + proj_b                         # == ls1*(1+ls2)*(Wp@g + b)

        # --- NormMixerActBlock 3: ops == Identity; (ls2*out2 + x0) + out2 with
        #     out2 = ls1*proj + out1   ==>   o = g_scaled + (1+ls2)*out1 + x0
        o_ref[i] = g + ls2p1 * out1 + x0
    # TODO(synk): DropPath / Dropout are Identity here (p = 0, eval semantics); stochastic
    # training-mode dropping is not implemented.


def block_forward(x_nchw, params, *, images_per_step=None, bf16_elementwise=None):
    B, C, H, W = x_nchw.shape
    HW = H * W
    # Lane-dense stores are the single biggest measured lever; keep HW a lane multiple.
    # TODO(synk): for resolutions with H*W % 128 != 0 (e.g. 14x14=196), pad HW in the
    # wrapper and mask the GroupNorm statistics over the padded lanes.
    assert HW % 128 == 0, "H*W must be a multiple of 128 (pad in the wrapper)"

    # NCHW is already (C, HW)-major for each image -> free reshape, no transposes.
    x_tok = x_nchw.reshape(B, C, HW)

    if bf16_elementwise is None:
        # v6e / v7x have bf16 VALU + EUP; v5e and older do not -> keep f32 there.
        kind = jax.devices()[0].device_kind.lower()
        bf16_elementwise = not any(v in kind for v in ("v2", "v3", "v4", "v5"))

    # Multiple images per grid step: amortizes per-step pipeline overhead and widens
    # the effective matmul N for the MXU weight pushes.
    if images_per_step is None:
        images_per_step = B if B <= 4 else 4   # >=2 grid steps keeps both v7x TCs busy
    bt = max(1, min(int(images_per_step), B))
    while B % bt:                              # largest divisor of B not exceeding target
        bt -= 1
    # TODO(synk): on v7x prefer bt that leaves >=2 parallel grid steps (2 TensorCores);
    # at toy batch sizes the single-step overhead win is taken instead.

    f32 = jnp.float32
    ls0 = params['ls0'].astype(f32)
    ls2p1 = 1.0 + params['ls2'].astype(f32)
    proj_scale = params['ls1'].astype(f32) * ls2p1      # fold ls1, (1+ls2) into projection

    pc = jnp.stack([params['gn0_w'], params['gn0_b'], params['fc2_b'],
                    params['gn1a_w'], params['gn1a_b'],
                    params['proj_b'] * proj_scale,
                    ls0, ls2p1], axis=1).astype(f32)                        # (C, 8)
    assert params['fc1_b'].shape == params['exp_b'].shape, \
        "requires mlp_ratio == expand_ratio"
    pe = jnp.stack([params['fc1_b'], params['exp_b'],
                    params['gn1b_w'], params['gn1b_b']], axis=1).astype(f32)  # (HID, 4)

    w1 = params['fc1_w'].astype(jnp.bfloat16)                               # (HID, C)
    w2 = params['fc2_w'].astype(jnp.bfloat16)                               # (C, HID)
    we = params['exp_w'].astype(jnp.bfloat16)                               # (EXP, C)
    wp = (params['proj_w'] * proj_scale[:, None]).astype(jnp.bfloat16)      # (C, EXP), pre-scaled

    def resident(p):
        # full array, constant block index -> DMA'd once, stays VMEM-resident across the grid.
        # TODO(synk): for production C on v7x add pipeline_mode=pl.Buffered(1) so these
        # invariant inputs are single-buffered against the 64 MiB VMEM budget.
        n = p.ndim
        return pl.BlockSpec(p.shape, lambda b, _n=n: (0,) * _n)

    kernel = functools.partial(_block_kernel, images_per_step=bt,
                               bf16_act=bool(bf16_elementwise))

    out = pl.pallas_call(
        kernel,
        grid=(B // bt,),
        in_specs=[pl.BlockSpec((bt, C, HW), lambda b: (b, 0, 0)),
                  resident(pc), resident(pe),
                  resident(w1), resident(w2), resident(we), resident(wp)],
        out_specs=pl.BlockSpec((bt, C, HW), lambda b: (b, 0, 0)),
        out_shape=jax.ShapeDtypeStruct((B, C, HW), f32),
        compiler_params=pltpu.CompilerParams(dimension_semantics=("parallel",)),
    )(x_tok, pc, pe, w1, w2, we, wp)

    # TODO(synk): for production-size H*W*C add an HW-tile grid axis (lane-multiple tiles,
    # two-pass GroupNorm stats prelude in scratch), set vmem_limit_bytes explicitly, and
    # consider bf16 output / input_output_aliases -- the block is HBM-bound at large HW.
    return out.reshape(B, C, H, W)


# ---------------------------------------------------------------------------
# pure-JAX reference (torch semantics: exact erf GELU, f32 matmuls, two-pass GN)
# ---------------------------------------------------------------------------
def block_reference(x_nchw, p):
    B, C, H, W = x_nchw.shape
    x = x_nchw.reshape(B, C, H * W).astype(jnp.float32)

    def gn(v, w, b):
        mu = jnp.mean(v, axis=(1, 2), keepdims=True)
        var = jnp.mean((v - mu) ** 2, axis=(1, 2), keepdims=True)
        return (v - mu) * jax.lax.rsqrt(var + 1e-5) * w[None, :, None] + b[None, :, None]

    def conv1x1(w, b, v):    # (Cout, Cin) @ (B, Cin, HW) + b
        return jnp.einsum('oc,bch->boh', w, v) + b[None, :, None]

    def gelu(v):             # exact erf GELU == torch.nn.GELU()
        return jax.nn.gelu(v, approximate=False)

    h = gn(x, p['gn0_w'], p['gn0_b'])
    h = gelu(conv1x1(p['fc1_w'], p['fc1_b'], h))
    h = gelu(conv1x1(p['fc2_w'], p['fc2_b'], h))
    out1 = p['ls0'][None, :, None] * h + x

    g = gn(out1, p['gn1a_w'], p['gn1a_b'])
    g = gelu(conv1x1(p['exp_w'], p['exp_b'], g))
    g = gelu(gn(g, p['gn1b_w'], p['gn1b_b']))
    g = conv1x1(p['proj_w'], p['proj_b'], g)
    out2 = p['ls1'][None, :, None] * g + out1

    out3 = (p['ls2'][None, :, None] * out2 + x) + out2
    return out3.reshape(B, C, H, W)


if __name__ == "__main__":
    B, C, H, W = 2, 16, 16, 16            # HW = 256 -> lane-dense (multiple of 128)
    MLP_RATIO = EXPAND_RATIO = 4
    HID, EXP = MLP_RATIO * C, EXPAND_RATIO * C

    key = jax.random.PRNGKey(0)
    ks = jax.random.split(key, 16)

    def nrm(k, shape, scale=0.1):
        return scale * jax.random.normal(k, shape, jnp.float32)

    def make_params(layer_scale_init):
        ls = layer_scale_init * jnp.ones((C,), jnp.float32)
        return {
            # block 1 (GN + ChannelMlp + GELU); conv weights in (C_out, C_in) layout
            'gn0_w': 1.0 + nrm(ks[0], (C,)),   'gn0_b': nrm(ks[1], (C,)),
            'fc1_w': nrm(ks[2], (HID, C)),     'fc1_b': nrm(ks[3], (HID,)),
            'fc2_w': nrm(ks[4], (C, HID)),     'fc2_b': nrm(ks[5], (C,)),
            'ls0': ls,
            # block 2 (expand_start GN/conv, GN + GELU, expand_end conv)
            'gn1a_w': 1.0 + nrm(ks[6], (C,)),    'gn1a_b': nrm(ks[7], (C,)),
            'exp_w': nrm(ks[8], (EXP, C)),       'exp_b': nrm(ks[9], (EXP,)),
            'gn1b_w': 1.0 + nrm(ks[10], (EXP,)), 'gn1b_b': nrm(ks[11], (EXP,)),
            'proj_w': nrm(ks[12], (C, EXP)),     'proj_b': nrm(ks[13], (C,)),
            'ls1': ls,
            # block 3 (Identity ops, layer_scale only)
            'ls2': ls,
        }

    x = jax.random.normal(ks[14], (B, C, H, W), jnp.float32)

    # (1) module default layer_scale_init_value = 1e-5: tight check on the full output.
    p_small = make_params(1e-5)
    out = jax.block_until_ready(block_forward(x, p_small))
    ref = block_reference(x, p_small)
    assert out.shape == (B, C, H, W), out.shape
    err = float(jnp.max(jnp.abs(out - ref)))
    assert err < 1e-4, f"mismatch vs reference (ls=1e-5): {err}"

    # (2) layer_scale ~ O(1) so the branch math (bf16 MXU, tanh GELU, GroupNorm) is
    #     actually exercised; looser tolerance for bf16/tanh approximation error.
    p_big = make_params(0.5)
    out2 = jax.block_until_ready(block_forward(x, p_big))
    ref2 = block_reference(x, p_big)
    err2 = float(jnp.max(jnp.abs(out2 - ref2)))
    assert err2 < 5e-2, f"mismatch vs reference (ls=0.5): {err2}"

    print("KERNEL_OK")
</pallas_src>

<mosaic_0001>
module attributes {stable_mosaic.version = 11 : i64} {
  func.func @_block_kernel(%arg0: i32, %arg1: memref<2x16x256xf32, #tpu.memory_space<vmem>>, %arg2: memref<16x8xf32, #tpu.memory_space<vmem>>, %arg3: memref<64x4xf32, #tpu.memory_space<vmem>>, %arg4: memref<64x16xbf16, #tpu.memory_space<vmem>>, %arg5: memref<16x64xbf16, #tpu.memory_space<vmem>>, %arg6: memref<64x16xbf16, #tpu.memory_space<vmem>>, %arg7: memref<16x64xbf16, #tpu.memory_space<vmem>>, %arg8: memref<2x16x256xf32, #tpu.memory_space<vmem>>) attributes {dimension_semantics = [#tpu.dimension_semantics<parallel>], iteration_bounds = array<i64: 1>, scalar_prefetch = 0 : i64, scratch_operands = 0 : i64, tpu.core_type = #tpu.core_type<tc>, window_params = [{transform_indices = @transform_0, window_bounds = array<i64: 2, 16, 256>}, {pipeline_mode = #tpu.pipeline_mode<synchronous>, transform_indices = @transform_1, window_bounds = array<i64: 16, 8>}, {pipeline_mode = #tpu.pipeline_mode<synchronous>, transform_indices = @transform_2, window_bounds = array<i64: 64, 4>}, {pipeline_mode = #tpu.pipeline_mode<synchronous>, transform_indices = @transform_3, window_bounds = array<i64: 64, 16>}, {pipeline_mode = #tpu.pipeline_mode<synchronous>, transform_indices = @transform_4, window_bounds = array<i64: 16, 64>}, {pipeline_mode = #tpu.pipeline_mode<synchronous>, transform_indices = @transform_5, window_bounds = array<i64: 64, 16>}, {pipeline_mode = #tpu.pipeline_mode<synchronous>, transform_indices = @transform_6, window_bounds = array<i64: 16, 64>}, {transform_indices = @transform_7, window_bounds = array<i64: 2, 16, 256>}]} {
    %c0 = arith.constant 0 : index
    %c0_0 = arith.constant 0 : index
    %0 = vector.load %arg2[%c0, %c0_0] : memref<16x8xf32, #tpu.memory_space<vmem>>, vector<16x8xf32>
    %c0_1 = arith.constant 0 : index
    %c0_2 = arith.constant 0 : index
    %1 = vector.load %arg3[%c0_1, %c0_2] : memref<64x4xf32, #tpu.memory_space<vmem>>, vector<64x4xf32>
    %2 = vector.extract_strided_slice %0 {offsets = [0, 0], sizes = [16, 1], strides = [1, 1]} : vector<16x8xf32> to vector<16x1xf32>
    %3 = vector.extract_strided_slice %0 {offsets = [0, 1], sizes = [16, 1], strides = [1, 1]} : vector<16x8xf32> to vector<16x1xf32>
    %4 = vector.extract_strided_slice %0 {offsets = [0, 2], sizes = [16, 1], strides = [1, 1]} : vector<16x8xf32> to vector<16x1xf32>
    %5 = vector.extract_strided_slice %0 {offsets = [0, 3], sizes = [16, 1], strides = [1, 1]} : vector<16x8xf32> to vector<16x1xf32>
    %6 = vector.extract_strided_slice %0 {offsets = [0, 4], sizes = [16, 1], strides = [1, 1]} : vector<16x8xf32> to vector<16x1xf32>
    %7 = vector.extract_strided_slice %0 {offsets = [0, 5], sizes = [16, 1], strides = [1, 1]} : vector<16x8xf32> to vector<16x1xf32>
    %8 = vector.extract_strided_slice %0 {offsets = [0, 6], sizes = [16, 1], strides = [1, 1]} : vector<16x8xf32> to vector<16x1xf32>
    %9 = vector.extract_strided_slice %0 {offsets = [0, 7], sizes = [16, 1], strides = [1, 1]} : vector<16x8xf32> to vector<16x1xf32>
    %10 = vector.extract_strided_slice %1 {offsets = [0, 0], sizes = [64, 1], strides = [1, 1]} : vector<64x4xf32> to vector<64x1xf32>
    %11 = vector.extract_strided_slice %1 {offsets = [0, 1], sizes = [64, 1], strides = [1, 1]} : vector<64x4xf32> to vector<64x1xf32>
    %12 = vector.extract_strided_slice %1 {offsets = [0, 2], sizes = [64, 1], strides = [1, 1]} : vector<64x4xf32> to vector<64x1xf32>
    %13 = vector.extract_strided_slice %1 {offsets = [0, 3], sizes = [64, 1], strides = [1, 1]} : vector<64x4xf32> to vector<64x1xf32>
    %c0_3 = arith.constant 0 : index
    %c0_4 = arith.constant 0 : index
    %c0_5 = arith.constant 0 : index
    %14 = vector.load %arg1[%c0_3, %c0_4, %c0_5] : memref<2x16x256xf32, #tpu.memory_space<vmem>>, vector<1x16x256xf32>
    %15 = vector.shape_cast %14 : vector<1x16x256xf32> to vector<16x256xf32>
    %16 = vector.shape_cast %15 : vector<16x256xf32> to vector<1x16x256xf32>
    %cst = arith.constant dense<0.000000e+00> : vector<1xf32>
    %17 = vector.multi_reduction <add>, %16, %cst [1, 2] : vector<1x16x256xf32> to vector<1xf32>
    %18 = vector.shape_cast %17 : vector<1xf32> to vector<1x1x1xf32>
    %19 = vector.extract %18[0, 0, 0] : f32 from vector<1x1x1xf32>
    %20 = vector.broadcast %19 : f32 to vector<1x1xf32>
    %cst_6 = arith.constant 4.096000e+03 : f32
    %21 = vector.broadcast %cst_6 : f32 to vector<1x1xf32>
    %22 = arith.divf %20, %21 : vector<1x1xf32>
    %23 = vector.broadcast %22 : vector<1x1xf32> to vector<16x256xf32>
    %24 = arith.subf %15, %23 : vector<16x256xf32>
    %25 = arith.mulf %24, %24 : vector<16x256xf32>
    %26 = vector.shape_cast %25 : vector<16x256xf32> to vector<1x16x256xf32>
    %cst_7 = arith.constant dense<0.000000e+00> : vector<1xf32>
    %27 = vector.multi_reduction <add>, %26, %cst_7 [1, 2] : vector<1x16x256xf32> to vector<1xf32>
    %28 = vector.shape_cast %27 : vector<1xf32> to vector<1x1x1xf32>
    %29 = vector.extract %28[0, 0, 0] : f32 from vector<1x1x1xf32>
    %30 = vector.broadcast %29 : f32 to vector<1x1xf32>
    %cst_8 = arith.constant 4.096000e+03 : f32
    %31 = vector.broadcast %cst_8 : f32 to vector<1x1xf32>
    %32 = arith.divf %30, %31 : vector<1x1xf32>
    %cst_9 = arith.constant 9.99999974E-6 : f32
    %33 = vector.broadcast %cst_9 : f32 to vector<1x1xf32>
    %34 = arith.addf %32, %33 : vector<1x1xf32>
    %35 = math.rsqrt %34 : vector<1x1xf32>
    %36 = vector.broadcast %35 : vector<1x1xf32> to vector<16x1xf32>
    %37 = arith.mulf %2, %36 : vector<16x1xf32>
    %38 = vector.broadcast %37 : vector<16x1xf32> to vector<16x256xf32>
    %39 = arith.mulf %24, %38 : vector<16x256xf32>
    %40 = vector.broadcast %3 : vector<16x1xf32> to vector<16x256xf32>
    %41 = arith.addf %39, %40 : vector<16x256xf32>
    %c0_10 = arith.constant 0 : index
    %c0_11 = arith.constant 0 : index
    %42 = vector.load %arg4[%c0_10, %c0_11] : memref<64x16xbf16, #tpu.memory_space<vmem>>, vector<64x16xbf16>
    %43 = arith.truncf %41 : vector<16x256xf32> to vector<16x256xbf16>
    %cst_12 = arith.constant dense<0.000000e+00> : vector<64x256xf32>
    %44 = tpu.matmul %42, %43, %cst_12 {dimension_numbers = #tpu.dot_dimension_numbers<[1], [0], [0], [1], [0, 0, 1, 1], [], []>} : vector<64x16xbf16>, vector<16x256xbf16>, vector<64x256xf32> -> vector<64x256xf32>
    %45 = vector.broadcast %10 : vector<64x1xf32> to vector<64x256xf32>
    %46 = arith.addf %44, %45 : vector<64x256xf32>
    %47 = arith.truncf %46 : vector<64x256xf32> to vector<64x256xbf16>
    %cst_13 = arith.constant 5.000000e-01 : bf16
    %48 = vector.broadcast %cst_13 : bf16 to vector<64x256xbf16>
    %49 = arith.mulf %48, %47 : vector<64x256xbf16>
    %cst_14 = arith.constant 4.467770e-02 : bf16
    %50 = vector.broadcast %cst_14 : bf16 to vector<64x256xbf16>
    %51 = arith.mulf %50, %47 : vector<64x256xbf16>
    %52 = arith.mulf %51, %47 : vector<64x256xbf16>
    %53 = arith.mulf %52, %47 : vector<64x256xbf16>
    %54 = arith.addf %47, %53 : vector<64x256xbf16>
    %cst_15 = arith.constant 7.968750e-01 : bf16
    %55 = vector.broadcast %cst_15 : bf16 to vector<64x256xbf16>
    %56 = arith.mulf %55, %54 : vector<64x256xbf16>
    %57 = math.tanh %56 : vector<64x256xbf16>
    %cst_16 = arith.constant 1.000000e+00 : bf16
    %58 = vector.broadcast %cst_16 : bf16 to vector<64x256xbf16>
    %59 = arith.addf %58, %57 : vector<64x256xbf16>
    %60 = arith.mulf %49, %59 : vector<64x256xbf16>
    %c0_17 = arith.constant 0 : index
    %c0_18 = arith.constant 0 : index
    %61 = vector.load %arg5[%c0_17, %c0_18] : memref<16x64xbf16, #tpu.memory_space<vmem>>, vector<16x64xbf16>
    %cst_19 = arith.constant dense<0.000000e+00> : vector<16x256xf32>
    %62 = tpu.matmul %61, %60, %cst_19 {dimension_numbers = #tpu.dot_dimension_numbers<[1], [0], [0], [1], [0, 0, 1, 1], [], []>} : vector<16x64xbf16>, vector<64x256xbf16>, vector<16x256xf32> -> vector<16x256xf32>
    %63 = vector.broadcast %4 : vector<16x1xf32> to vector<16x256xf32>
    %64 = arith.addf %62, %63 : vector<16x256xf32>
    %cst_20 = arith.constant 5.000000e-01 : f32
    %65 = vector.broadcast %cst_20 : f32 to vector<16x256xf32>
    %66 = arith.mulf %65, %64 : vector<16x256xf32>
    %cst_21 = arith.constant 4.471500e-02 : f32
    %67 = vector.broadcast %cst_21 : f32 to vector<16x256xf32>
    %68 = arith.mulf %67, %64 : vector<16x256xf32>
    %69 = arith.mulf %68, %64 : vector<16x256xf32>
    %70 = arith.mulf %69, %64 : vector<16x256xf32>
    %71 = arith.addf %64, %70 : vector<16x256xf32>
    %cst_22 = arith.constant 0.797884583 : f32
    %72 = vector.broadcast %cst_22 : f32 to vector<16x256xf32>
    %73 = arith.mulf %72, %71 : vector<16x256xf32>
    %74 = math.tanh %73 : vector<16x256xf32>
    %cst_23 = arith.constant 1.000000e+00 : f32
    %75 = vector.broadcast %cst_23 : f32 to vector<16x256xf32>
    %76 = arith.addf %75, %74 : vector<16x256xf32>
    %77 = arith.mulf %66, %76 : vector<16x256xf32>
    %78 = vector.broadcast %8 : vector<16x1xf32> to vector<16x256xf32>
    %79 = arith.mulf %78, %77 : vector<16x256xf32>
    %80 = arith.addf %79, %15 : vector<16x256xf32>
    %81 = vector.shape_cast %80 : vector<16x256xf32> to vector<1x16x256xf32>
    %cst_24 = arith.constant dense<0.000000e+00> : vector<1xf32>
    %82 = vector.multi_reduction <add>, %81, %cst_24 [1, 2] : vector<1x16x256xf32> to vector<1xf32>
    %83 = vector.shape_cast %82 : vector<1xf32> to vector<1x1x1xf32>
    %84 = vector.extract %83[0, 0, 0] : f32 from vector<1x1x1xf32>
    %85 = vector.broadcast %84 : f32 to vector<1x1xf32>
    %cst_25 = arith.constant 4.096000e+03 : f32
    %86 = vector.broadcast %cst_25 : f32 to vector<1x1xf32>
    %87 = arith.divf %85, %86 : vector<1x1xf32>
    %88 = vector.broadcast %87 : vector<1x1xf32> to vector<16x256xf32>
    %89 = arith.subf %80, %88 : vector<16x256xf32>
    %90 = arith.mulf %89, %89 : vector<16x256xf32>
    %91 = vector.shape_cast %90 : vector<16x256xf32> to vector<1x16x256xf32>
    %cst_26 = arith.constant dense<0.000000e+00> : vector<1xf32>
    %92 = vector.multi_reduction <add>, %91, %cst_26 [1, 2] : vector<1x16x256xf32> to vector<1xf32>
    %93 = vector.shape_cast %92 : vector<1xf32> to vector<1x1x1xf32>
    %94 = vector.extract %93[0, 0, 0] : f32 from vector<1x1x1xf32>
    %95 = vector.broadcast %94 : f32 to vector<1x1xf32>
    %cst_27 = arith.constant 4.096000e+03 : f32
    %96 = vector.broadcast %cst_27 : f32 to vector<1x1xf32>
    %97 = arith.divf %95, %96 : vector<1x1xf32>
    %cst_28 = arith.constant 9.99999974E-6 : f32
    %98 = vector.broadcast %cst_28 : f32 to vector<1x1xf32>
    %99 = arith.addf %97, %98 : vector<1x1xf32>
    %100 = math.rsqrt %99 : vector<1x1xf32>
    %101 = vector.broadcast %100 : vector<1x1xf32> to vector<16x1xf32>
    %102 = arith.mulf %5, %101 : vector<16x1xf32>
    %103 = vector.broadcast %102 : vector<16x1xf32> to vector<16x256xf32>
    %104 = arith.mulf %89, %103 : vector<16x256xf32>
    %105 = vector.broadcast %6 : vector<16x1xf32> to vector<16x256xf32>
    %106 = arith.addf %104, %105 : vector<16x256xf32>
    %c0_29 = arith.constant 0 : index
    %c0_30 = arith.constant 0 : index
    %107 = vector.load %arg6[%c0_29, %c0_30] : memref<64x16xbf16, #tpu.memory_space<vmem>>, vector<64x16xbf16>
    %108 = arith.truncf %106 : vector<16x256xf32> to vector<16x256xbf16>
    %cst_31 = arith.constant dense<0.000000e+00> : vector<64x256xf32>
    %109 = tpu.matmul %107, %108, %cst_31 {dimension_numbers = #tpu.dot_dimension_numbers<[1], [0], [0], [1], [0, 0, 1, 1], [], []>} : vector<64x16xbf16>, vector<16x256xbf16>, vector<64x256xf32> -> vector<64x256xf32>
    %110 = vector.broadcast %11 : vector<64x1xf32> to vector<64x256xf32>
    %111 = arith.addf %109, %110 : vector<64x256xf32>
    %cst_32 = arith.constant 5.000000e-01 : f32
    %112 = vector.broadcast %cst_32 : f32 to vector<64x256xf32>
    %113 = arith.mulf %112, %111 : vector<64x256xf32>
    %cst_33 = arith.constant 4.471500e-02 : f32
    %114 = vector.broadcast %cst_33 : f32 to vector<64x256xf32>
    %115 = arith.mulf %114, %111 : vector<64x256xf32>
    %116 = arith.mulf %115, %111 : vector<64x256xf32>
    %117 = arith.mulf %116, %111 : vector<64x256xf32>
    %118 = arith.addf %111, %117 : vector<64x256xf32>
    %cst_34 = arith.constant 0.797884583 : f32
    %119 = vector.broadcast %cst_34 : f32 to vector<64x256xf32>
    %120 = arith.mulf %119, %118 : vector<64x256xf32>
    %121 = math.tanh %120 : vector<64x256xf32>
    %cst_35 = arith.constant 1.000000e+00 : f32
    %122 = vector.broadcast %cst_35 : f32 to vector<64x256xf32>
    %123 = arith.addf %122, %121 : vector<64x256xf32>
    %124 = arith.mulf %113, %123 : vector<64x256xf32>
    %125 = vector.shape_cast %124 : vector<64x256xf32> to vector<1x64x256xf32>
    %cst_36 = arith.constant dense<0.000000e+00> : vector<1xf32>
    %126 = vector.multi_reduction <add>, %125, %cst_36 [1, 2] : vector<1x64x256xf32> to vector<1xf32>
    %127 = vector.shape_cast %126 : vector<1xf32> to vector<1x1x1xf32>
    %128 = vector.extract %127[0, 0, 0] : f32 from vector<1x1x1xf32>
    %129 = vector.broadcast %128 : f32 to vector<1x1xf32>
    %cst_37 = arith.constant 1.638400e+04 : f32
    %130 = vector.broadcast %cst_37 : f32 to vector<1x1xf32>
    %131 = arith.divf %129, %130 : vector<1x1xf32>
    %132 = vector.broadcast %131 : vector<1x1xf32> to vector<64x256xf32>
    %133 = arith.subf %124, %132 : vector<64x256xf32>
    %134 = arith.mulf %133, %133 : vector<64x256xf32>
    %135 = vector.shape_cast %134 : vector<64x256xf32> to vector<1x64x256xf32>
    %cst_38 = arith.constant dense<0.000000e+00> : vector<1xf32>
    %136 = vector.multi_reduction <add>, %135, %cst_38 [1, 2] : vector<1x64x256xf32> to vector<1xf32>
    %137 = vector.shape_cast %136 : vector<1xf32> to vector<1x1x1xf32>
    %138 = vector.extract %137[0, 0, 0] : f32 from vector<1x1x1xf32>
    %139 = vector.broadcast %138 : f32 to vector<1x1xf32>
    %cst_39 = arith.constant 1.638400e+04 : f32
    %140 = vector.broadcast %cst_39 : f32 to vector<1x1xf32>
    %141 = arith.divf %139, %140 : vector<1x1xf32>
    %cst_40 = arith.constant 9.99999974E-6 : f32
    %142 = vector.broadcast %cst_40 : f32 to vector<1x1xf32>
    %143 = arith.addf %141, %142 : vector<1x1xf32>
    %144 = math.rsqrt %143 : vector<1x1xf32>
    %145 = vector.broadcast %144 : vector<1x1xf32> to vector<64x1xf32>
    %146 = arith.mulf %12, %145 : vector<64x1xf32>
    %147 = vector.broadcast %146 : vector<64x1xf32> to vector<64x256xf32>
    %148 = arith.mulf %133, %147 : vector<64x256xf32>
    %149 = vector.broadcast %13 : vector<64x1xf32> to vector<64x256xf32>
    %150 = arith.addf %148, %149 : vector<64x256xf32>
    %151 = arith.truncf %150 : vector<64x256xf32> to vector<64x256xbf16>
    %cst_41 = arith.constant 5.000000e-01 : bf16
    %152 = vector.broadcast %cst_41 : bf16 to vector<64x256xbf16>
    %153 = arith.mulf %152, %151 : vector<64x256xbf16>
    %cst_42 = arith.constant 4.467770e-02 : bf16
    %154 = vector.broadcast %cst_42 : bf16 to vector<64x256xbf16>
    %155 = arith.mulf %154, %151 : vector<64x256xbf16>
    %156 = arith.mulf %155, %151 : vector<64x256xbf16>
    %157 = arith.mulf %156, %151 : vector<64x256xbf16>
    %158 = arith.addf %151, %157 : vector<64x256xbf16>
    %cst_43 = arith.constant 7.968750e-01 : bf16
    %159 = vector.broadcast %cst_43 : bf16 to vector<64x256xbf16>
    %160 = arith.mulf %159, %158 : vector<64x256xbf16>
    %161 = math.tanh %160 : vector<64x256xbf16>
    %cst_44 = arith.constant 1.000000e+00 : bf16
    %162 = vector.broadcast %cst_44 : bf16 to vector<64x256xbf16>
    %163 = arith.addf %162, %161 : vector<64x256xbf16>
    %164 = arith.mulf %153, %163 : vector<64x256xbf16>
    %c0_45 = arith.constant 0 : index
    %c0_46 = arith.constant 0 : index
    %165 = vector.load %arg7[%c0_45, %c0_46] : memref<16x64xbf16, #tpu.memory_space<vmem>>, vector<16x64xbf16>
    %cst_47 = arith.constant dense<0.000000e+00> : vector<16x256xf32>
    %166 = tpu.matmul %165, %164, %cst_47 {dimension_numbers = #tpu.dot_dimension_numbers<[1], [0], [0], [1], [0, 0, 1, 1], [], []>} : vector<16x64xbf16>, vector<64x256xbf16>, vector<16x256xf32> -> vector<16x256xf32>
    %167 = vector.broadcast %7 : vector<16x1xf32> to vector<16x256xf32>
    %168 = arith.addf %166, %167 : vector<16x256xf32>
    %169 = vector.broadcast %9 : vector<16x1xf32> to vector<16x256xf32>
    %170 = arith.mulf %169, %80 : vector<16x256xf32>
    %171 = arith.addf %168, %170 : vector<16x256xf32>
    %172 = arith.addf %171, %15 : vector<16x256xf32>
    %c0_48 = arith.constant 0 : index
    %c0_49 = arith.constant 0 : index
    %c0_50 = arith.constant 0 : index
    %173 = vector.load %arg8[%c0_48, %c0_49, %c0_50] : memref<2x16x256xf32, #tpu.memory_space<vmem>>, vector<1x16x256xf32>
    %174 = vector.shape_cast %173 : vector<1x16x256xf32> to vector<16x256xf32>
    %175 = vector.shape_cast %172 : vector<16x256xf32> to vector<1x16x256xf32>
    tpu.vector_store %arg8[%c0_48, %c0_49, %c0_50], %175 {strides = array<i32>} : memref<2x16x256xf32, #tpu.memory_space<vmem>>, vector<1x16x256xf32>,
    %c1 = arith.constant 1 : index
    %c0_51 = arith.constant 0 : index
    %c0_52 = arith.constant 0 : index
    %176 = vector.load %arg1[%c1, %c0_51, %c0_52] : memref<2x16x256xf32, #tpu.memory_space<vmem>>, vector<1x16x256xf32>
    %177 = vector.shape_cast %176 : vector<1x16x256xf32> to vector<16x256xf32>
    %178 = vector.shape_cast %177 : vector<16x256xf32> to vector<1x16x256xf32>
    %cst_53 = arith.constant dense<0.000000e+00> : vector<1xf32>
    %179 = vector.multi_reduction <add>, %178, %cst_53 [1, 2] : vector<1x16x256xf32> to vector<1xf32>
    %180 = vector.shape_cast %179 : vector<1xf32> to vector<1x1x1xf32>
    %181 = vector.extract %180[0, 0, 0] : f32 from vector<1x1x1xf32>
    %182 = vector.broadcast %181 : f32 to vector<1x1xf32>
    %cst_54 = arith.constant 4.096000e+03 : f32
    %183 = vector.broadcast %cst_54 : f32 to vector<1x1xf32>
    %184 = arith.divf %182, %183 : vector<1x1xf32>
    %185 = vector.broadcast %184 : vector<1x1xf32> to vector<16x256xf32>
    %186 = arith.subf %177, %185 : vector<16x256xf32>
    %187 = arith.mulf %186, %186 : vector<16x256xf32>
    %188 = vector.shape_cast %187 : vector<16x256xf32> to vector<1x16x256xf32>
    %cst_55 = arith.constant dense<0.000000e+00> : vector<1xf32>
    %189 = vector.multi_reduction <add>, %188, %cst_55 [1, 2] : vector<1x16x256xf32> to vector<1xf32>
    %190 = vector.shape_cast %189 : vector<1xf32> to vector<1x1x1xf32>
    %191 = vector.extract %190[0, 0, 0] : f32 from vector<1x1x1xf32>
    %192 = vector.broadcast %191 : f32 to vector<1x1xf32>
    %cst_56 = arith.constant 4.096000e+03 : f32
    %193 = vector.broadcast %cst_56 : f32 to vector<1x1xf32>
    %194 = arith.divf %192, %193 : vector<1x1xf32>
    %cst_57 = arith.constant 9.99999974E-6 : f32
    %195 = vector.broadcast %cst_57 : f32 to vector<1x1xf32>
    %196 = arith.addf %194, %195 : vector<1x1xf32>
    %197 = math.rsqrt %196 : vector<1x1xf32>
    %198 = vector.broadcast %197 : vector<1x1xf32> to vector<16x1xf32>
    %199 = arith.mulf %2, %198 : vector<16x1xf32>
    %200 = vector.broadcast %199 : vector<16x1xf32> to vector<16x256xf32>
    %201 = arith.mulf %186, %200 : vector<16x256xf32>
    %202 = vector.broadcast %3 : vector<16x1xf32> to vector<16x256xf32>
    %203 = arith.addf %201, %202 : vector<16x256xf32>
    %c0_58 = arith.constant 0 : index
    %c0_59 = arith.constant 0 : index
    %204 = vector.load %arg4[%c0_58, %c0_59] : memref<64x16xbf16, #tpu.memory_space<vmem>>, vector<64x16xbf16>
    %205 = arith.truncf %203 : vector<16x256xf32> to vector<16x256xbf16>
    %cst_60 = arith.constant dense<0.000000e+00> : vector<64x256xf32>
    %206 = tpu.matmul %204, %205, %cst_60 {dimension_numbers = #tpu.dot_dimension_numbers<[1], [0], [0], [1], [0, 0, 1, 1], [], []>} : vector<64x16xbf16>, vector<16x256xbf16>, vector<64x256xf32> -> vector<64x256xf32>
    %207 = vector.broadcast %10 : vector<64x1xf32> to vector<64x256xf32>
    %208 = arith.addf %206, %207 : vector<64x256xf32>
    %209 = arith.truncf %208 : vector<64x256xf32> to vector<64x256xbf16>
    %cst_61 = arith.constant 5.000000e-01 : bf16
    %210 = vector.broadcast %cst_61 : bf16 to vector<64x256xbf16>
    %211 = arith.mulf %210, %209 : vector<64x256xbf16>
    %cst_62 = arith.constant 4.467770e-02 : bf16
    %212 = vector.broadcast %cst_62 : bf16 to vector<64x256xbf16>
    %213 = arith.mulf %212, %209 : vector<64x256xbf16>
    %214 = arith.mulf %213, %209 : vector<64x256xbf16>
    %215 = arith.mulf %214, %209 : vector<64x256xbf16>
    %216 = arith.addf %209, %215 : vector<64x256xbf16>
    %cst_63 = arith.constant 7.968750e-01 : bf16
    %217 = vector.broadcast %cst_63 : bf16 to vector<64x256xbf16>
    %218 = arith.mulf %217, %216 : vector<64x256xbf16>
    %219 = math.tanh %218 : vector<64x256xbf16>
    %cst_64 = arith.constant 1.000000e+00 : bf16
    %220 = vector.broadcast %cst_64 : bf16 to vector<64x256xbf16>
    %221 = arith.addf %220, %219 : vector<64x256xbf16>
    %222 = arith.mulf %211, %221 : vector<64x256xbf16>
    %c0_65 = arith.constant 0 : index
    %c0_66 = arith.constant 0 : index
    %223 = vector.load %arg5[%c0_65, %c0_66] : memref<16x64xbf16, #tpu.memory_space<vmem>>, vector<16x64xbf16>
    %cst_67 = arith.constant dense<0.000000e+00> : vector<16x256xf32>
    %224 = tpu.matmul %223, %222, %cst_67 {dimension_numbers = #tpu.dot_dimension_numbers<[1], [0], [0], [1], [0, 0, 1, 1], [], []>} : vector<16x64xbf16>, vector<64x256xbf16>, vector<16x256xf32> -> vector<16x256xf32>
    %225 = vector.broadcast %4 : vector<16x1xf32> to vector<16x256xf32>
    %226 = arith.addf %224, %225 : vector<16x256xf32>
    %cst_68 = arith.constant 5.000000e-01 : f32
    %227 = vector.broadcast %cst_68 : f32 to vector<16x256xf32>
    %228 = arith.mulf %227, %226 : vector<16x256xf32>
    %cst_69 = arith.constant 4.471500e-02 : f32
    %229 = vector.broadcast %cst_69 : f32 to vector<16x256xf32>
    %230 = arith.mulf %229, %226 : vector<16x256xf32>
    %231 = arith.mulf %230, %226 : vector<16x256xf32>
    %232 = arith.mulf %231, %226 : vector<16x256xf32>
    %233 = arith.addf %226, %232 : vector<16x256xf32>
    %cst_70 = arith.constant 0.797884583 : f32
    %234 = vector.broadcast %cst_70 : f32 to vector<16x256xf32>
    %235 = arith.mulf %234, %233 : vector<16x256xf32>
    %236 = math.tanh %235 : vector<16x256xf32>
    %cst_71 = arith.constant 1.000000e+00 : f32
    %237 = vector.broadcast %cst_71 : f32 to vector<16x256xf32>
    %238 = arith.addf %237, %236 : vector<16x256xf32>
    %239 = arith.mulf %228, %238 : vector<16x256xf32>
    %240 = vector.broadcast %8 : vector<16x1xf32> to vector<16x256xf32>
    %241 = arith.mulf %240, %239 : vector<16x256xf32>
    %242 = arith.addf %241, %177 : vector<16x256xf32>
    %243 = vector.shape_cast %242 : vector<16x256xf32> to vector<1x16x256xf32>
    %cst_72 = arith.constant dense<0.000000e+00> : vector<1xf32>
    %244 = vector.multi_reduction <add>, %243, %cst_72 [1, 2] : vector<1x16x256xf32> to vector<1xf32>
    %245 = vector.shape_cast %244 : vector<1xf32> to vector<1x1x1xf32>
    %246 = vector.extract %245[0, 0, 0] : f32 from vector<1x1x1xf32>
    %247 = vector.broadcast %246 : f32 to vector<1x1xf32>
    %cst_73 = arith.constant 4.096000e+03 : f32
    %248 = vector.broadcast %cst_73 : f32 to vector<1x1xf32>
    %249 = arith.divf %247, %248 : vector<1x1xf32>
    %250 = vector.broadcast %249 : vector<1x1xf32> to vector<16x256xf32>
    %251 = arith.subf %242, %250 : vector<16x256xf32>
    %252 = arith.mulf %251, %251 : vector<16x256xf32>
    %253 = vector.shape_cast %252 : vector<16x256xf32> to vector<1x16x256xf32>
    %cst_74 = arith.constant dense<0.000000e+00> : vector<1xf32>
    %254 = vector.multi_reduction <add>, %253, %cst_74 [1, 2] : vector<1x16x256xf32> to vector<1xf32>
    %255 = vector.shape_cast %254 : vector<1xf32> to vector<1x1x1xf32>
    %256 = vector.extract %255[0, 0, 0] : f32 from vector<1x1x1xf32>
    %257 = vector.broadcast %256 : f32 to vector<1x1xf32>
    %cst_75 = arith.constant 4.096000e+03 : f32
    %258 = vector.broadcast %cst_75 : f32 to vector<1x1xf32>
    %259 = arith.divf %257, %258 : vector<1x1xf32>
    %cst_76 = arith.constant 9.99999974E-6 : f32
    %260 = vector.broadcast %cst_76 : f32 to vector<1x1xf32>
    %261 = arith.addf %259, %260 : vector<1x1xf32>
    %262 = math.rsqrt %261 : vector<1x1xf32>
    %263 = vector.broadcast %262 : vector<1x1xf32> to vector<16x1xf32>
    %264 = arith.mulf %5, %263 : vector<16x1xf32>
    %265 = vector.broadcast %264 : vector<16x1xf32> to vector<16x256xf32>
    %266 = arith.mulf %251, %265 : vector<16x256xf32>
    %267 = vector.broadcast %6 : vector<16x1xf32> to vector<16x256xf32>
    %268 = arith.addf %266, %267 : vector<16x256xf32>
    %c0_77 = arith.constant 0 : index
    %c0_78 = arith.constant 0 : index
    %269 = vector.load %arg6[%c0_77, %c0_78] : memref<64x16xbf16, #tpu.memory_space<vmem>>, vector<64x16xbf16>
    %270 = arith.truncf %268 : vector<16x256xf32> to vector<16x256xbf16>
    %cst_79 = arith.constant dense<0.000000e+00> : vector<64x256xf32>
    %271 = tpu.matmul %269, %270, %cst_79 {dimension_numbers = #tpu.dot_dimension_numbers<[1], [0], [0], [1], [0, 0, 1, 1], [], []>} : vector<64x16xbf16>, vector<16x256xbf16>, vector<64x256xf32> -> vector<64x256xf32>
    %272 = vector.broadcast %11 : vector<64x1xf32> to vector<64x256xf32>
    %273 = arith.addf %271, %272 : vector<64x256xf32>
    %cst_80 = arith.constant 5.000000e-01 : f32
    %274 = vector.broadcast %cst_80 : f32 to vector<64x256xf32>
    %275 = arith.mulf %274, %273 : vector<64x256xf32>
    %cst_81 = arith.constant 4.471500e-02 : f32
    %276 = vector.broadcast %cst_81 : f32 to vector<64x256xf32>
    %277 = arith.mulf %276, %273 : vector<64x256xf32>
    %278 = arith.mulf %277, %273 : vector<64x256xf32>
    %279 = arith.mulf %278, %273 : vector<64x256xf32>
    %280 = arith.addf %273, %279 : vector<64x256xf32>
    %cst_82 = arith.constant 0.797884583 : f32
    %281 = vector.broadcast %cst_82 : f32 to vector<64x256xf32>
    %282 = arith.mulf %281, %280 : vector<64x256xf32>
    %283 = math.tanh %282 : vector<64x256xf32>
    %cst_83 = arith.constant 1.000000e+00 : f32
    %284 = vector.broadcast %cst_83 : f32 to vector<64x256xf32>
    %285 = arith.addf %284, %283 : vector<64x256xf32>
    %286 = arith.mulf %275, %285 : vector<64x256xf32>
    %287 = vector.shape_cast %286 : vector<64x256xf32> to vector<1x64x256xf32>
    %cst_84 = arith.constant dense<0.000000e+00> : vector<1xf32>
    %288 = vector.multi_reduction <add>, %287, %cst_84 [1, 2] : vector<1x64x256xf32> to vector<1xf32>
    %289 = vector.shape_cast %288 : vector<1xf32> to vector<1x1x1xf32>
    %290 = vector.extract %289[0, 0, 0] : f32 from vector<1x1x1xf32>
    %291 = vector.broadcast %290 : f32 to vector<1x1xf32>
    %cst_85 = arith.constant 1.638400e+04 : f32
    %292 = vector.broadcast %cst_85 : f32 to vector<1x1xf32>
    %293 = arith.divf %291, %292 : vector<1x1xf32>
    %294 = vector.broadcast %293 : vector<1x1xf32> to vector<64x256xf32>
    %295 = arith.subf %286, %294 : vector<64x256xf32>
    %296 = arith.mulf %295, %295 : vector<64x256xf32>
    %297 = vector.shape_cast %296 : vector<64x256xf32> to vector<1x64x256xf32>
    %cst_86 = arith.constant dense<0.000000e+00> : vector<1xf32>
    %298 = vector.multi_reduction <add>, %297, %cst_86 [1, 2] : vector<1x64x256xf32> to vector<1xf32>
    %299 = vector.shape_cast %298 : vector<1xf32> to vector<1x1x1xf32>
    %300 = vector.extract %299[0, 0, 0] : f32 from vector<1x1x1xf32>
    %301 = vector.broadcast %300 : f32 to vector<1x1xf32>
    %cst_87 = arith.constant 1.638400e+04 : f32
    %302 = vector.broadcast %cst_87 : f32 to vector<1x1xf32>
    %303 = arith.divf %301, %302 : vector<1x1xf32>
    %cst_88 = arith.constant 9.99999974E-6 : f32
    %304 = vector.broadcast %cst_88 : f32 to vector<1x1xf32>
    %305 = arith.addf %303, %304 : vector<1x1xf32>
    %306 = math.rsqrt %305 : vector<1x1xf32>
    %307 = vector.broadcast %306 : vector<1x1xf32> to vector<64x1xf32>
    %308 = arith.mulf %12, %307 : vector<64x1xf32>
    %309 = vector.broadcast %308 : vector<64x1xf32> to vector<64x256xf32>
    %310 = arith.mulf %295, %309 : vector<64x256xf32>
    %311 = vector.broadcast %13 : vector<64x1xf32> to vector<64x256xf32>
    %312 = arith.addf %310, %311 : vector<64x256xf32>
    %313 = arith.truncf %312 : vector<64x256xf32> to vector<64x256xbf16>
    %cst_89 = arith.constant 5.000000e-01 : bf16
    %314 = vector.broadcast %cst_89 : bf16 to vector<64x256xbf16>
    %315 = arith.mulf %314, %313 : vector<64x256xbf16>
    %cst_90 = arith.constant 4.467770e-02 : bf16
    %316 = vector.broadcast %cst_90 : bf16 to vector<64x256xbf16>
    %317 = arith.mulf %316, %313 : vector<64x256xbf16>
    %318 = arith.mulf %317, %313 : vector<64x256xbf16>
    %319 = arith.mulf %318, %313 : vector<64x256xbf16>
    %320 = arith.addf %313, %319 : vector<64x256xbf16>
    %cst_91 = arith.constant 7.968750e-01 : bf16
    %321 = vector.broadcast %cst_91 : bf16 to vector<64x256xbf16>
    %322 = arith.mulf %321, %320 : vector<64x256xbf16>
    %323 = math.tanh %322 : vector<64x256xbf16>
    %cst_92 = arith.constant 1.000000e+00 : bf16
    %324 = vector.broadcast %cst_92 : bf16 to vector<64x256xbf16>
    %325 = arith.addf %324, %323 : vector<64x256xbf16>
    %326 = arith.mulf %315, %325 : vector<64x256xbf16>
    %c0_93 = arith.constant 0 : index
    %c0_94 = arith.constant 0 : index
    %327 = vector.load %arg7[%c0_93, %c0_94] : memref<16x64xbf16, #tpu.memory_space<vmem>>, vector<16x64xbf16>
    %cst_95 = arith.constant dense<0.000000e+00> : vector<16x256xf32>
    %328 = tpu.matmul %327, %326, %cst_95 {dimension_numbers = #tpu.dot_dimension_numbers<[1], [0], [0], [1], [0, 0, 1, 1], [], []>} : vector<16x64xbf16>, vector<64x256xbf16>, vector<16x256xf32> -> vector<16x256xf32>
    %329 = vector.broadcast %7 : vector<16x1xf32> to vector<16x256xf32>
    %330 = arith.addf %328, %329 : vector<16x256xf32>
    %331 = vector.broadcast %9 : vector<16x1xf32> to vector<16x256xf32>
    %332 = arith.mulf %331, %242 : vector<16x256xf32>
    %333 = arith.addf %330, %332 : vector<16x256xf32>
    %334 = arith.addf %333, %177 : vector<16x256xf32>
    %c1_96 = arith.constant 1 : index
    %c0_97 = arith.constant 0 : index
    %c0_98 = arith.constant 0 : index
    %335 = vector.load %arg8[%c1_96, %c0_97, %c0_98] : memref<2x16x256xf32, #tpu.memory_space<vmem>>, vector<1x16x256xf32>
    %336 = vector.shape_cast %335 : vector<1x16x256xf32> to vector<16x256xf32>
    %337 = vector.shape_cast %334 : vector<16x256xf32> to vector<1x16x256xf32>
    tpu.vector_store %arg8[%c1_96, %c0_97, %c0_98], %337 {strides = array<i32>} : memref<2x16x256xf32, #tpu.memory_space<vmem>>, vector<1x16x256xf32>,
    return
  }
  func.func @transform_0(%arg0: i32) -> (i32, i32, i32) {
    %c0_i32 = arith.constant 0 : i32
    %c0_i32_0 = arith.constant 0 : i32
    %c0_i32_1 = arith.constant 0 : i32
    return %arg0, %c0_i32, %c0_i32_0 : i32, i32, i32
  }
  func.func @transform_1(%arg0: i32) -> (i32, i32) {
    %c0_i32 = arith.constant 0 : i32
    %c0_i32_0 = arith.constant 0 : i32
    %c0_i32_1 = arith.constant 0 : i32
    return %c0_i32, %c0_i32_0 : i32, i32
  }
  func.func @transform_2(%arg0: i32) -> (i32, i32) {
    %c0_i32 = arith.constant 0 : i32
    %c0_i32_0 = arith.constant 0 : i32
    %c0_i32_1 = arith.constant 0 : i32
    return %c0_i32, %c0_i32_0 : i32, i32
  }
  func.func @transform_3(%arg0: i32) -> (i32, i32) {
    %c0_i32 = arith.constant 0 : i32
    %c0_i32_0 = arith.constant 0 : i32
    %c0_i32_1 = arith.constant 0 : i32
    return %c0_i32, %c0_i32_0 : i32, i32
  }
  func.func @transform_4(%arg0: i32) -> (i32, i32) {
    %c0_i32 = arith.constant 0 : i32
    %c0_i32_0 = arith.constant 0 : i32
    %c0_i32_1 = arith.constant 0 : i32
    return %c0_i32, %c0_i32_0 : i32, i32
  }
  func.func @transform_5(%arg0: i32) -> (i32, i32) {
    %c0_i32 = arith.constant 0 : i32
    %c0_i32_0 = arith.constant 0 : i32
    %c0_i32_1 = arith.constant 0 : i32
    return %c0_i32, %c0_i32_0 : i32, i32
  }
  func.func @transform_6(%arg0: i32) -> (i32, i32) {
    %c0_i32 = arith.constant 0 : i32
    %c0_i32_0 = arith.constant 0 : i32
    %c0_i32_1 = arith.constant 0 : i32
    return %c0_i32, %c0_i32_0 : i32, i32
  }
  func.func @transform_7(%arg0: i32) -> (i32, i32, i32) {
    %c0_i32 = arith.constant 0 : i32
    %c0_i32_0 = arith.constant 0 : i32
    %c0_i32_1 = arith.constant 0 : i32
    return %arg0, %c0_i32, %c0_i32_0 : i32, i32, i32
  }
}

</mosaic_0001>

<llo_original>
// kernel: tpu_custom_call.1
$region0: #{tpu_custom_call.1}
  #allocation0 [shape = 'u32[]', space=smem, size = 0x4, offset = 0x4, fixed_abs, tag = 'smem constant byte address 0x4 - core index']
  #allocation1 [shape = 'u32[72,128]{1,0:T(1,128)}', space=vmem, size = 0x9000, scoped, tag = 'internal scratch']
  %s0 = inlined_call_operand.vmem [shape: f32[2,16,256], index: 0, kind: input, shape index: {}]
  %s1 = inlined_call_operand.vmem [shape: f32[16,8], index: 1, kind: input, shape index: {}]
  %s2 = inlined_call_operand.vmem [shape: f32[64,4], index: 2, kind: input, shape index: {}]
  %s3 = inlined_call_operand.vmem [shape: bf16[64,16], index: 3, kind: input, shape index: {}]
  %s4 = inlined_call_operand.vmem [shape: bf16[16,64], index: 4, kind: input, shape index: {}]
  %s5 = inlined_call_operand.vmem [shape: bf16[64,16], index: 5, kind: input, shape index: {}]
  %s6 = inlined_call_operand.vmem [shape: bf16[16,64], index: 6, kind: input, shape index: {}]
  %s7 = inlined_call_operand.hbm [shape: f32[2,16,256], index: 7, kind: output, shape index: {}]
  %s8 = sld [smem:[#allocation0]]
  $region38: #{tpu_custom_call.1} parent=0
    _
  %s10 = ssub.s32 1, %s8
  %s11 = scalar_select 0, %s10, %s8
  $region1: #{tpu_custom_call.1} parent=0
    #allocation2 [shape = 'u8[32768]{0}', space=vmem, size = 0x8000, scoped, tag = 'output window, operand 0, single buffered']
    #allocation3 [shape = 's32[1]{0}', space=sflag, size = 0x4, scoped, tag = 'scoped memory for tpu_custom_call.1']
    %12 = vsyncpa [#allocation3], 0
    // Predicated region
    $region2: #{tpu_custom_call.1} parent=1 // pred_check
      _
    $region3: #{tpu_custom_call.1} parent=1 // pred_check_branch
      %14 = sbr.rel (0) target = $region5
    $region4: #{tpu_custom_call.1} parent=1 // pred_region
      _
    $region5: #{tpu_custom_call.1} parent=1 // pred_fallthru
      _
    // Predicated region
    $region6: #{tpu_custom_call.1} parent=1 // pred_check
      _
    $region7: #{tpu_custom_call.1} parent=1 // pred_check_branch
      %16 = sbr.rel (0) target = $region9
    $region8: #{tpu_custom_call.1} parent=1 // pred_region
      _
    $region9: #{tpu_custom_call.1} parent=1 // pred_fallthru
      _
    // Predicated region
    $region10: #{tpu_custom_call.1} parent=1 // pred_check
      _
    $region11: #{tpu_custom_call.1} parent=1 // pred_check_branch
      %18 = sbr.rel (0) target = $region13
    $region12: #{tpu_custom_call.1} parent=1 // pred_region
      _
    $region13: #{tpu_custom_call.1} parent=1 // pred_fallthru
      _
    // Predicated region
    $region14: #{tpu_custom_call.1} parent=1 // pred_check
      _
    $region15: #{tpu_custom_call.1} parent=1 // pred_check_branch
      %20 = sbr.rel (0) target = $region17
    $region16: #{tpu_custom_call.1} parent=1 // pred_region
      _
    $region17: #{tpu_custom_call.1} parent=1 // pred_fallthru
      _
    // Predicated region
    $region18: #{tpu_custom_call.1} parent=1 // pred_check
      _
    $region19: #{tpu_custom_call.1} parent=1 // pred_check_branch
      %22 = sbr.rel (0) target = $region21
    $region20: #{tpu_custom_call.1} parent=1 // pred_region
      _
    $region21: #{tpu_custom_call.1} parent=1 // pred_fallthru
      _
    // Predicated region
    $region22: #{tpu_custom_call.1} parent=1 // pred_check
      _
    $region23: #{tpu_custom_call.1} parent=1 // pred_check_branch
      %24 = sbr.rel (0) target = $region25
    $region24: #{tpu_custom_call.1} parent=1 // pred_region
      _
    $region25: #{tpu_custom_call.1} parent=1 // pred_fallthru
      _
    // Predicated region
    $region26: #{tpu_custom_call.1} parent=1 // pred_check
      _
    $region27: #{tpu_custom_call.1} parent=1 // pred_check_branch
      %26 = sbr.rel (0) target = $region29
    $region28: #{tpu_custom_call.1} parent=1 // pred_region
      _
    $region29: #{tpu_custom_call.1} parent=1 // pred_fallthru
      _
    %v28 = vld [vmem:[%s1] sm:$0xff]
    %v29 = vld [vmem:[%s1 + $0x8] sm:$0xff]
    %v30 = vld [vmem:[%s2] sm:$0xff]
    %v31 = vld [vmem:[%s2 + $0x8] sm:$0xff]
    %v32 = vld [vmem:[%s2 + $0x10] sm:$0xff]
    %v33 = vld [vmem:[%s2 + $0x18] sm:$0xff]
    %v34 = vld [vmem:[%s2 + $0x20] sm:$0xff]
    %v35 = vld [vmem:[%s2 + $0x28] sm:$0xff]
    %v36 = vld [vmem:[%s2 + $0x30] sm:$0xff]
    %v37 = vld [vmem:[%s2 + $0x38] sm:$0xff]
    %v38 = vld [vmem:[%s0] sm:$0xff]
    %v39 = vld [vmem:[%s0 + $0x8] sm:$0xff]
    %v40 = vld [vmem:[%s0 + $0x10] sm:$0xff]
    %v41 = vld [vmem:[%s0 + $0x18] sm:$0xff]
    %v42 = vadd.f32 %v38, %v39
    %v43 = vadd.f32 %v42, %v40
    %v44 = vadd.f32 %v43, %v41
    %45 = vadd.xlane.f32.xlu0 %v44
    %v46 = vpop.xlane.xlu0 %45
    %v47 = vrot.slane %v46, 4
    %v48 = vadd.f32 %v46, %v47
    %v49 = vrot.slane %v48, 2
    %v50 = vadd.f32 %v48, %v49
    %v51 = vrot.slane %v50, 1
    %v52 = vadd.f32 %v50, %v51
    %s53 = vtos %v52
    %v54 = vstv %s53
    %v55 = vrcp.pop 4096.0
    %v56 = vmul.f32 4096.0, %v55
    %v57 = vsub.f32 1.0, %v56
    %v58 = vmul.f32 %v55, %v57
    %v59 = vadd.f32 %v55, %v58
    %vm60 = vweird.f32 %v55
    %v61 = vsel %vm60, %v55, %v59
    %v62 = vmul.f32 %v54, %v61
    %v63 = vsub.f32 %v38, %v62
    %v64 = vsub.f32 %v39, %v62
    %v65 = vsub.f32 %v40, %v62
    %v66 = vsub.f32 %v41, %v62
    %v67 = vmul.f32 %v63, %v63
    %v68 = vmul.f32 %v64, %v64
    %v69 = vmul.f32 %v65, %v65
    %v70 = vmul.f32 %v66, %v66
    %v71 = vadd.f32 %v67, %v68
    %v72 = vadd.f32 %v71, %v69
    %v73 = vadd.f32 %v72, %v70
    %74 = vadd.xlane.f32.xlu0 %v73
    %v75 = vpop.xlane.xlu0 %74
    %v76 = vrot.slane %v75, 4
    %v77 = vadd.f32 %v75, %v76
    %v78 = vrot.slane %v77, 2
    %v79 = vadd.f32 %v77, %v78
    %v80 = vrot.slane %v79, 1
    %v81 = vadd.f32 %v79, %v80
    %s82 = vtos %v81
    %v83 = vstv %s82
    %v84 = vmul.f32 %v83, %v61
    %v85 = vadd.f32 %v84, 1e-05
    %v86 = vrsqrt.pop %v85
    %v87 = vmul.f32 %v86, %v85
    %v88 = vmul.f32 %v87, %v86
    %v89 = vmul.f32 0.5, %v88
    %v90 = vsub.f32 1.5, %v89
    %v91 = vmul.f32 %v86, %v90
    %vm92 = vweird.f32 %v85
    %vm93 = vweird.f32 %v86
    %vm94 = vmor %vm92, %vm93
    %v95 = vsel %vm94, %v86, %v91
    %v96 = vmul.f32 %v28, %v95
    %v97 = vmul.f32 %v29, %v95
    %99 = vset.pattern.permute.xlu0 0
    %100 = vperm.xlu0 %99, %v96
    %v101 = vpop.permute.xlu0 %100
    %104 = vset.pattern.permute.xlu0 0
    %105 = vperm.xlu0 %104, %v97
    %v106 = vpop.permute.xlu0 %105
    %v108 = vmul.f32 %v63, %v101
    %v109 = vmul.f32 %v64, %v101
    %v110 = vmul.f32 %v65, %v106
    %v111 = vmul.f32 %v66, %v106
    %113 = vset.pattern.permute.xlu0 1
    %114 = vperm.xlu0 %113, %v28
    %v115 = vpop.permute.xlu0 %114
    %118 = vset.pattern.permute.xlu0 1
    %119 = vperm.xlu0 %118, %v29
    %v120 = vpop.permute.xlu0 %119
    %v122 = vadd.f32 %v108, %v115
    %v123 = vadd.f32 %v109, %v115
    %v124 = vadd.f32 %v110, %v120
    %v125 = vadd.f32 %v111, %v120
    %v126 = vld [vmem:[%s3] sm:$0xf]
    %v127 = vld [vmem:[%s3 + $0x4] sm:$0xf]
    %v128 = vld [vmem:[%s3 + $0x8] sm:$0xf]
    %v129 = vld [vmem:[%s3 + $0xc] sm:$0xf]
    %v130 = vld [vmem:[%s3 + $0x10] sm:$0xf]
    %v131 = vld [vmem:[%s3 + $0x14] sm:$0xf]
    %v132 = vld [vmem:[%s3 + $0x18] sm:$0xf]
    %v133 = vld [vmem:[%s3 + $0x1c] sm:$0xf]
    %v134 = vpack.c.bf16 %v124, %v122
    %v135 = vpack.c.bf16 %v125, %v123
    %137 = vset.pattern.permute.xlu0 0
    %138 = vperm.xlu0 %137, %v30
    %v139 = vpop.permute.xlu0 %138
    %142 = vset.pattern.permute.xlu0 0
    %143 = vperm.xlu0 %142, %v31
    %v144 = vpop.permute.xlu0 %143
    %147 = vset.pattern.permute.xlu0 0
    %148 = vperm.xlu0 %147, %v32
    %v149 = vpop.permute.xlu0 %148
    %152 = vset.pattern.permute.xlu0 0
    %153 = vperm.xlu0 %152, %v33
    %v154 = vpop.permute.xlu0 %153
    %157 = vset.pattern.permute.xlu0 0
    %158 = vperm.xlu0 %157, %v34
    %v159 = vpop.permute.xlu0 %158
    %162 = vset.pattern.permute.xlu0 0
    %163 = vperm.xlu0 %162, %v35
    %v164 = vpop.permute.xlu0 %163
    %167 = vset.pattern.permute.xlu0 0
    %168 = vperm.xlu0 %167, %v36
    %v169 = vpop.permute.xlu0 %168
    %172 = vset.pattern.permute.xlu0 0
    %173 = vperm.xlu0 %172, %v37
    %v174 = vpop.permute.xlu0 %173
    %v184 = vunpack.c.l.b16 %v126
    %v185 = vunpack.c.l.b16 %v127
    %v186 = vunpack.c.l.b16 %v128
    %v187 = vunpack.c.l.b16 %v129
    %v188 = vunpack.c.l.b16 %v130
    %v189 = vunpack.c.l.b16 %v131
    %v190 = vunpack.c.l.b16 %v132
    %v191 = vunpack.c.l.b16 %v133
    %v192 = vpack.c.b16 %v185, %v184
    %v193 = vpack.c.b16 %v187, %v186
    %v194 = vpack.c.b16 %v189, %v188
    %v195 = vpack.c.b16 %v191, %v190
    %vm196 = vcmask 130048
    %v198 = vsel %vm196, %v192, 0
    %v201 = vsel %vm196, %v193, 0
    %v204 = vsel %vm196, %v194, 0
    %v207 = vsel %vm196, %v195, 0
    %209 = vmatpush.bf16.msra.mxu0 0
    %210 = vmatpush.bf16.msra.mxu0 0
    %211 = vmatpush.bf16.msra.mxu0 0
    %212 = vmatpush.bf16.msra.mxu0 0
    %213 = vmatpush.bf16.msra.mxu0 0
    %214 = vmatpush.bf16.msra.mxu0 0
    %215 = vmatpush.bf16.msra.mxu0 0
    %216 = vmatpush.bf16.msra.mxu0 %v134
    %217 = vmatmul.bf16.gmra.mxu0 %v198
    %v218 = vpop.f32.mrf.mxu0
    %v219 = vadd.f32 %v139, %v218
    %v220 = vpop.f32.mrf.mxu0
    %v221 = vadd.f32 %v144, %v220
    %222 = vmatmul.bf16.gmra.mxu0 %v201
    %v223 = vpop.f32.mrf.mxu0
    %v224 = vadd.f32 %v149, %v223
    %v225 = vpop.f32.mrf.mxu0
    %v226 = vadd.f32 %v154, %v225
    %227 = vmatmul.bf16.gmra.mxu0 %v204
    %v228 = vpop.f32.mrf.mxu0
    %v229 = vadd.f32 %v159, %v228
    %v230 = vpop.f32.mrf.mxu0
    %v231 = vadd.f32 %v164, %v230
    %232 = vmatmul.bf16.gmra.mxu0 %v207
    %v233 = vpop.f32.mrf.mxu0
    %v234 = vadd.f32 %v169, %v233
    %v235 = vpop.f32.mrf.mxu0
    %v236 = vadd.f32 %v174, %v235
    %237 = vdwg.mxu0
    %238 = vmatpush.bf16.msra.mxu0 0
    %239 = vmatpush.bf16.msra.mxu0 0
    %240 = vmatpush.bf16.msra.mxu0 0
    %241 = vmatpush.bf16.msra.mxu0 0
    %242 = vmatpush.bf16.msra.mxu0 0
    %243 = vmatpush.bf16.msra.mxu0 0
    %244 = vmatpush.bf16.msra.mxu0 0
    %245 = vmatpush.bf16.msra.mxu0 %v135
    %246 = vmatmul.bf16.gmra.mxu0 %v198
    %v247 = vpop.f32.mrf.mxu0
    %v248 = vadd.f32 %v139, %v247
    %v249 = vpop.f32.mrf.mxu0
    %v250 = vadd.f32 %v144, %v249
    %251 = vmatmul.bf16.gmra.mxu0 %v201
    %v252 = vpop.f32.mrf.mxu0
    %v253 = vadd.f32 %v149, %v252
    %v254 = vpop.f32.mrf.mxu0
    %v255 = vadd.f32 %v154, %v254
    %256 = vmatmul.bf16.gmra.mxu0 %v204
    %v257 = vpop.f32.mrf.mxu0
    %v258 = vadd.f32 %v159, %v257
    %v259 = vpop.f32.mrf.mxu0
    %v260 = vadd.f32 %v164, %v259
    %261 = vmatmul.bf16.gmra.mxu0 %v207
    %v262 = vpop.f32.mrf.mxu0
    %v263 = vadd.f32 %v169, %v262
    %v264 = vpop.f32.mrf.mxu0
    %v265 = vadd.f32 %v174, %v264
    %266 = vdwg.mxu0
    %v267 = vpack.c.bf16 %v248, %v219
    %v268 = vpack.c.bf16 %v250, %v221
    %v269 = vpack.c.bf16 %v253, %v224
    %v270 = vpack.c.bf16 %v255, %v226
    %v271 = vpack.c.bf16 %v258, %v229
    %v272 = vpack.c.bf16 %v260, %v231
    %v273 = vpack.c.bf16 %v263, %v234
    %v274 = vpack.c.bf16 %v265, %v236
    %v275 = vunpack.c.l.bf16 %v267
    %v276 = vunpack.c.h.bf16 %v267
    %v277 = vunpack.c.l.bf16 %v268
    %v278 = vunpack.c.h.bf16 %v268
    %v279 = vunpack.c.l.bf16 %v269
    %v280 = vunpack.c.h.bf16 %v269
    %v281 = vunpack.c.l.bf16 %v270
    %v282 = vunpack.c.h.bf16 %v270
    %v283 = vunpack.c.l.bf16 %v271
    %v284 = vunpack.c.h.bf16 %v271
    %v285 = vunpack.c.l.bf16 %v272
    %v286 = vunpack.c.h.bf16 %v272
    %v287 = vunpack.c.l.bf16 %v273
    %v288 = vunpack.c.h.bf16 %v273
    %v289 = vunpack.c.l.bf16 %v274
    %v290 = vunpack.c.h.bf16 %v274
    %v291 = vmul.f32 %v275, 0.5
    %v292 = vmul.f32 %v276, 0.5
    %v293 = vmul.f32 %v277, 0.5
    %v294 = vmul.f32 %v278, 0.5
    %v295 = vmul.f32 %v279, 0.5
    %v296 = vmul.f32 %v280, 0.5
    %v297 = vmul.f32 %v281, 0.5
    %v298 = vmul.f32 %v282, 0.5
    %v299 = vmul.f32 %v283, 0.5
    %v300 = vmul.f32 %v284, 0.5
    %v301 = vmul.f32 %v285, 0.5
    %v302 = vmul.f32 %v286, 0.5
    %v303 = vmul.f32 %v287, 0.5
    %v304 = vmul.f32 %v288, 0.5
    %v305 = vmul.f32 %v289, 0.5
    %v306 = vmul.f32 %v290, 0.5
    %v307 = vpack.c.bf16 %v292, %v291
    %v308 = vpack.c.bf16 %v294, %v293
    %v309 = vpack.c.bf16 %v296, %v295
    %v310 = vpack.c.bf16 %v298, %v297
    %v311 = vpack.c.bf16 %v300, %v299
    %v312 = vpack.c.bf16 %v302, %v301
    %v313 = vpack.c.bf16 %v304, %v303
    %v314 = vpack.c.bf16 %v306, %v305
    %v315 = vmul.f32 %v275, 0.044677734
    %v316 = vmul.f32 %v276, 0.044677734
    %v317 = vmul.f32 %v277, 0.044677734
    %v318 = vmul.f32 %v278, 0.044677734
    %v319 = vmul.f32 %v279, 0.044677734
    %v320 = vmul.f32 %v280, 0.044677734
    %v321 = vmul.f32 %v281, 0.044677734
    %v322 = vmul.f32 %v282, 0.044677734
    %v323 = vmul.f32 %v283, 0.044677734
    %v324 = vmul.f32 %v284, 0.044677734
    %v325 = vmul.f32 %v285, 0.044677734
    %v326 = vmul.f32 %v286, 0.044677734
    %v327 = vmul.f32 %v287, 0.044677734
    %v328 = vmul.f32 %v288, 0.044677734
    %v329 = vmul.f32 %v289, 0.044677734
    %v330 = vmul.f32 %v290, 0.044677734
    %v331 = vpack.c.bf16 %v316, %v315
    %v332 = vpack.c.bf16 %v318, %v317
    %v333 = vpack.c.bf16 %v320, %v319
    %v334 = vpack.c.bf16 %v322, %v321
    %v335 = vpack.c.bf16 %v324, %v323
    %v336 = vpack.c.bf16 %v326, %v325
    %v337 = vpack.c.bf16 %v328, %v327
    %v338 = vpack.c.bf16 %v330, %v329
    %v339 = vunpack.c.l.bf16 %v331
    %v340 = vunpack.c.h.bf16 %v331
    %v341 = vunpack.c.l.bf16 %v332
    %v342 = vunpack.c.h.bf16 %v332
    %v343 = vunpack.c.l.bf16 %v333
    %v344 = vunpack.c.h.bf16 %v333
    %v345 = vunpack.c.l.bf16 %v334
    %v346 = vunpack.c.h.bf16 %v334
    %v347 = vunpack.c.l.bf16 %v335
    %v348 = vunpack.c.h.bf16 %v335
    %v349 = vunpack.c.l.bf16 %v336
    %v350 = vunpack.c.h.bf16 %v336
    %v351 = vunpack.c.l.bf16 %v337
    %v352 = vunpack.c.h.bf16 %v337
    %v353 = vunpack.c.l.bf16 %v338
    %v354 = vunpack.c.h.bf16 %v338
    %v355 = vmul.f32 %v339, %v275
    %v356 = vmul.f32 %v340, %v276
    %v357 = vmul.f32 %v341, %v277
    %v358 = vmul.f32 %v342, %v278
    %v359 = vmul.f32 %v343, %v279
    %v360 = vmul.f32 %v344, %v280
    %v361 = vmul.f32 %v345, %v281
    %v362 = vmul.f32 %v346, %v282
    %v363 = vmul.f32 %v347, %v283
    %v364 = vmul.f32 %v348, %v284
    %v365 = vmul.f32 %v349, %v285
    %v366 = vmul.f32 %v350, %v286
    %v367 = vmul.f32 %v351, %v287
    %v368 = vmul.f32 %v352, %v288
    %v369 = vmul.f32 %v353, %v289
    %v370 = vmul.f32 %v354, %v290
    %v371 = vpack.c.bf16 %v356, %v355
    %v372 = vpack.c.bf16 %v358, %v357
    %v373 = vpack.c.bf16 %v360, %v359
    %v374 = vpack.c.bf16 %v362, %v361
    %v375 = vpack.c.bf16 %v364, %v363
    %v376 = vpack.c.bf16 %v366, %v365
    %v377 = vpack.c.bf16 %v368, %v367
    %v378 = vpack.c.bf16 %v370, %v369
    %v379 = vunpack.c.l.bf16 %v371
    %v380 = vunpack.c.h.bf16 %v371
    %v381 = vunpack.c.l.bf16 %v372
    %v382 = vunpack.c.h.bf16 %v372
    %v383 = vunpack.c.l.bf16 %v373
    %v384 = vunpack.c.h.bf16 %v373
    %v385 = vunpack.c.l.bf16 %v374
    %v386 = vunpack.c.h.bf16 %v374
    %v387 = vunpack.c.l.bf16 %v375
    %v388 = vunpack.c.h.bf16 %v375
    %v389 = vunpack.c.l.bf16 %v376
    %v390 = vunpack.c.h.bf16 %v376
    %v391 = vunpack.c.l.bf16 %v377
    %v392 = vunpack.c.h.bf16 %v377
    %v393 = vunpack.c.l.bf16 %v378
    %v394 = vunpack.c.h.bf16 %v378
    %v395 = vmul.f32 %v379, %v275
    %v396 = vmul.f32 %v380, %v276
    %v397 = vmul.f32 %v381, %v277
    %v398 = vmul.f32 %v382, %v278
    %v399 = vmul.f32 %v383, %v279
    %v400 = vmul.f32 %v384, %v280
    %v401 = vmul.f32 %v385, %v281
    %v402 = vmul.f32 %v386, %v282
    %v403 = vmul.f32 %v387, %v283
    %v404 = vmul.f32 %v388, %v284
    %v405 = vmul.f32 %v389, %v285
    %v406 = vmul.f32 %v390, %v286
    %v407 = vmul.f32 %v391, %v287
    %v408 = vmul.f32 %v392, %v288
    %v409 = vmul.f32 %v393, %v289
    %v410 = vmul.f32 %v394, %v290
    %v411 = vpack.c.bf16 %v396, %v395
    %v412 = vpack.c.bf16 %v398, %v397
    %v413 = vpack.c.bf16 %v400, %v399
    %v414 = vpack.c.bf16 %v402, %v401
    %v415 = vpack.c.bf16 %v404, %v403
    %v416 = vpack.c.bf16 %v406, %v405
    %v417 = vpack.c.bf16 %v408, %v407
    %v418 = vpack.c.bf16 %v410, %v409
    %v419 = vunpack.c.l.bf16 %v411
    %v420 = vunpack.c.h.bf16 %v411
    %v421 = vunpack.c.l.bf16 %v412
    %v422 = vunpack.c.h.bf16 %v412
    %v423 = vunpack.c.l.bf16 %v413
    %v424 = vunpack.c.h.bf16 %v413
    %v425 = vunpack.c.l.bf16 %v414
    %v426 = vunpack.c.h.bf16 %v414
    %v427 = vunpack.c.l.bf16 %v415
    %v428 = vunpack.c.h.bf16 %v415
    %v429 = vunpack.c.l.bf16 %v416
    %v430 = vunpack.c.h.bf16 %v416
    %v431 = vunpack.c.l.bf16 %v417
    %v432 = vunpack.c.h.bf16 %v417
    %v433 = vunpack.c.l.bf16 %v418
    %v434 = vunpack.c.h.bf16 %v418
    %v435 = vadd.f32 %v275, %v419
    %v436 = vadd.f32 %v276, %v420
    %v437 = vadd.f32 %v277, %v421
    %v438 = vadd.f32 %v278, %v422
    %v439 = vadd.f32 %v279, %v423
    %v440 = vadd.f32 %v280, %v424
    %v441 = vadd.f32 %v281, %v425
    %v442 = vadd.f32 %v282, %v426
    %v443 = vadd.f32 %v283, %v427
    %v444 = vadd.f32 %v284, %v428
    %v445 = vadd.f32 %v285, %v429
    %v446 = vadd.f32 %v286, %v430
    %v447 = vadd.f32 %v287, %v431
    %v448 = vadd.f32 %v288, %v432
    %v449 = vadd.f32 %v289, %v433
    %v450 = vadd.f32 %v290, %v434
    %v451 = vpack.c.bf16 %v436, %v435
    %v452 = vpack.c.bf16 %v438, %v437
    %v453 = vpack.c.bf16 %v440, %v439
    %v454 = vpack.c.bf16 %v442, %v441
    %v455 = vpack.c.bf16 %v444, %v443
    %v456 = vpack.c.bf16 %v446, %v445
    %v457 = vpack.c.bf16 %v448, %v447
    %v458 = vpack.c.bf16 %v450, %v449
    %v459 = vunpack.c.l.bf16 %v451
    %v460 = vunpack.c.h.bf16 %v451
    %v461 = vunpack.c.l.bf16 %v452
    %v462 = vunpack.c.h.bf16 %v452
    %v463 = vunpack.c.l.bf16 %v453
    %v464 = vunpack.c.h.bf16 %v453
    %v465 = vunpack.c.l.bf16 %v454
    %v466 = vunpack.c.h.bf16 %v454
    %v467 = vunpack.c.l.bf16 %v455
    %v468 = vunpack.c.h.bf16 %v455
    %v469 = vunpack.c.l.bf16 %v456
    %v470 = vunpack.c.h.bf16 %v456
    %v471 = vunpack.c.l.bf16 %v457
    %v472 = vunpack.c.h.bf16 %v457
    %v473 = vunpack.c.l.bf16 %v458
    %v474 = vunpack.c.h.bf16 %v458
    %v475 = vmul.f32 %v459, 0.796875
    %v476 = vmul.f32 %v460, 0.796875
    %v477 = vmul.f32 %v461, 0.796875
    %v478 = vmul.f32 %v462, 0.796875
    %v479 = vmul.f32 %v463, 0.796875
    %v480 = vmul.f32 %v464, 0.796875
    %v481 = vmul.f32 %v465, 0.796875
    %v482 = vmul.f32 %v466, 0.796875
    %v483 = vmul.f32 %v467, 0.796875
    %v484 = vmul.f32 %v468, 0.796875
    %v485 = vmul.f32 %v469, 0.796875
    %v486 = vmul.f32 %v470, 0.796875
    %v487 = vmul.f32 %v471, 0.796875
    %v488 = vmul.f32 %v472, 0.796875
    %v489 = vmul.f32 %v473, 0.796875
    %v490 = vmul.f32 %v474, 0.796875
    %v491 = vpack.c.bf16 %v476, %v475
    %v492 = vpack.c.bf16 %v478, %v477
    %v493 = vpack.c.bf16 %v480, %v479
    %v494 = vpack.c.bf16 %v482, %v481
    %v495 = vpack.c.bf16 %v484, %v483
    %v496 = vpack.c.bf16 %v486, %v485
    %v497 = vpack.c.bf16 %v488, %v487
    %v498 = vpack.c.bf16 %v490, %v489
    %v499 = vunpack.c.l.bf16 %v491
    %v500 = vunpack.c.h.bf16 %v491
    %v501 = vunpack.c.l.bf16 %v492
    %v502 = vunpack.c.h.bf16 %v492
    %v503 = vunpack.c.l.bf16 %v493
    %v504 = vunpack.c.h.bf16 %v493
    %v505 = vunpack.c.l.bf16 %v494
    %v506 = vunpack.c.h.bf16 %v494
    %v507 = vunpack.c.l.bf16 %v495
    %v508 = vunpack.c.h.bf16 %v495
    %v509 = vunpack.c.l.bf16 %v496
    %v510 = vunpack.c.h.bf16 %v496
    %v511 = vunpack.c.l.bf16 %v497
    %v512 = vunpack.c.h.bf16 %v497
    %v513 = vunpack.c.l.bf16 %v498
    %v514 = vunpack.c.h.bf16 %v498
    %v515 = vtanh.pop %v499
    %v516 = vtanh.pop %v500
    %v517 = vtanh.pop %v501
    %v518 = vtanh.pop %v502
    %v519 = vtanh.pop %v503
    %v520 = vtanh.pop %v504
    %v521 = vtanh.pop %v505
    %v522 = vtanh.pop %v506
    %v523 = vtanh.pop %v507
    %v524 = vtanh.pop %v508
    %v525 = vtanh.pop %v509
    %v526 = vtanh.pop %v510
    %v527 = vtanh.pop %v511
    %v528 = vtanh.pop %v512
    %v529 = vtanh.pop %v513
    %v530 = vtanh.pop %v514
    %v531 = vpack.c.bf16 %v516, %v515
    %v532 = vpack.c.bf16 %v518, %v517
    %v533 = vpack.c.bf16 %v520, %v519
    %v534 = vpack.c.bf16 %v522, %v521
    %v535 = vpack.c.bf16 %v524, %v523
    %v536 = vpack.c.bf16 %v526, %v525
    %v537 = vpack.c.bf16 %v528, %v527
    %v538 = vpack.c.bf16 %v530, %v529
    %v539 = vunpack.c.l.bf16 %v531
    %v540 = vunpack.c.h.bf16 %v531
    %v541 = vunpack.c.l.bf16 %v532
    %v542 = vunpack.c.h.bf16 %v532
    %v543 = vunpack.c.l.bf16 %v533
    %v544 = vunpack.c.h.bf16 %v533
    %v545 = vunpack.c.l.bf16 %v534
    %v546 = vunpack.c.h.bf16 %v534
    %v547 = vunpack.c.l.bf16 %v535
    %v548 = vunpack.c.h.bf16 %v535
    %v549 = vunpack.c.l.bf16 %v536
    %v550 = vunpack.c.h.bf16 %v536
    %v551 = vunpack.c.l.bf16 %v537
    %v552 = vunpack.c.h.bf16 %v537
    %v553 = vunpack.c.l.bf16 %v538
    %v554 = vunpack.c.h.bf16 %v538
    %v555 = vadd.f32 %v539, 1.0
    %v556 = vadd.f32 %v540, 1.0
    %v557 = vadd.f32 %v541, 1.0
    %v558 = vadd.f32 %v542, 1.0
    %v559 = vadd.f32 %v543, 1.0
    %v560 = vadd.f32 %v544, 1.0
    %v561 = vadd.f32 %v545, 1.0
    %v562 = vadd.f32 %v546, 1.0
    %v563 = vadd.f32 %v547, 1.0
    %v564 = vadd.f32 %v548, 1.0
    %v565 = vadd.f32 %v549, 1.0
    %v566 = vadd.f32 %v550, 1.0
    %v567 = vadd.f32 %v551, 1.0
    %v568 = vadd.f32 %v552, 1.0
    %v569 = vadd.f32 %v553, 1.0
    %v570 = vadd.f32 %v554, 1.0
    %v571 = vpack.c.bf16 %v556, %v555
    %v572 = vpack.c.bf16 %v558, %v557
    %v573 = vpack.c.bf16 %v560, %v559
    %v574 = vpack.c.bf16 %v562, %v561
    %v575 = vpack.c.bf16 %v564, %v563
    %v576 = vpack.c.bf16 %v566, %v565
    %v577 = vpack.c.bf16 %v568, %v567
    %v578 = vpack.c.bf16 %v570, %v569
    %v579 = vunpack.c.l.bf16 %v307
    %v580 = vunpack.c.h.bf16 %v307
    %v581 = vunpack.c.l.bf16 %v308
    %v582 = vunpack.c.h.bf16 %v308
    %v583 = vunpack.c.l.bf16 %v309
    %v584 = vunpack.c.h.bf16 %v309
    %v585 = vunpack.c.l.bf16 %v310
    %v586 = vunpack.c.h.bf16 %v310
    %v587 = vunpack.c.l.bf16 %v311
    %v588 = vunpack.c.h.bf16 %v311
    %v589 = vunpack.c.l.bf16 %v312
    %v590 = vunpack.c.h.bf16 %v312
    %v591 = vunpack.c.l.bf16 %v313
    %v592 = vunpack.c.h.bf16 %v313
    %v593 = vunpack.c.l.bf16 %v314
    %v594 = vunpack.c.h.bf16 %v314
    %v595 = vunpack.c.l.bf16 %v571
    %v596 = vunpack.c.h.bf16 %v571
    %v597 = vunpack.c.l.bf16 %v572
    %v598 = vunpack.c.h.bf16 %v572
    %v599 = vunpack.c.l.bf16 %v573
    %v600 = vunpack.c.h.bf16 %v573
    %v601 = vunpack.c.l.bf16 %v574
    %v602 = vunpack.c.h.bf16 %v574
    %v603 = vunpack.c.l.bf16 %v575
    %v604 = vunpack.c.h.bf16 %v575
    %v605 = vunpack.c.l.bf16 %v576
    %v606 = vunpack.c.h.bf16 %v576
    %v607 = vunpack.c.l.bf16 %v577
    %v608 = vunpack.c.h.bf16 %v577
    %v609 = vunpack.c.l.bf16 %v578
    %v610 = vunpack.c.h.bf16 %v578
    %v611 = vmul.f32 %v579, %v595
    %v612 = vmul.f32 %v580, %v596
    %v613 = vmul.f32 %v581, %v597
    %v614 = vmul.f32 %v582, %v598
    %v615 = vmul.f32 %v583, %v599
    %v616 = vmul.f32 %v584, %v600
    %v617 = vmul.f32 %v585, %v601
    %v618 = vmul.f32 %v586, %v602
    %v619 = vmul.f32 %v587, %v603
    %v620 = vmul.f32 %v588, %v604
    %v621 = vmul.f32 %v589, %v605
    %v622 = vmul.f32 %v590, %v606
    %v623 = vmul.f32 %v591, %v607
    %v624 = vmul.f32 %v592, %v608
    %v625 = vmul.f32 %v593, %v609
    %v626 = vmul.f32 %v594, %v610
    %v627 = vpack.c.bf16 %v613, %v611
    %v628 = vpack.c.bf16 %v614, %v612
    %v629 = vpack.c.bf16 %v617, %v615
    %v630 = vpack.c.bf16 %v618, %v616
    %v631 = vpack.c.bf16 %v621, %v619
    %v632 = vpack.c.bf16 %v622, %v620
    %v633 = vpack.c.bf16 %v625, %v623
    %v634 = vpack.c.bf16 %v626, %v624
    %v635 = vld [vmem:[%s4] sm:$0xf]
    %v636 = vld [vmem:[%s4 + $0x4] sm:$0xf]
    %637 = vset.pattern.permute.xlu0 2
    %638 = vperm.xlu0 %637, %v28
    %v639 = vpop.permute.xlu0 %638
    %641 = vset.pattern.permute.xlu0 2
    %642 = vperm.xlu0 %641, %v29
    %v643 = vpop.permute.xlu0 %642
    %v647 = vunpack.c.l.b16 %v635
    %v648 = vunpack.c.l.b16 %v636
    %v649 = vpack.c.b16 %v648, %v647
    %vm650 = vcmask 523264
    %v652 = vsel %vm650, %v649, 0
    %654 = vmatpush.bf16.msra.mxu0 0
    %655 = vmatpush.bf16.msra.mxu0 0
    %656 = vmatpush.bf16.msra.mxu0 0
    %657 = vmatpush.bf16.msra.mxu0 0
    %658 = vmatpush.bf16.msra.mxu0 %v633
    %659 = vmatpush.bf16.msra.mxu0 %v631
    %660 = vmatpush.bf16.msra.mxu0 %v629
    %661 = vmatpush.bf16.msra.mxu0 %v627
    %662 = vmatmul.bf16.gmra.mxu0 %v652
    %v663 = vpop.f32.mrf.mxu0
    %v664 = vadd.f32 %v639, %v663
    %v665 = vpop.f32.mrf.mxu0
    %v666 = vadd.f32 %v643, %v665
    %667 = vdwg.mxu0
    %668 = vmatpush.bf16.msra.mxu0 0
    %669 = vmatpush.bf16.msra.mxu0 0
    %670 = vmatpush.bf16.msra.mxu0 0
    %671 = vmatpush.bf16.msra.mxu0 0
    %672 = vmatpush.bf16.msra.mxu0 %v634
    %673 = vmatpush.bf16.msra.mxu0 %v632
    %674 = vmatpush.bf16.msra.mxu0 %v630
    %675 = vmatpush.bf16.msra.mxu0 %v628
    %676 = vmatmul.bf16.gmra.mxu0 %v652
    %v677 = vpop.f32.mrf.mxu0
    %v678 = vadd.f32 %v639, %v677
    %v679 = vpop.f32.mrf.mxu0
    %v680 = vadd.f32 %v643, %v679
    %681 = vdwg.mxu0
    %v682 = vmul.f32 %v664, 0.5
    %v683 = vmul.f32 %v678, 0.5
    %v684 = vmul.f32 %v666, 0.5
    %v685 = vmul.f32 %v680, 0.5
    %v686 = vmul.f32 %v664, 0.044715
    %v687 = vmul.f32 %v678, 0.044715
    %v688 = vmul.f32 %v666, 0.044715
    %v689 = vmul.f32 %v680, 0.044715
    %v690 = vmul.f32 %v686, %v664
    %v691 = vmul.f32 %v687, %v678
    %v692 = vmul.f32 %v688, %v666
    %v693 = vmul.f32 %v689, %v680
    %v694 = vmul.f32 %v690, %v664
    %v695 = vmul.f32 %v691, %v678
    %v696 = vmul.f32 %v692, %v666
    %v697 = vmul.f32 %v693, %v680
    %v698 = vadd.f32 %v664, %v694
    %v699 = vadd.f32 %v678, %v695
    %v700 = vadd.f32 %v666, %v696
    %v701 = vadd.f32 %v680, %v697
    %v702 = vmul.f32 %v698, 0.7978846
    %v703 = vmul.f32 %v699, 0.7978846
    %v704 = vmul.f32 %v700, 0.7978846
    %v705 = vmul.f32 %v701, 0.7978846
    %v706 = vtanh.pop %v702
    %v707 = vtanh.pop %v703
    %v708 = vtanh.pop %v704
    %v709 = vtanh.pop %v705
    %v710 = vadd.f32 %v706, 1.0
    %v711 = vadd.f32 %v707, 1.0
    %v712 = vadd.f32 %v708, 1.0
    %v713 = vadd.f32 %v709, 1.0
    %v714 = vmul.f32 %v682, %v710
    %v715 = vmul.f32 %v683, %v711
    %v716 = vmul.f32 %v684, %v712
    %v717 = vmul.f32 %v685, %v713
    %718 = vset.pattern.permute.xlu0 6
    %719 = vperm.xlu0 %718, %v28
    %v720 = vpop.permute.xlu0 %719
    %722 = vset.pattern.permute.xlu0 6
    %723 = vperm.xlu0 %722, %v29
    %v724 = vpop.permute.xlu0 %723
    %v726 = vmul.f32 %v720, %v714
    %v727 = vmul.f32 %v720, %v715
    %v728 = vmul.f32 %v724, %v716
    %v729 = vmul.f32 %v724, %v717
    %v730 = vadd.f32 %v726, %v38
    %v731 = vadd.f32 %v727, %v39
    %v732 = vadd.f32 %v728, %v40
    %v733 = vadd.f32 %v729, %v41
    %v734 = vadd.f32 %v730, %v731
    %v735 = vadd.f32 %v734, %v732
    %v736 = vadd.f32 %v735, %v733
    %737 = vadd.xlane.f32.xlu0 %v736
    %v738 = vpop.xlane.xlu0 %737
    %v739 = vrot.slane %v738, 4
    %v740 = vadd.f32 %v738, %v739
    %v741 = vrot.slane %v740, 2
    %v742 = vadd.f32 %v740, %v741
    %v743 = vrot.slane %v742, 1
    %v744 = vadd.f32 %v742, %v743
    %s745 = vtos %v744
    %v746 = vstv %s745
    %v747 = vmul.f32 %v746, %v61
    %v748 = vsub.f32 %v730, %v747
    %v749 = vsub.f32 %v731, %v747
    %v750 = vsub.f32 %v732, %v747
    %v751 = vsub.f32 %v733, %v747
    %v752 = vmul.f32 %v748, %v748
    %v753 = vmul.f32 %v749, %v749
    %v754 = vmul.f32 %v750, %v750
    %v755 = vmul.f32 %v751, %v751
    %v756 = vadd.f32 %v752, %v753
    %v757 = vadd.f32 %v756, %v754
    %v758 = vadd.f32 %v757, %v755
    %759 = vadd.xlane.f32.xlu0 %v758
    %v760 = vpop.xlane.xlu0 %759
    %v761 = vrot.slane %v760, 4
    %v762 = vadd.f32 %v760, %v761
    %v763 = vrot.slane %v762, 2
    %v764 = vadd.f32 %v762, %v763
    %v765 = vrot.slane %v764, 1
    %v766 = vadd.f32 %v764, %v765
    %s767 = vtos %v766
    %v768 = vstv %s767
    %v769 = vmul.f32 %v768, %v61
    %v770 = vadd.f32 %v769, 1e-05
    %v771 = vrsqrt.pop %v770
    %v772 = vmul.f32 %v771, %v770
    %v773 = vmul.f32 %v772, %v771
    %v774 = vmul.f32 0.5, %v773
    %v775 = vsub.f32 1.5, %v774
    %v776 = vmul.f32 %v771, %v775
    %vm777 = vweird.f32 %v770
    %vm778 = vweird.f32 %v771
    %vm779 = vmor %vm777, %vm778
    %v780 = vsel %vm779, %v771, %v776
    %v781 = vmul.f32 %v28, %v780
    %v782 = vmul.f32 %v29, %v780
    %784 = vset.pattern.permute.xlu0 3
    %785 = vperm.xlu0 %784, %v781
    %v786 = vpop.permute.xlu0 %785
    %789 = vset.pattern.permute.xlu0 3
    %790 = vperm.xlu0 %789, %v782
    %v791 = vpop.permute.xlu0 %790
    %v793 = vmul.f32 %v748, %v786
    %v794 = vmul.f32 %v749, %v786
    %v795 = vmul.f32 %v750, %v791
    %v796 = vmul.f32 %v751, %v791
    %797 = vset.pattern.permute.xlu0 4
    %798 = vperm.xlu0 %797, %v28
    %v799 = vpop.permute.xlu0 %798
    %801 = vset.pattern.permute.xlu0 4
    %802 = vperm.xlu0 %801, %v29
    %v803 = vpop.permute.xlu0 %802
    %v805 = vadd.f32 %v793, %v799
    %v806 = vadd.f32 %v794, %v799
    %v807 = vadd.f32 %v795, %v803
    %v808 = vadd.f32 %v796, %v803
    %v809 = vld [vmem:[%s5] sm:$0xf]
    %v810 = vld [vmem:[%s5 + $0x4] sm:$0xf]
    %v811 = vld [vmem:[%s5 + $0x8] sm:$0xf]
    %v812 = vld [vmem:[%s5 + $0xc] sm:$0xf]
    %v813 = vld [vmem:[%s5 + $0x10] sm:$0xf]
    %v814 = vld [vmem:[%s5 + $0x14] sm:$0xf]
    %v815 = vld [vmem:[%s5 + $0x18] sm:$0xf]
    %v816 = vld [vmem:[%s5 + $0x1c] sm:$0xf]
    %v817 = vpack.c.bf16 %v807, %v805
    %v818 = vpack.c.bf16 %v808, %v806
    %819 = vset.pattern.permute.xlu0 1
    %820 = vperm.xlu0 %819, %v30
    %v821 = vpop.permute.xlu0 %820
    %823 = vset.pattern.permute.xlu0 1
    %824 = vperm.xlu0 %823, %v31
    %v825 = vpop.permute.xlu0 %824
    %827 = vset.pattern.permute.xlu0 1
    %828 = vperm.xlu0 %827, %v32
    %v829 = vpop.permute.xlu0 %828
    %831 = vset.pattern.permute.xlu0 1
    %832 = vperm.xlu0 %831, %v33
    %v833 = vpop.permute.xlu0 %832
    %835 = vset.pattern.permute.xlu0 1
    %836 = vperm.xlu0 %835, %v34
    %v837 = vpop.permute.xlu0 %836
    %839 = vset.pattern.permute.xlu0 1
    %840 = vperm.xlu0 %839, %v35
    %v841 = vpop.permute.xlu0 %840
    %843 = vset.pattern.permute.xlu0 1
    %844 = vperm.xlu0 %843, %v36
    %v845 = vpop.permute.xlu0 %844
    %847 = vset.pattern.permute.xlu0 1
    %848 = vperm.xlu0 %847, %v37
    %v849 = vpop.permute.xlu0 %848
    %v859 = vunpack.c.l.b16 %v809
    %v860 = vunpack.c.l.b16 %v810
    %v861 = vunpack.c.l.b16 %v811
    %v862 = vunpack.c.l.b16 %v812
    %v863 = vunpack.c.l.b16 %v813
    %v864 = vunpack.c.l.b16 %v814
    %v865 = vunpack.c.l.b16 %v815
    %v866 = vunpack.c.l.b16 %v816
    %v867 = vpack.c.b16 %v860, %v859
    %v868 = vpack.c.b16 %v862, %v861
    %v869 = vpack.c.b16 %v864, %v863
    %v870 = vpack.c.b16 %v866, %v865
    %v872 = vsel %vm196, %v867, 0
    %v875 = vsel %vm196, %v868, 0
    %v878 = vsel %vm196, %v869, 0
    %v881 = vsel %vm196, %v870, 0
    %883 = vmatpush.bf16.msra.mxu0 0
    %884 = vmatpush.bf16.msra.mxu0 0
    %885 = vmatpush.bf16.msra.mxu0 0
    %886 = vmatpush.bf16.msra.mxu0 0
    %887 = vmatpush.bf16.msra.mxu0 0
    %888 = vmatpush.bf16.msra.mxu0 0
    %889 = vmatpush.bf16.msra.mxu0 0
    %890 = vmatpush.bf16.msra.mxu0 %v817
    %891 = vmatmul.bf16.gmra.mxu0 %v872
    %v892 = vpop.f32.mrf.mxu0
    %v893 = vadd.f32 %v821, %v892
    %v894 = vpop.f32.mrf.mxu0
    %v895 = vadd.f32 %v825, %v894
    %896 = vmatmul.bf16.gmra.mxu0 %v875
    %v897 = vpop.f32.mrf.mxu0
    %v898 = vadd.f32 %v829, %v897
    %v899 = vpop.f32.mrf.mxu0
    %v900 = vadd.f32 %v833, %v899
    %901 = vmatmul.bf16.gmra.mxu0 %v878
    %v902 = vpop.f32.mrf.mxu0
    %v903 = vadd.f32 %v837, %v902
    %v904 = vpop.f32.mrf.mxu0
    %v905 = vadd.f32 %v841, %v904
    %906 = vmatmul.bf16.gmra.mxu0 %v881
    %v907 = vpop.f32.mrf.mxu0
    %v908 = vadd.f32 %v845, %v907
    %v909 = vpop.f32.mrf.mxu0
    %v910 = vadd.f32 %v849, %v909
    %911 = vdwg.mxu0
    %912 = vmatpush.bf16.msra.mxu0 0
    %913 = vmatpush.bf16.msra.mxu0 0
    %914 = vmatpush.bf16.msra.mxu0 0
    %915 = vmatpush.bf16.msra.mxu0 0
    %916 = vmatpush.bf16.msra.mxu0 0
    %917 = vmatpush.bf16.msra.mxu0 0
    %918 = vmatpush.bf16.msra.mxu0 0
    %919 = vmatpush.bf16.msra.mxu0 %v818
    %920 = vmatmul.bf16.gmra.mxu0 %v872
    %v921 = vpop.f32.mrf.mxu0
    %v922 = vadd.f32 %v821, %v921
    %v923 = vpop.f32.mrf.mxu0
    %v924 = vadd.f32 %v825, %v923
    %925 = vmatmul.bf16.gmra.mxu0 %v875
    %v926 = vpop.f32.mrf.mxu0
    %v927 = vadd.f32 %v829, %v926
    %v928 = vpop.f32.mrf.mxu0
    %v929 = vadd.f32 %v833, %v928
    %930 = vmatmul.bf16.gmra.mxu0 %v878
    %v931 = vpop.f32.mrf.mxu0
    %v932 = vadd.f32 %v837, %v931
    %v933 = vpop.f32.mrf.mxu0
    %v934 = vadd.f32 %v841, %v933
    %935 = vmatmul.bf16.gmra.mxu0 %v881
    %v936 = vpop.f32.mrf.mxu0
    %v937 = vadd.f32 %v845, %v936
    %v938 = vpop.f32.mrf.mxu0
    %v939 = vadd.f32 %v849, %v938
    %940 = vdwg.mxu0
    %v941 = vmul.f32 %v893, 0.5
    %v942 = vmul.f32 %v922, 0.5
    %v943 = vmul.f32 %v895, 0.5
    %v944 = vmul.f32 %v924, 0.5
    %v945 = vmul.f32 %v898, 0.5
    %v946 = vmul.f32 %v927, 0.5
    %v947 = vmul.f32 %v900, 0.5
    %v948 = vmul.f32 %v929, 0.5
    %v949 = vmul.f32 %v903, 0.5
    %v950 = vmul.f32 %v932, 0.5
    %v951 = vmul.f32 %v905, 0.5
    %v952 = vmul.f32 %v934, 0.5
    %v953 = vmul.f32 %v908, 0.5
    %v954 = vmul.f32 %v937, 0.5
    %v955 = vmul.f32 %v910, 0.5
    %v956 = vmul.f32 %v939, 0.5
    %v957 = vmul.f32 %v893, 0.044715
    %v958 = vmul.f32 %v922, 0.044715
    %v959 = vmul.f32 %v895, 0.044715
    %v960 = vmul.f32 %v924, 0.044715
    %v961 = vmul.f32 %v898, 0.044715
    %v962 = vmul.f32 %v927, 0.044715
    %v963 = vmul.f32 %v900, 0.044715
    %v964 = vmul.f32 %v929, 0.044715
    %v965 = vmul.f32 %v903, 0.044715
    %v966 = vmul.f32 %v932, 0.044715
    %v967 = vmul.f32 %v905, 0.044715
    %v968 = vmul.f32 %v934, 0.044715
    %v969 = vmul.f32 %v908, 0.044715
    %v970 = vmul.f32 %v937, 0.044715
    %v971 = vmul.f32 %v910, 0.044715
    %v972 = vmul.f32 %v939, 0.044715
    %v973 = vmul.f32 %v957, %v893
    %v974 = vmul.f32 %v958, %v922
    %v975 = vmul.f32 %v959, %v895
    %v976 = vmul.f32 %v960, %v924
    %v977 = vmul.f32 %v961, %v898
    %v978 = vmul.f32 %v962, %v927
    %v979 = vmul.f32 %v963, %v900
    %v980 = vmul.f32 %v964, %v929
    %v981 = vmul.f32 %v965, %v903
    %v982 = vmul.f32 %v966, %v932
    %v983 = vmul.f32 %v967, %v905
    %v984 = vmul.f32 %v968, %v934
    %v985 = vmul.f32 %v969, %v908
    %v986 = vmul.f32 %v970, %v937
    %v987 = vmul.f32 %v971, %v910
    %v988 = vmul.f32 %v972, %v939
    %v989 = vmul.f32 %v973, %v893
    %v990 = vmul.f32 %v974, %v922
    %v991 = vmul.f32 %v975, %v895
    %v992 = vmul.f32 %v976, %v924
    %v993 = vmul.f32 %v977, %v898
    %v994 = vmul.f32 %v978, %v927
    %v995 = vmul.f32 %v979, %v900
    %v996 = vmul.f32 %v980, %v929
    %v997 = vmul.f32 %v981, %v903
    %v998 = vmul.f32 %v982, %v932
    %v999 = vmul.f32 %v983, %v905
    %v1000 = vmul.f32 %v984, %v934
    %v1001 = vmul.f32 %v985, %v908
    %v1002 = vmul.f32 %v986, %v937
    %v1003 = vmul.f32 %v987, %v910
    %v1004 = vmul.f32 %v988, %v939
    %v1005 = vadd.f32 %v893, %v989
    %v1006 = vadd.f32 %v922, %v990
    %v1007 = vadd.f32 %v895, %v991
    %v1008 = vadd.f32 %v924, %v992
    %v1009 = vadd.f32 %v898, %v993
    %v1010 = vadd.f32 %v927, %v994
    %v1011 = vadd.f32 %v900, %v995
    %v1012 = vadd.f32 %v929, %v996
    %v1013 = vadd.f32 %v903, %v997
    %v1014 = vadd.f32 %v932, %v998
    %v1015 = vadd.f32 %v905, %v999
    %v1016 = vadd.f32 %v934, %v1000
    %v1017 = vadd.f32 %v908, %v1001
    %v1018 = vadd.f32 %v937, %v1002
    %v1019 = vadd.f32 %v910, %v1003
    %v1020 = vadd.f32 %v939, %v1004
    %v1021 = vmul.f32 %v1005, 0.7978846
    %v1022 = vmul.f32 %v1006, 0.7978846
    %v1023 = vmul.f32 %v1007, 0.7978846
    %v1024 = vmul.f32 %v1008, 0.7978846
    %v1025 = vmul.f32 %v1009, 0.7978846
    %v1026 = vmul.f32 %v1010, 0.7978846
    %v1027 = vmul.f32 %v1011, 0.7978846
    %v1028 = vmul.f32 %v1012, 0.7978846
    %v1029 = vmul.f32 %v1013, 0.7978846
    %v1030 = vmul.f32 %v1014, 0.7978846
    %v1031 = vmul.f32 %v1015, 0.7978846
    %v1032 = vmul.f32 %v1016, 0.7978846
    %v1033 = vmul.f32 %v1017, 0.7978846
    %v1034 = vmul.f32 %v1018, 0.7978846
    %v1035 = vmul.f32 %v1019, 0.7978846
    %v1036 = vmul.f32 %v1020, 0.7978846
    %v1037 = vtanh.pop %v1021
    %v1038 = vtanh.pop %v1022
    %v1039 = vtanh.pop %v1023
    %v1040 = vtanh.pop %v1024
    %v1041 = vtanh.pop %v1025
    %v1042 = vtanh.pop %v1026
    %v1043 = vtanh.pop %v1027
    %v1044 = vtanh.pop %v1028
    %v1045 = vtanh.pop %v1029
    %v1046 = vtanh.pop %v1030
    %v1047 = vtanh.pop %v1031
    %v1048 = vtanh.pop %v1032
    %v1049 = vtanh.pop %v1033
    %v1050 = vtanh.pop %v1034
    %v1051 = vtanh.pop %v1035
    %v1052 = vtanh.pop %v1036
    %v1053 = vadd.f32 %v1037, 1.0
    %v1054 = vadd.f32 %v1038, 1.0
    %v1055 = vadd.f32 %v1039, 1.0
    %v1056 = vadd.f32 %v1040, 1.0
    %v1057 = vadd.f32 %v1041, 1.0
    %v1058 = vadd.f32 %v1042, 1.0
    %v1059 = vadd.f32 %v1043, 1.0
    %v1060 = vadd.f32 %v1044, 1.0
    %v1061 = vadd.f32 %v1045, 1.0
    %v1062 = vadd.f32 %v1046, 1.0
    %v1063 = vadd.f32 %v1047, 1.0
    %v1064 = vadd.f32 %v1048, 1.0
    %v1065 = vadd.f32 %v1049, 1.0
    %v1066 = vadd.f32 %v1050, 1.0
    %v1067 = vadd.f32 %v1051, 1.0
    %v1068 = vadd.f32 %v1052, 1.0
    %v1069 = vmul.f32 %v941, %v1053
    %v1070 = vmul.f32 %v942, %v1054
    %v1071 = vmul.f32 %v943, %v1055
    %v1072 = vmul.f32 %v944, %v1056
    %v1073 = vmul.f32 %v945, %v1057
    %v1074 = vmul.f32 %v946, %v1058
    %v1075 = vmul.f32 %v947, %v1059
    %v1076 = vmul.f32 %v948, %v1060
    %v1077 = vmul.f32 %v949, %v1061
    %v1078 = vmul.f32 %v950, %v1062
    %v1079 = vmul.f32 %v951, %v1063
    %v1080 = vmul.f32 %v952, %v1064
    %v1081 = vmul.f32 %v953, %v1065
    %v1082 = vmul.f32 %v954, %v1066
    %v1083 = vmul.f32 %v955, %v1067
    %v1084 = vmul.f32 %v956, %v1068
    %v1085 = vadd.f32 %v1069, %v1070
    %v1086 = vadd.f32 %v1085, %v1071
    %v1087 = vadd.f32 %v1086, %v1072
    %v1088 = vadd.f32 %v1087, %v1073
    %v1089 = vadd.f32 %v1088, %v1074
    %v1090 = vadd.f32 %v1089, %v1075
    %v1091 = vadd.f32 %v1090, %v1076
    %v1092 = vadd.f32 %v1091, %v1077
    %v1093 = vadd.f32 %v1092, %v1078
    %v1094 = vadd.f32 %v1093, %v1079
    %v1095 = vadd.f32 %v1094, %v1080
    %v1096 = vadd.f32 %v1095, %v1081
    %v1097 = vadd.f32 %v1096, %v1082
    %v1098 = vadd.f32 %v1097, %v1083
    %v1099 = vadd.f32 %v1098, %v1084
    %1100 = vadd.xlane.f32.xlu0 %v1099
    %v1101 = vpop.xlane.xlu0 %1100
    %v1102 = vrot.slane %v1101, 4
    %v1103 = vadd.f32 %v1101, %v1102
    %v1104 = vrot.slane %v1103, 2
    %v1105 = vadd.f32 %v1103, %v1104
    %v1106 = vrot.slane %v1105, 1
    %v1107 = vadd.f32 %v1105, %v1106
    %s1108 = vtos %v1107
    %v1109 = vstv %s1108
    %v1110 = vrcp.pop 16384.0
    %v1111 = vmul.f32 16384.0, %v1110
    %v1112 = vsub.f32 1.0, %v1111
    %v1113 = vmul.f32 %v1110, %v1112
    %v1114 = vadd.f32 %v1110, %v1113
    %vm1115 = vweird.f32 %v1110
    %v1116 = vsel %vm1115, %v1110, %v1114
    %v1117 = vmul.f32 %v1109, %v1116
    %v1118 = vsub.f32 %v1069, %v1117
    %v1119 = vsub.f32 %v1070, %v1117
    %v1120 = vsub.f32 %v1071, %v1117
    %v1121 = vsub.f32 %v1072, %v1117
    %v1122 = vsub.f32 %v1073, %v1117
    %v1123 = vsub.f32 %v1074, %v1117
    %v1124 = vsub.f32 %v1075, %v1117
    %v1125 = vsub.f32 %v1076, %v1117
    %v1126 = vsub.f32 %v1077, %v1117
    %v1127 = vsub.f32 %v1078, %v1117
    %v1128 = vsub.f32 %v1079, %v1117
    %v1129 = vsub.f32 %v1080, %v1117
    %v1130 = vsub.f32 %v1081, %v1117
    %v1131 = vsub.f32 %v1082, %v1117
    %v1132 = vsub.f32 %v1083, %v1117
    %v1133 = vsub.f32 %v1084, %v1117
    %v1134 = vmul.f32 %v1118, %v1118
    %v1135 = vmul.f32 %v1119, %v1119
    %v1136 = vmul.f32 %v1120, %v1120
    %v1137 = vmul.f32 %v1121, %v1121
    %v1138 = vmul.f32 %v1122, %v1122
    %v1139 = vmul.f32 %v1123, %v1123
    %v1140 = vmul.f32 %v1124, %v1124
    %v1141 = vmul.f32 %v1125, %v1125
    %v1142 = vmul.f32 %v1126, %v1126
    %v1143 = vmul.f32 %v1127, %v1127
    %v1144 = vmul.f32 %v1128, %v1128
    %v1145 = vmul.f32 %v1129, %v1129
    %v1146 = vmul.f32 %v1130, %v1130
    %v1147 = vmul.f32 %v1131, %v1131
    %v1148 = vmul.f32 %v1132, %v1132
    %v1149 = vmul.f32 %v1133, %v1133
    %v1150 = vadd.f32 %v1134, %v1135
    %v1151 = vadd.f32 %v1150, %v1136
    %v1152 = vadd.f32 %v1151, %v1137
    %v1153 = vadd.f32 %v1152, %v1138
    %v1154 = vadd.f32 %v1153, %v1139
    %v1155 = vadd.f32 %v1154, %v1140
    %v1156 = vadd.f32 %v1155, %v1141
    %v1157 = vadd.f32 %v1156, %v1142
    %v1158 = vadd.f32 %v1157, %v1143
    %v1159 = vadd.f32 %v1158, %v1144
    %v1160 = vadd.f32 %v1159, %v1145
    %v1161 = vadd.f32 %v1160, %v1146
    %v1162 = vadd.f32 %v1161, %v1147
    %v1163 = vadd.f32 %v1162, %v1148
    %v1164 = vadd.f32 %v1163, %v1149
    %1165 = vadd.xlane.f32.xlu0 %v1164
    %v1166 = vpop.xlane.xlu0 %1165
    %v1167 = vrot.slane %v1166, 4
    %v1168 = vadd.f32 %v1166, %v1167
    %v1169 = vrot.slane %v1168, 2
    %v1170 = vadd.f32 %v1168, %v1169
    %v1171 = vrot.slane %v1170, 1
    %v1172 = vadd.f32 %v1170, %v1171
    %s1173 = vtos %v1172
    %v1174 = vstv %s1173
    %v1175 = vmul.f32 %v1174, %v1116
    %v1176 = vadd.f32 %v1175, 1e-05
    %v1177 = vrsqrt.pop %v1176
    %v1178 = vmul.f32 %v1177, %v1176
    %v1179 = vmul.f32 %v1178, %v1177
    %v1180 = vmul.f32 0.5, %v1179
    %v1181 = vsub.f32 1.5, %v1180
    %v1182 = vmul.f32 %v1177, %v1181
    %vm1183 = vweird.f32 %v1176
    %vm1184 = vweird.f32 %v1177
    %vm1185 = vmor %vm1183, %vm1184
    %v1186 = vsel %vm1185, %v1177, %v1182
    %v1187 = vmul.f32 %v30, %v1186
    %v1188 = vmul.f32 %v31, %v1186
    %v1189 = vmul.f32 %v32, %v1186
    %v1190 = vmul.f32 %v33, %v1186
    %v1191 = vmul.f32 %v34, %v1186
    %v1192 = vmul.f32 %v35, %v1186
    %v1193 = vmul.f32 %v36, %v1186
    %v1194 = vmul.f32 %v37, %v1186
    %1196 = vset.pattern.permute.xlu0 2
    %1197 = vperm.xlu0 %1196, %v1187
    %v1198 = vpop.permute.xlu0 %1197
    %1201 = vset.pattern.permute.xlu0 2
    %1202 = vperm.xlu0 %1201, %v1188
    %v1203 = vpop.permute.xlu0 %1202
    %1206 = vset.pattern.permute.xlu0 2
    %1207 = vperm.xlu0 %1206, %v1189
    %v1208 = vpop.permute.xlu0 %1207
    %1211 = vset.pattern.permute.xlu0 2
    %1212 = vperm.xlu0 %1211, %v1190
    %v1213 = vpop.permute.xlu0 %1212
    %1216 = vset.pattern.permute.xlu0 2
    %1217 = vperm.xlu0 %1216, %v1191
    %v1218 = vpop.permute.xlu0 %1217
    %1221 = vset.pattern.permute.xlu0 2
    %1222 = vperm.xlu0 %1221, %v1192
    %v1223 = vpop.permute.xlu0 %1222
    %1226 = vset.pattern.permute.xlu0 2
    %1227 = vperm.xlu0 %1226, %v1193
    %v1228 = vpop.permute.xlu0 %1227
    %1231 = vset.pattern.permute.xlu0 2
    %1232 = vperm.xlu0 %1231, %v1194
    %v1233 = vpop.permute.xlu0 %1232
    %v1235 = vmul.f32 %v1118, %v1198
    %v1236 = vmul.f32 %v1119, %v1198
    %v1237 = vmul.f32 %v1120, %v1203
    %v1238 = vmul.f32 %v1121, %v1203
    %v1239 = vmul.f32 %v1122, %v1208
    %v1240 = vmul.f32 %v1123, %v1208
    %v1241 = vmul.f32 %v1124, %v1213
    %v1242 = vmul.f32 %v1125, %v1213
    %v1243 = vmul.f32 %v1126, %v1218
    %v1244 = vmul.f32 %v1127, %v1218
    %v1245 = vmul.f32 %v1128, %v1223
    %v1246 = vmul.f32 %v1129, %v1223
    %v1247 = vmul.f32 %v1130, %v1228
    %v1248 = vmul.f32 %v1131, %v1228
    %v1249 = vmul.f32 %v1132, %v1233
    %v1250 = vmul.f32 %v1133, %v1233
    %1251 = vset.pattern.permute.xlu0 3
    %1252 = vperm.xlu0 %1251, %v30
    %v1253 = vpop.permute.xlu0 %1252
    %1255 = vset.pattern.permute.xlu0 3
    %1256 = vperm.xlu0 %1255, %v31
    %v1257 = vpop.permute.xlu0 %1256
    %1259 = vset.pattern.permute.xlu0 3
    %1260 = vperm.xlu0 %1259, %v32
    %v1261 = vpop.permute.xlu0 %1260
    %1263 = vset.pattern.permute.xlu0 3
    %1264 = vperm.xlu0 %1263, %v33
    %v1265 = vpop.permute.xlu0 %1264
    %1267 = vset.pattern.permute.xlu0 3
    %1268 = vperm.xlu0 %1267, %v34
    %v1269 = vpop.permute.xlu0 %1268
    %1271 = vset.pattern.permute.xlu0 3
    %1272 = vperm.xlu0 %1271, %v35
    %v1273 = vpop.permute.xlu0 %1272
    %1275 = vset.pattern.permute.xlu0 3
    %1276 = vperm.xlu0 %1275, %v36
    %v1277 = vpop.permute.xlu0 %1276
    %1279 = vset.pattern.permute.xlu0 3
    %1280 = vperm.xlu0 %1279, %v37
    %v1281 = vpop.permute.xlu0 %1280
    %v1283 = vadd.f32 %v1235, %v1253
    %v1284 = vadd.f32 %v1236, %v1253
    %v1285 = vadd.f32 %v1237, %v1257
    %v1286 = vadd.f32 %v1238, %v1257
    %v1287 = vadd.f32 %v1239, %v1261
    %v1288 = vadd.f32 %v1240, %v1261
    %v1289 = vadd.f32 %v1241, %v1265
    %v1290 = vadd.f32 %v1242, %v1265
    %v1291 = vadd.f32 %v1243, %v1269
    %v1292 = vadd.f32 %v1244, %v1269
    %v1293 = vadd.f32 %v1245, %v1273
    %v1294 = vadd.f32 %v1246, %v1273
    %v1295 = vadd.f32 %v1247, %v1277
    %v1296 = vadd.f32 %v1248, %v1277
    %v1297 = vadd.f32 %v1249, %v1281
    %v1298 = vadd.f32 %v1250, %v1281
    %v1299 = vpack.c.bf16 %v1284, %v1283
    %v1300 = vpack.c.bf16 %v1286, %v1285
    %v1301 = vpack.c.bf16 %v1288, %v1287
    %v1302 = vpack.c.bf16 %v1290, %v1289
    %v1303 = vpack.c.bf16 %v1292, %v1291
    %v1304 = vpack.c.bf16 %v1294, %v1293
    %v1305 = vpack.c.bf16 %v1296, %v1295
    %v1306 = vpack.c.bf16 %v1298, %v1297
    %v1307 = vunpack.c.l.bf16 %v1299
    %v1308 = vunpack.c.h.bf16 %v1299
    %v1309 = vunpack.c.l.bf16 %v1300
    %v1310 = vunpack.c.h.bf16 %v1300
    %v1311 = vunpack.c.l.bf16 %v1301
    %v1312 = vunpack.c.h.bf16 %v1301
    %v1313 = vunpack.c.l.bf16 %v1302
    %v1314 = vunpack.c.h.bf16 %v1302
    %v1315 = vunpack.c.l.bf16 %v1303
    %v1316 = vunpack.c.h.bf16 %v1303
    %v1317 = vunpack.c.l.bf16 %v1304
    %v1318 = vunpack.c.h.bf16 %v1304
    %v1319 = vunpack.c.l.bf16 %v1305
    %v1320 = vunpack.c.h.bf16 %v1305
    %v1321 = vunpack.c.l.bf16 %v1306
    %v1322 = vunpack.c.h.bf16 %v1306
    %v1323 = vmul.f32 %v1307, 0.5
    %v1324 = vmul.f32 %v1308, 0.5
    %v1325 = vmul.f32 %v1309, 0.5
    %v1326 = vmul.f32 %v1310, 0.5
    %v1327 = vmul.f32 %v1311, 0.5
    %v1328 = vmul.f32 %v1312, 0.5
    %v1329 = vmul.f32 %v1313, 0.5
    %v1330 = vmul.f32 %v1314, 0.5
    %v1331 = vmul.f32 %v1315, 0.5
    %v1332 = vmul.f32 %v1316, 0.5
    %v1333 = vmul.f32 %v1317, 0.5
    %v1334 = vmul.f32 %v1318, 0.5
    %v1335 = vmul.f32 %v1319, 0.5
    %v1336 = vmul.f32 %v1320, 0.5
    %v1337 = vmul.f32 %v1321, 0.5
    %v1338 = vmul.f32 %v1322, 0.5
    %v1339 = vpack.c.bf16 %v1324, %v1323
    %v1340 = vpack.c.bf16 %v1326, %v1325
    %v1341 = vpack.c.bf16 %v1328, %v1327
    %v1342 = vpack.c.bf16 %v1330, %v1329
    %v1343 = vpack.c.bf16 %v1332, %v1331
    %v1344 = vpack.c.bf16 %v1334, %v1333
    %v1345 = vpack.c.bf16 %v1336, %v1335
    %v1346 = vpack.c.bf16 %v1338, %v1337
    %v1347 = vmul.f32 %v1307, 0.044677734
    %v1348 = vmul.f32 %v1308, 0.044677734
    %v1349 = vmul.f32 %v1309, 0.044677734
    %v1350 = vmul.f32 %v1310, 0.044677734
    %v1351 = vmul.f32 %v1311, 0.044677734
    %v1352 = vmul.f32 %v1312, 0.044677734
    %v1353 = vmul.f32 %v1313, 0.044677734
    %v1354 = vmul.f32 %v1314, 0.044677734
    %v1355 = vmul.f32 %v1315, 0.044677734
    %v1356 = vmul.f32 %v1316, 0.044677734
    %v1357 = vmul.f32 %v1317, 0.044677734
    %v1358 = vmul.f32 %v1318, 0.044677734
    %v1359 = vmul.f32 %v1319, 0.044677734
    %v1360 = vmul.f32 %v1320, 0.044677734
    %v1361 = vmul.f32 %v1321, 0.044677734
    %v1362 = vmul.f32 %v1322, 0.044677734
    %v1363 = vpack.c.bf16 %v1348, %v1347
    %v1364 = vpack.c.bf16 %v1350, %v1349
    %v1365 = vpack.c.bf16 %v1352, %v1351
    %v1366 = vpack.c.bf16 %v1354, %v1353
    %v1367 = vpack.c.bf16 %v1356, %v1355
    %v1368 = vpack.c.bf16 %v1358, %v1357
    %v1369 = vpack.c.bf16 %v1360, %v1359
    %v1370 = vpack.c.bf16 %v1362, %v1361
    %v1371 = vunpack.c.l.bf16 %v1363
    %v1372 = vunpack.c.h.bf16 %v1363
    %v1373 = vunpack.c.l.bf16 %v1364
    %v1374 = vunpack.c.h.bf16 %v1364
    %v1375 = vunpack.c.l.bf16 %v1365
    %v1376 = vunpack.c.h.bf16 %v1365
    %v1377 = vunpack.c.l.bf16 %v1366
    %v1378 = vunpack.c.h.bf16 %v1366
    %v1379 = vunpack.c.l.bf16 %v1367
    %v1380 = vunpack.c.h.bf16 %v1367
    %v1381 = vunpack.c.l.bf16 %v1368
    %v1382 = vunpack.c.h.bf16 %v1368
    %v1383 = vunpack.c.l.bf16 %v1369
    %v1384 = vunpack.c.h.bf16 %v1369
    %v1385 = vunpack.c.l.bf16 %v1370
    %v1386 = vunpack.c.h.bf16 %v1370
    %v1387 = vmul.f32 %v1371, %v1307
    %v1388 = vmul.f32 %v1372, %v1308
    %v1389 = vmul.f32 %v1373, %v1309
    %v1390 = vmul.f32 %v1374, %v1310
    %v1391 = vmul.f32 %v1375, %v1311
    %v1392 = vmul.f32 %v1376, %v1312
    %v1393 = vmul.f32 %v1377, %v1313
    %v1394 = vmul.f32 %v1378, %v1314
    %v1395 = vmul.f32 %v1379, %v1315
    %v1396 = vmul.f32 %v1380, %v1316
    %v1397 = vmul.f32 %v1381, %v1317
    %v1398 = vmul.f32 %v1382, %v1318
    %v1399 = vmul.f32 %v1383, %v1319
    %v1400 = vmul.f32 %v1384, %v1320
    %v1401 = vmul.f32 %v1385, %v1321
    %v1402 = vmul.f32 %v1386, %v1322
    %v1403 = vpack.c.bf16 %v1388, %v1387
    %v1404 = vpack.c.bf16 %v1390, %v1389
    %v1405 = vpack.c.bf16 %v1392, %v1391
    %v1406 = vpack.c.bf16 %v1394, %v1393
    %v1407 = vpack.c.bf16 %v1396, %v1395
    %v1408 = vpack.c.bf16 %v1398, %v1397
    %v1409 = vpack.c.bf16 %v1400, %v1399
    %v1410 = vpack.c.bf16 %v1402, %v1401
    %v1411 = vunpack.c.l.bf16 %v1403
    %v1412 = vunpack.c.h.bf16 %v1403
    %v1413 = vunpack.c.l.bf16 %v1404
    %v1414 = vunpack.c.h.bf16 %v1404
    %v1415 = vunpack.c.l.bf16 %v1405
    %v1416 = vunpack.c.h.bf16 %v1405
    %v1417 = vunpack.c.l.bf16 %v1406
    %v1418 = vunpack.c.h.bf16 %v1406
    %v1419 = vunpack.c.l.bf16 %v1407
    %v1420 = vunpack.c.h.bf16 %v1407
    %v1421 = vunpack.c.l.bf16 %v1408
    %v1422 = vunpack.c.h.bf16 %v1408
    %v1423 = vunpack.c.l.bf16 %v1409
    %v1424 = vunpack.c.h.bf16 %v1409
    %v1425 = vunpack.c.l.bf16 %v1410
    %v1426 = vunpack.c.h.bf16 %v1410
    %v1427 = vmul.f32 %v1411, %v1307
    %v1428 = vmul.f32 %v1412, %v1308
    %v1429 = vmul.f32 %v1413, %v1309
    %v1430 = vmul.f32 %v1414, %v1310
    %v1431 = vmul.f32 %v1415, %v1311
    %v1432 = vmul.f32 %v1416, %v1312
    %v1433 = vmul.f32 %v1417, %v1313
    %v1434 = vmul.f32 %v1418, %v1314
    %v1435 = vmul.f32 %v1419, %v1315
    %v1436 = vmul.f32 %v1420, %v1316
    %v1437 = vmul.f32 %v1421, %v1317
    %v1438 = vmul.f32 %v1422, %v1318
    %v1439 = vmul.f32 %v1423, %v1319
    %v1440 = vmul.f32 %v1424, %v1320
    %v1441 = vmul.f32 %v1425, %v1321
    %v1442 = vmul.f32 %v1426, %v1322
    %v1443 = vpack.c.bf16 %v1428, %v1427
    %v1444 = vpack.c.bf16 %v1430, %v1429
    %v1445 = vpack.c.bf16 %v1432, %v1431
    %v1446 = vpack.c.bf16 %v1434, %v1433
    %v1447 = vpack.c.bf16 %v1436, %v1435
    %v1448 = vpack.c.bf16 %v1438, %v1437
    %v1449 = vpack.c.bf16 %v1440, %v1439
    %v1450 = vpack.c.bf16 %v1442, %v1441
    %v1451 = vunpack.c.l.bf16 %v1443
    %v1452 = vunpack.c.h.bf16 %v1443
    %v1453 = vunpack.c.l.bf16 %v1444
    %v1454 = vunpack.c.h.bf16 %v1444
    %v1455 = vunpack.c.l.bf16 %v1445
    %v1456 = vunpack.c.h.bf16 %v1445
    %v1457 = vunpack.c.l.bf16 %v1446
    %v1458 = vunpack.c.h.bf16 %v1446
    %v1459 = vunpack.c.l.bf16 %v1447
    %v1460 = vunpack.c.h.bf16 %v1447
    %v1461 = vunpack.c.l.bf16 %v1448
    %v1462 = vunpack.c.h.bf16 %v1448
    %v1463 = vunpack.c.l.bf16 %v1449
    %v1464 = vunpack.c.h.bf16 %v1449
    %v1465 = vunpack.c.l.bf16 %v1450
    %v1466 = vunpack.c.h.bf16 %v1450
    %v1467 = vadd.f32 %v1307, %v1451
    %v1468 = vadd.f32 %v1308, %v1452
    %v1469 = vadd.f32 %v1309, %v1453
    %v1470 = vadd.f32 %v1310, %v1454
    %v1471 = vadd.f32 %v1311, %v1455
    %v1472 = vadd.f32 %v1312, %v1456
    %v1473 = vadd.f32 %v1313, %v1457
    %v1474 = vadd.f32 %v1314, %v1458
    %v1475 = vadd.f32 %v1315, %v1459
    %v1476 = vadd.f32 %v1316, %v1460
    %v1477 = vadd.f32 %v1317, %v1461
    %v1478 = vadd.f32 %v1318, %v1462
    %v1479 = vadd.f32 %v1319, %v1463
    %v1480 = vadd.f32 %v1320, %v1464
    %v1481 = vadd.f32 %v1321, %v1465
    %v1482 = vadd.f32 %v1322, %v1466
    %v1483 = vpack.c.bf16 %v1468, %v1467
    %v1484 = vpack.c.bf16 %v1470, %v1469
    %v1485 = vpack.c.bf16 %v1472, %v1471
    %v1486 = vpack.c.bf16 %v1474, %v1473
    %v1487 = vpack.c.bf16 %v1476, %v1475
    %v1488 = vpack.c.bf16 %v1478, %v1477
    %v1489 = vpack.c.bf16 %v1480, %v1479
    %v1490 = vpack.c.bf16 %v1482, %v1481
    %v1491 = vunpack.c.l.bf16 %v1483
    %v1492 = vunpack.c.h.bf16 %v1483
    %v1493 = vunpack.c.l.bf16 %v1484
    %v1494 = vunpack.c.h.bf16 %v1484
    %v1495 = vunpack.c.l.bf16 %v1485
    %v1496 = vunpack.c.h.bf16 %v1485
    %v1497 = vunpack.c.l.bf16 %v1486
    %v1498 = vunpack.c.h.bf16 %v1486
    %v1499 = vunpack.c.l.bf16 %v1487
    %v1500 = vunpack.c.h.bf16 %v1487
    %v1501 = vunpack.c.l.bf16 %v1488
    %v1502 = vunpack.c.h.bf16 %v1488
    %v1503 = vunpack.c.l.bf16 %v1489
    %v1504 = vunpack.c.h.bf16 %v1489
    %v1505 = vunpack.c.l.bf16 %v1490
    %v1506 = vunpack.c.h.bf16 %v1490
    %v1507 = vmul.f32 %v1491, 0.796875
    %v1508 = vmul.f32 %v1492, 0.796875
    %v1509 = vmul.f32 %v1493, 0.796875
    %v1510 = vmul.f32 %v1494, 0.796875
    %v1511 = vmul.f32 %v1495, 0.796875
    %v1512 = vmul.f32 %v1496, 0.796875
    %v1513 = vmul.f32 %v1497, 0.796875
    %v1514 = vmul.f32 %v1498, 0.796875
    %v1515 = vmul.f32 %v1499, 0.796875
    %v1516 = vmul.f32 %v1500, 0.796875
    %v1517 = vmul.f32 %v1501, 0.796875
    %v1518 = vmul.f32 %v1502, 0.796875
    %v1519 = vmul.f32 %v1503, 0.796875
    %v1520 = vmul.f32 %v1504, 0.796875
    %v1521 = vmul.f32 %v1505, 0.796875
    %v1522 = vmul.f32 %v1506, 0.796875
    %v1523 = vpack.c.bf16 %v1508, %v1507
    %v1524 = vpack.c.bf16 %v1510, %v1509
    %v1525 = vpack.c.bf16 %v1512, %v1511
    %v1526 = vpack.c.bf16 %v1514, %v1513
    %v1527 = vpack.c.bf16 %v1516, %v1515
    %v1528 = vpack.c.bf16 %v1518, %v1517
    %v1529 = vpack.c.bf16 %v1520, %v1519
    %v1530 = vpack.c.bf16 %v1522, %v1521
    %v1531 = vunpack.c.l.bf16 %v1523
    %v1532 = vunpack.c.h.bf16 %v1523
    %v1533 = vunpack.c.l.bf16 %v1524
    %v1534 = vunpack.c.h.bf16 %v1524
    %v1535 = vunpack.c.l.bf16 %v1525
    %v1536 = vunpack.c.h.bf16 %v1525
    %v1537 = vunpack.c.l.bf16 %v1526
    %v1538 = vunpack.c.h.bf16 %v1526
    %v1539 = vunpack.c.l.bf16 %v1527
    %v1540 = vunpack.c.h.bf16 %v1527
    %v1541 = vunpack.c.l.bf16 %v1528
    %v1542 = vunpack.c.h.bf16 %v1528
    %v1543 = vunpack.c.l.bf16 %v1529
    %v1544 = vunpack.c.h.bf16 %v1529
    %v1545 = vunpack.c.l.bf16 %v1530
    %v1546 = vunpack.c.h.bf16 %v1530
    %v1547 = vtanh.pop %v1531
    %v1548 = vtanh.pop %v1532
    %v1549 = vtanh.pop %v1533
    %v1550 = vtanh.pop %v1534
    %v1551 = vtanh.pop %v1535
    %v1552 = vtanh.pop %v1536
    %v1553 = vtanh.pop %v1537
    %v1554 = vtanh.pop %v1538
    %v1555 = vtanh.pop %v1539
    %v1556 = vtanh.pop %v1540
    %v1557 = vtanh.pop %v1541
    %v1558 = vtanh.pop %v1542
    %v1559 = vtanh.pop %v1543
    %v1560 = vtanh.pop %v1544
    %v1561 = vtanh.pop %v1545
    %v1562 = vtanh.pop %v1546
    %v1563 = vpack.c.bf16 %v1548, %v1547
    %v1564 = vpack.c.bf16 %v1550, %v1549
    %v1565 = vpack.c.bf16 %v1552, %v1551
    %v1566 = vpack.c.bf16 %v1554, %v1553
    %v1567 = vpack.c.bf16 %v1556, %v1555
    %v1568 = vpack.c.bf16 %v1558, %v1557
    %v1569 = vpack.c.bf16 %v1560, %v1559
    %v1570 = vpack.c.bf16 %v1562, %v1561
    %v1571 = vunpack.c.l.bf16 %v1563
    %v1572 = vunpack.c.h.bf16 %v1563
    %v1573 = vunpack.c.l.bf16 %v1564
    %v1574 = vunpack.c.h.bf16 %v1564
    %v1575 = vunpack.c.l.bf16 %v1565
    %v1576 = vunpack.c.h.bf16 %v1565
    %v1577 = vunpack.c.l.bf16 %v1566
    %v1578 = vunpack.c.h.bf16 %v1566
    %v1579 = vunpack.c.l.bf16 %v1567
    %v1580 = vunpack.c.h.bf16 %v1567
    %v1581 = vunpack.c.l.bf16 %v1568
    %v1582 = vunpack.c.h.bf16 %v1568
    %v1583 = vunpack.c.l.bf16 %v1569
    %v1584 = vunpack.c.h.bf16 %v1569
    %v1585 = vunpack.c.l.bf16 %v1570
    %v1586 = vunpack.c.h.bf16 %v1570
    %v1587 = vadd.f32 %v1571, 1.0
    %v1588 = vadd.f32 %v1572, 1.0
    %v1589 = vadd.f32 %v1573, 1.0
    %v1590 = vadd.f32 %v1574, 1.0
    %v1591 = vadd.f32 %v1575, 1.0
    %v1592 = vadd.f32 %v1576, 1.0
    %v1593 = vadd.f32 %v1577, 1.0
    %v1594 = vadd.f32 %v1578, 1.0
    %v1595 = vadd.f32 %v1579, 1.0
    %v1596 = vadd.f32 %v1580, 1.0
    %v1597 = vadd.f32 %v1581, 1.0
    %v1598 = vadd.f32 %v1582, 1.0
    %v1599 = vadd.f32 %v1583, 1.0
    %v1600 = vadd.f32 %v1584, 1.0
    %v1601 = vadd.f32 %v1585, 1.0
    %v1602 = vadd.f32 %v1586, 1.0
    %v1603 = vpack.c.bf16 %v1588, %v1587
    %v1604 = vpack.c.bf16 %v1590, %v1589
    %v1605 = vpack.c.bf16 %v1592, %v1591
    %v1606 = vpack.c.bf16 %v1594, %v1593
    %v1607 = vpack.c.bf16 %v1596, %v1595
    %v1608 = vpack.c.bf16 %v1598, %v1597
    %v1609 = vpack.c.bf16 %v1600, %v1599
    %v1610 = vpack.c.bf16 %v1602, %v1601
    %v1611 = vunpack.c.l.bf16 %v1339
    %v1612 = vunpack.c.h.bf16 %v1339
    %v1613 = vunpack.c.l.bf16 %v1340
    %v1614 = vunpack.c.h.bf16 %v1340
    %v1615 = vunpack.c.l.bf16 %v1341
    %v1616 = vunpack.c.h.bf16 %v1341
    %v1617 = vunpack.c.l.bf16 %v1342
    %v1618 = vunpack.c.h.bf16 %v1342
    %v1619 = vunpack.c.l.bf16 %v1343
    %v1620 = vunpack.c.h.bf16 %v1343
    %v1621 = vunpack.c.l.bf16 %v1344
    %v1622 = vunpack.c.h.bf16 %v1344
    %v1623 = vunpack.c.l.bf16 %v1345
    %v1624 = vunpack.c.h.bf16 %v1345
    %v1625 = vunpack.c.l.bf16 %v1346
    %v1626 = vunpack.c.h.bf16 %v1346
    %v1627 = vunpack.c.l.bf16 %v1603
    %v1628 = vunpack.c.h.bf16 %v1603
    %v1629 = vunpack.c.l.bf16 %v1604
    %v1630 = vunpack.c.h.bf16 %v1604
    %v1631 = vunpack.c.l.bf16 %v1605
    %v1632 = vunpack.c.h.bf16 %v1605
    %v1633 = vunpack.c.l.bf16 %v1606
    %v1634 = vunpack.c.h.bf16 %v1606
    %v1635 = vunpack.c.l.bf16 %v1607
    %v1636 = vunpack.c.h.bf16 %v1607
    %v1637 = vunpack.c.l.bf16 %v1608
    %v1638 = vunpack.c.h.bf16 %v1608
    %v1639 = vunpack.c.l.bf16 %v1609
    %v1640 = vunpack.c.h.bf16 %v1609
    %v1641 = vunpack.c.l.bf16 %v1610
    %v1642 = vunpack.c.h.bf16 %v1610
    %v1643 = vmul.f32 %v1611, %v1627
    %v1644 = vmul.f32 %v1612, %v1628
    %v1645 = vmul.f32 %v1613, %v1629
    %v1646 = vmul.f32 %v1614, %v1630
    %v1647 = vmul.f32 %v1615, %v1631
    %v1648 = vmul.f32 %v1616, %v1632
    %v1649 = vmul.f32 %v1617, %v1633
    %v1650 = vmul.f32 %v1618, %v1634
    %v1651 = vmul.f32 %v1619, %v1635
    %v1652 = vmul.f32 %v1620, %v1636
    %v1653 = vmul.f32 %v1621, %v1637
    %v1654 = vmul.f32 %v1622, %v1638
    %v1655 = vmul.f32 %v1623, %v1639
    %v1656 = vmul.f32 %v1624, %v1640
    %v1657 = vmul.f32 %v1625, %v1641
    %v1658 = vmul.f32 %v1626, %v1642
    %v1659 = vpack.c.bf16 %v1645, %v1643
    %v1660 = vpack.c.bf16 %v1646, %v1644
    %v1661 = vpack.c.bf16 %v1649, %v1647
    %v1662 = vpack.c.bf16 %v1650, %v1648
    %v1663 = vpack.c.bf16 %v1653, %v1651
    %v1664 = vpack.c.bf16 %v1654, %v1652
    %v1665 = vpack.c.bf16 %v1657, %v1655
    %v1666 = vpack.c.bf16 %v1658, %v1656
    %v1667 = vld [vmem:[%s6] sm:$0xf]
    %v1668 = vld [vmem:[%s6 + $0x4] sm:$0xf]
    %1669 = vset.pattern.permute.xlu0 5
    %1670 = vperm.xlu0 %1669, %v28
    %v1671 = vpop.permute.xlu0 %1670
    %1673 = vset.pattern.permute.xlu0 5
    %1674 = vperm.xlu0 %1673, %v29
    %v1675 = vpop.permute.xlu0 %1674
    %v1679 = vunpack.c.l.b16 %v1667
    %v1680 = vunpack.c.l.b16 %v1668
    %v1681 = vpack.c.b16 %v1680, %v1679
    %v1683 = vsel %vm650, %v1681, 0
    %1685 = vmatpush.bf16.msra.mxu0 0
    %1686 = vmatpush.bf16.msra.mxu0 0
    %1687 = vmatpush.bf16.msra.mxu0 0
    %1688 = vmatpush.bf16.msra.mxu0 0
    %1689 = vmatpush.bf16.msra.mxu0 %v1665
    %1690 = vmatpush.bf16.msra.mxu0 %v1663
    %1691 = vmatpush.bf16.msra.mxu0 %v1661
    %1692 = vmatpush.bf16.msra.mxu0 %v1659
    %1693 = vmatmul.bf16.gmra.mxu0 %v1683
    %v1694 = vpop.f32.mrf.mxu0
    %v1695 = vadd.f32 %v1671, %v1694
    %v1696 = vpop.f32.mrf.mxu0
    %v1697 = vadd.f32 %v1675, %v1696
    %1698 = vdwg.mxu0
    %1699 = vmatpush.bf16.msra.mxu0 0
    %1700 = vmatpush.bf16.msra.mxu0 0
    %1701 = vmatpush.bf16.msra.mxu0 0
    %1702 = vmatpush.bf16.msra.mxu0 0
    %1703 = vmatpush.bf16.msra.mxu0 %v1666
    %1704 = vmatpush.bf16.msra.mxu0 %v1664
    %1705 = vmatpush.bf16.msra.mxu0 %v1662
    %1706 = vmatpush.bf16.msra.mxu0 %v1660
    %1707 = vmatmul.bf16.gmra.mxu0 %v1683
    %v1708 = vpop.f32.mrf.mxu0
    %v1709 = vadd.f32 %v1671, %v1708
    %v1710 = vpop.f32.mrf.mxu0
    %v1711 = vadd.f32 %v1675, %v1710
    %1712 = vdwg.mxu0
    %1713 = vset.pattern.permute.xlu0 7
    %1714 = vperm.xlu0 %1713, %v28
    %v1715 = vpop.permute.xlu0 %1714
    %1717 = vset.pattern.permute.xlu0 7
    %1718 = vperm.xlu0 %1717, %v29
    %v1719 = vpop.permute.xlu0 %1718
    %v1721 = vmul.f32 %v1715, %v730
    %v1722 = vmul.f32 %v1715, %v731
    %v1723 = vmul.f32 %v1719, %v732
    %v1724 = vmul.f32 %v1719, %v733
    %v1725 = vadd.f32 %v1695, %v1721
    %v1726 = vadd.f32 %v1709, %v1722
    %v1727 = vadd.f32 %v1697, %v1723
    %v1728 = vadd.f32 %v1711, %v1724
    %v1729 = vadd.f32 %v1725, %v38
    %v1730 = vadd.f32 %v1726, %v39
    %v1731 = vadd.f32 %v1727, %v40
    %v1732 = vadd.f32 %v1728, %v41
    %1733 = vst [vmem:[#allocation2] sm:$0xff] %v1729
    %1734 = vst [vmem:[#allocation2 + $0x8] sm:$0xff] %v1730
    %1735 = vst [vmem:[#allocation2 + $0x10] sm:$0xff] %v1731
    %1736 = vst [vmem:[#allocation2 + $0x18] sm:$0xff] %v1732
    %s1737 = scalar_lea.vmem %s0, 32
    %v1738 = vld [vmem:[%s1737] sm:$0xff]
    %v1739 = vld [vmem:[%s1737 + $0x8] sm:$0xff]
    %v1740 = vld [vmem:[%s1737 + $0x10] sm:$0xff]
    %v1741 = vld [vmem:[%s1737 + $0x18] sm:$0xff]
    %v1742 = vadd.f32 %v1738, %v1739
    %v1743 = vadd.f32 %v1742, %v1740
    %v1744 = vadd.f32 %v1743, %v1741
    %1745 = vadd.xlane.f32.xlu0 %v1744
    %v1746 = vpop.xlane.xlu0 %1745
    %v1747 = vrot.slane %v1746, 4
    %v1748 = vadd.f32 %v1746, %v1747
    %v1749 = vrot.slane %v1748, 2
    %v1750 = vadd.f32 %v1748, %v1749
    %v1751 = vrot.slane %v1750, 1
    %v1752 = vadd.f32 %v1750, %v1751
    %s1753 = vtos %v1752
    %v1754 = vstv %s1753
    %v1755 = vmul.f32 %v1754, %v61
    %v1756 = vsub.f32 %v1738, %v1755
    %v1757 = vsub.f32 %v1739, %v1755
    %v1758 = vsub.f32 %v1740, %v1755
    %v1759 = vsub.f32 %v1741, %v1755
    %v1760 = vmul.f32 %v1756, %v1756
    %v1761 = vmul.f32 %v1757, %v1757
    %v1762 = vmul.f32 %v1758, %v1758
    %v1763 = vmul.f32 %v1759, %v1759
    %v1764 = vadd.f32 %v1760, %v1761
    %v1765 = vadd.f32 %v1764, %v1762
    %v1766 = vadd.f32 %v1765, %v1763
    %1767 = vadd.xlane.f32.xlu0 %v1766
    %v1768 = vpop.xlane.xlu0 %1767
    %v1769 = vrot.slane %v1768, 4
    %v1770 = vadd.f32 %v1768, %v1769
    %v1771 = vrot.slane %v1770, 2
    %v1772 = vadd.f32 %v1770, %v1771
    %v1773 = vrot.slane %v1772, 1
    %v1774 = vadd.f32 %v1772, %v1773
    %s1775 = vtos %v1774
    %v1776 = vstv %s1775
    %v1777 = vmul.f32 %v1776, %v61
    %v1778 = vadd.f32 %v1777, 1e-05
    %v1779 = vrsqrt.pop %v1778
    %v1780 = vmul.f32 %v1779, %v1778
    %v1781 = vmul.f32 %v1780, %v1779
    %v1782 = vmul.f32 0.5, %v1781
    %v1783 = vsub.f32 1.5, %v1782
    %v1784 = vmul.f32 %v1779, %v1783
    %vm1785 = vweird.f32 %v1778
    %vm1786 = vweird.f32 %v1779
    %vm1787 = vmor %vm1785, %vm1786
    %v1788 = vsel %vm1787, %v1779, %v1784
    %v1789 = vmul.f32 %v28, %v1788
    %v1790 = vmul.f32 %v29, %v1788
    %1792 = vset.pattern.permute.xlu0 0
    %1793 = vperm.xlu0 %1792, %v1789
    %v1794 = vpop.permute.xlu0 %1793
    %1797 = vset.pattern.permute.xlu0 0
    %1798 = vperm.xlu0 %1797, %v1790
    %v1799 = vpop.permute.xlu0 %1798
    %v1801 = vmul.f32 %v1756, %v1794
    %v1802 = vmul.f32 %v1757, %v1794
    %v1803 = vmul.f32 %v1758, %v1799
    %v1804 = vmul.f32 %v1759, %v1799
    %v1805 = vadd.f32 %v1801, %v115
    %v1806 = vadd.f32 %v1802, %v115
    %v1807 = vadd.f32 %v1803, %v120
    %v1808 = vadd.f32 %v1804, %v120
    %v1809 = vld [vmem:[%s3] sm:$0xf]
    %v1810 = vld [vmem:[%s3 + $0x4] sm:$0xf]
    %v1811 = vld [vmem:[%s3 + $0x8] sm:$0xf]
    %v1812 = vld [vmem:[%s3 + $0xc] sm:$0xf]
    %v1813 = vld [vmem:[%s3 + $0x10] sm:$0xf]
    %v1814 = vld [vmem:[%s3 + $0x14] sm:$0xf]
    %v1815 = vld [vmem:[%s3 + $0x18] sm:$0xf]
    %v1816 = vld [vmem:[%s3 + $0x1c] sm:$0xf]
    %v1817 = vpack.c.bf16 %v1807, %v1805
    %v1818 = vpack.c.bf16 %v1808, %v1806
    %v1827 = vunpack.c.l.b16 %v1809
    %v1828 = vunpack.c.l.b16 %v1810
    %v1829 = vunpack.c.l.b16 %v1811
    %v1830 = vunpack.c.l.b16 %v1812
    %v1831 = vunpack.c.l.b16 %v1813
    %v1832 = vunpack.c.l.b16 %v1814
    %v1833 = vunpack.c.l.b16 %v1815
    %v1834 = vunpack.c.l.b16 %v1816
    %v1835 = vpack.c.b16 %v1828, %v1827
    %v1836 = vpack.c.b16 %v1830, %v1829
    %v1837 = vpack.c.b16 %v1832, %v1831
    %v1838 = vpack.c.b16 %v1834, %v1833
    %v1840 = vsel %vm196, %v1835, 0
    %v1843 = vsel %vm196, %v1836, 0
    %v1846 = vsel %vm196, %v1837, 0
    %v1849 = vsel %vm196, %v1838, 0
    %1851 = vmatpush.bf16.msra.mxu0 0
    %1852 = vmatpush.bf16.msra.mxu0 0
    %1853 = vmatpush.bf16.msra.mxu0 0
    %1854 = vmatpush.bf16.msra.mxu0 0
    %1855 = vmatpush.bf16.msra.mxu0 0
    %1856 = vmatpush.bf16.msra.mxu0 0
    %1857 = vmatpush.bf16.msra.mxu0 0
    %1858 = vmatpush.bf16.msra.mxu0 %v1817
    %1859 = vmatmul.bf16.gmra.mxu0 %v1840
    %v1860 = vpop.f32.mrf.mxu0
    %v1861 = vadd.f32 %v139, %v1860
    %v1862 = vpop.f32.mrf.mxu0
    %v1863 = vadd.f32 %v144, %v1862
    %1864 = vmatmul.bf16.gmra.mxu0 %v1843
    %v1865 = vpop.f32.mrf.mxu0
    %v1866 = vadd.f32 %v149, %v1865
    %v1867 = vpop.f32.mrf.mxu0
    %v1868 = vadd.f32 %v154, %v1867
    %1869 = vmatmul.bf16.gmra.mxu0 %v1846
    %v1870 = vpop.f32.mrf.mxu0
    %v1871 = vadd.f32 %v159, %v1870
    %v1872 = vpop.f32.mrf.mxu0
    %v1873 = vadd.f32 %v164, %v1872
    %1874 = vmatmul.bf16.gmra.mxu0 %v1849
    %v1875 = vpop.f32.mrf.mxu0
    %v1876 = vadd.f32 %v169, %v1875
    %v1877 = vpop.f32.mrf.mxu0
    %v1878 = vadd.f32 %v174, %v1877
    %1879 = vdwg.mxu0
    %1880 = vmatpush.bf16.msra.mxu0 0
    %1881 = vmatpush.bf16.msra.mxu0 0
    %1882 = vmatpush.bf16.msra.mxu0 0
    %1883 = vmatpush.bf16.msra.mxu0 0
    %1884 = vmatpush.bf16.msra.mxu0 0
    %1885 = vmatpush.bf16.msra.mxu0 0
    %1886 = vmatpush.bf16.msra.mxu0 0
    %1887 = vmatpush.bf16.msra.mxu0 %v1818
    %1888 = vmatmul.bf16.gmra.mxu0 %v1840
    %v1889 = vpop.f32.mrf.mxu0
    %v1890 = vadd.f32 %v139, %v1889
    %v1891 = vpop.f32.mrf.mxu0
    %v1892 = vadd.f32 %v144, %v1891
    %1893 = vmatmul.bf16.gmra.mxu0 %v1843
    %v1894 = vpop.f32.mrf.mxu0
    %v1895 = vadd.f32 %v149, %v1894
    %v1896 = vpop.f32.mrf.mxu0
    %v1897 = vadd.f32 %v154, %v1896
    %1898 = vmatmul.bf16.gmra.mxu0 %v1846
    %v1899 = vpop.f32.mrf.mxu0
    %v1900 = vadd.f32 %v159, %v1899
    %v1901 = vpop.f32.mrf.mxu0
    %v1902 = vadd.f32 %v164, %v1901
    %1903 = vmatmul.bf16.gmra.mxu0 %v1849
    %v1904 = vpop.f32.mrf.mxu0
    %v1905 = vadd.f32 %v169, %v1904
    %v1906 = vpop.f32.mrf.mxu0
    %v1907 = vadd.f32 %v174, %v1906
    %1908 = vdwg.mxu0
    %v1909 = vpack.c.bf16 %v1890, %v1861
    %v1910 = vpack.c.bf16 %v1892, %v1863
    %v1911 = vpack.c.bf16 %v1895, %v1866
    %v1912 = vpack.c.bf16 %v1897, %v1868
    %v1913 = vpack.c.bf16 %v1900, %v1871
    %v1914 = vpack.c.bf16 %v1902, %v1873
    %v1915 = vpack.c.bf16 %v1905, %v1876
    %v1916 = vpack.c.bf16 %v1907, %v1878
    %v1917 = vunpack.c.l.bf16 %v1909
    %v1918 = vunpack.c.h.bf16 %v1909
    %v1919 = vunpack.c.l.bf16 %v1910
    %v1920 = vunpack.c.h.bf16 %v1910
    %v1921 = vunpack.c.l.bf16 %v1911
    %v1922 = vunpack.c.h.bf16 %v1911
    %v1923 = vunpack.c.l.bf16 %v1912
    %v1924 = vunpack.c.h.bf16 %v1912
    %v1925 = vunpack.c.l.bf16 %v1913
    %v1926 = vunpack.c.h.bf16 %v1913
    %v1927 = vunpack.c.l.bf16 %v1914
    %v1928 = vunpack.c.h.bf16 %v1914
    %v1929 = vunpack.c.l.bf16 %v1915
    %v1930 = vunpack.c.h.bf16 %v1915
    %v1931 = vunpack.c.l.bf16 %v1916
    %v1932 = vunpack.c.h.bf16 %v1916
    %v1933 = vmul.f32 %v1917, 0.5
    %v1934 = vmul.f32 %v1918, 0.5
    %v1935 = vmul.f32 %v1919, 0.5
    %v1936 = vmul.f32 %v1920, 0.5
    %v1937 = vmul.f32 %v1921, 0.5
    %v1938 = vmul.f32 %v1922, 0.5
    %v1939 = vmul.f32 %v1923, 0.5
    %v1940 = vmul.f32 %v1924, 0.5
    %v1941 = vmul.f32 %v1925, 0.5
    %v1942 = vmul.f32 %v1926, 0.5
    %v1943 = vmul.f32 %v1927, 0.5
    %v1944 = vmul.f32 %v1928, 0.5
    %v1945 = vmul.f32 %v1929, 0.5
    %v1946 = vmul.f32 %v1930, 0.5
    %v1947 = vmul.f32 %v1931, 0.5
    %v1948 = vmul.f32 %v1932, 0.5
    %v1949 = vpack.c.bf16 %v1934, %v1933
    %v1950 = vpack.c.bf16 %v1936, %v1935
    %v1951 = vpack.c.bf16 %v1938, %v1937
    %v1952 = vpack.c.bf16 %v1940, %v1939
    %v1953 = vpack.c.bf16 %v1942, %v1941
    %v1954 = vpack.c.bf16 %v1944, %v1943
    %v1955 = vpack.c.bf16 %v1946, %v1945
    %v1956 = vpack.c.bf16 %v1948, %v1947
    %v1957 = vmul.f32 %v1917, 0.044677734
    %v1958 = vmul.f32 %v1918, 0.044677734
    %v1959 = vmul.f32 %v1919, 0.044677734
    %v1960 = vmul.f32 %v1920, 0.044677734
    %v1961 = vmul.f32 %v1921, 0.044677734
    %v1962 = vmul.f32 %v1922, 0.044677734
    %v1963 = vmul.f32 %v1923, 0.044677734
    %v1964 = vmul.f32 %v1924, 0.044677734
    %v1965 = vmul.f32 %v1925, 0.044677734
    %v1966 = vmul.f32 %v1926, 0.044677734
    %v1967 = vmul.f32 %v1927, 0.044677734
    %v1968 = vmul.f32 %v1928, 0.044677734
    %v1969 = vmul.f32 %v1929, 0.044677734
    %v1970 = vmul.f32 %v1930, 0.044677734
    %v1971 = vmul.f32 %v1931, 0.044677734
    %v1972 = vmul.f32 %v1932, 0.044677734
    %v1973 = vpack.c.bf16 %v1958, %v1957
    %v1974 = vpack.c.bf16 %v1960, %v1959
    %v1975 = vpack.c.bf16 %v1962, %v1961
    %v1976 = vpack.c.bf16 %v1964, %v1963
    %v1977 = vpack.c.bf16 %v1966, %v1965
    %v1978 = vpack.c.bf16 %v1968, %v1967
    %v1979 = vpack.c.bf16 %v1970, %v1969
    %v1980 = vpack.c.bf16 %v1972, %v1971
    %v1981 = vunpack.c.l.bf16 %v1973
    %v1982 = vunpack.c.h.bf16 %v1973
    %v1983 = vunpack.c.l.bf16 %v1974
    %v1984 = vunpack.c.h.bf16 %v1974
    %v1985 = vunpack.c.l.bf16 %v1975
    %v1986 = vunpack.c.h.bf16 %v1975
    %v1987 = vunpack.c.l.bf16 %v1976
    %v1988 = vunpack.c.h.bf16 %v1976
    %v1989 = vunpack.c.l.bf16 %v1977
    %v1990 = vunpack.c.h.bf16 %v1977
    %v1991 = vunpack.c.l.bf16 %v1978
    %v1992 = vunpack.c.h.bf16 %v1978
    %v1993 = vunpack.c.l.bf16 %v1979
    %v1994 = vunpack.c.h.bf16 %v1979
    %v1995 = vunpack.c.l.bf16 %v1980
    %v1996 = vunpack.c.h.bf16 %v1980
    %v1997 = vmul.f32 %v1981, %v1917
    %v1998 = vmul.f32 %v1982, %v1918
    %v1999 = vmul.f32 %v1983, %v1919
    %v2000 = vmul.f32 %v1984, %v1920
    %v2001 = vmul.f32 %v1985, %v1921
    %v2002 = vmul.f32 %v1986, %v1922
    %v2003 = vmul.f32 %v1987, %v1923
    %v2004 = vmul.f32 %v1988, %v1924
    %v2005 = vmul.f32 %v1989, %v1925
    %v2006 = vmul.f32 %v1990, %v1926
    %v2007 = vmul.f32 %v1991, %v1927
    %v2008 = vmul.f32 %v1992, %v1928
    %v2009 = vmul.f32 %v1993, %v1929
    %v2010 = vmul.f32 %v1994, %v1930
    %v2011 = vmul.f32 %v1995, %v1931
    %v2012 = vmul.f32 %v1996, %v1932
    %v2013 = vpack.c.bf16 %v1998, %v1997
    %v2014 = vpack.c.bf16 %v2000, %v1999
    %v2015 = vpack.c.bf16 %v2002, %v2001
    %v2016 = vpack.c.bf16 %v2004, %v2003
    %v2017 = vpack.c.bf16 %v2006, %v2005
    %v2018 = vpack.c.bf16 %v2008, %v2007
    %v2019 = vpack.c.bf16 %v2010, %v2009
    %v2020 = vpack.c.bf16 %v2012, %v2011
    %v2021 = vunpack.c.l.bf16 %v2013
    %v2022 = vunpack.c.h.bf16 %v2013
    %v2023 = vunpack.c.l.bf16 %v2014
    %v2024 = vunpack.c.h.bf16 %v2014
    %v2025 = vunpack.c.l.bf16 %v2015
    %v2026 = vunpack.c.h.bf16 %v2015
    %v2027 = vunpack.c.l.bf16 %v2016
    %v2028 = vunpack.c.h.bf16 %v2016
    %v2029 = vunpack.c.l.bf16 %v2017
    %v2030 = vunpack.c.h.bf16 %v2017
    %v2031 = vunpack.c.l.bf16 %v2018
    %v2032 = vunpack.c.h.bf16 %v2018
    %v2033 = vunpack.c.l.bf16 %v2019
    %v2034 = vunpack.c.h.bf16 %v2019
    %v2035 = vunpack.c.l.bf16 %v2020
    %v2036 = vunpack.c.h.bf16 %v2020
    %v2037 = vmul.f32 %v2021, %v1917
    %v2038 = vmul.f32 %v2022, %v1918
    %v2039 = vmul.f32 %v2023, %v1919
    %v2040 = vmul.f32 %v2024, %v1920
    %v2041 = vmul.f32 %v2025, %v1921
    %v2042 = vmul.f32 %v2026, %v1922
    %v2043 = vmul.f32 %v2027, %v1923
    %v2044 = vmul.f32 %v2028, %v1924
    %v2045 = vmul.f32 %v2029, %v1925
    %v2046 = vmul.f32 %v2030, %v1926
    %v2047 = vmul.f32 %v2031, %v1927
    %v2048 = vmul.f32 %v2032, %v1928
    %v2049 = vmul.f32 %v2033, %v1929
    %v2050 = vmul.f32 %v2034, %v1930
    %v2051 = vmul.f32 %v2035, %v1931
    %v2052 = vmul.f32 %v2036, %v1932
    %v2053 = vpack.c.bf16 %v2038, %v2037
    %v2054 = vpack.c.bf16 %v2040, %v2039
    %v2055 = vpack.c.bf16 %v2042, %v2041
    %v2056 = vpack.c.bf16 %v2044, %v2043
    %v2057 = vpack.c.bf16 %v2046, %v2045
    %v2058 = vpack.c.bf16 %v2048, %v2047
    %v2059 = vpack.c.bf16 %v2050, %v2049
    %v2060 = vpack.c.bf16 %v2052, %v2051
    %v2061 = vunpack.c.l.bf16 %v2053
    %v2062 = vunpack.c.h.bf16 %v2053
    %v2063 = vunpack.c.l.bf16 %v2054
    %v2064 = vunpack.c.h.bf16 %v2054
    %v2065 = vunpack.c.l.bf16 %v2055
    %v2066 = vunpack.c.h.bf16 %v2055
    %v2067 = vunpack.c.l.bf16 %v2056
    %v2068 = vunpack.c.h.bf16 %v2056
    %v2069 = vunpack.c.l.bf16 %v2057
    %v2070 = vunpack.c.h.bf16 %v2057
    %v2071 = vunpack.c.l.bf16 %v2058
    %v2072 = vunpack.c.h.bf16 %v2058
    %v2073 = vunpack.c.l.bf16 %v2059
    %v2074 = vunpack.c.h.bf16 %v2059
    %v2075 = vunpack.c.l.bf16 %v2060
    %v2076 = vunpack.c.h.bf16 %v2060
    %v2077 = vadd.f32 %v1917, %v2061
    %v2078 = vadd.f32 %v1918, %v2062
    %v2079 = vadd.f32 %v1919, %v2063
    %v2080 = vadd.f32 %v1920, %v2064
    %v2081 = vadd.f32 %v1921, %v2065
    %v2082 = vadd.f32 %v1922, %v2066
    %v2083 = vadd.f32 %v1923, %v2067
    %v2084 = vadd.f32 %v1924, %v2068
    %v2085 = vadd.f32 %v1925, %v2069
    %v2086 = vadd.f32 %v1926, %v2070
    %v2087 = vadd.f32 %v1927, %v2071
    %v2088 = vadd.f32 %v1928, %v2072
    %v2089 = vadd.f32 %v1929, %v2073
    %v2090 = vadd.f32 %v1930, %v2074
    %v2091 = vadd.f32 %v1931, %v2075
    %v2092 = vadd.f32 %v1932, %v2076
    %v2093 = vpack.c.bf16 %v2078, %v2077
    %v2094 = vpack.c.bf16 %v2080, %v2079
    %v2095 = vpack.c.bf16 %v2082, %v2081
    %v2096 = vpack.c.bf16 %v2084, %v2083
    %v2097 = vpack.c.bf16 %v2086, %v2085
    %v2098 = vpack.c.bf16 %v2088, %v2087
    %v2099 = vpack.c.bf16 %v2090, %v2089
    %v2100 = vpack.c.bf16 %v2092, %v2091
    %v2101 = vunpack.c.l.bf16 %v2093
    %v2102 = vunpack.c.h.bf16 %v2093
    %v2103 = vunpack.c.l.bf16 %v2094
    %v2104 = vunpack.c.h.bf16 %v2094
    %v2105 = vunpack.c.l.bf16 %v2095
    %v2106 = vunpack.c.h.bf16 %v2095
    %v2107 = vunpack.c.l.bf16 %v2096
    %v2108 = vunpack.c.h.bf16 %v2096
    %v2109 = vunpack.c.l.bf16 %v2097
    %v2110 = vunpack.c.h.bf16 %v2097
    %v2111 = vunpack.c.l.bf16 %v2098
    %v2112 = vunpack.c.h.bf16 %v2098
    %v2113 = vunpack.c.l.bf16 %v2099
    %v2114 = vunpack.c.h.bf16 %v2099
    %v2115 = vunpack.c.l.bf16 %v2100
    %v2116 = vunpack.c.h.bf16 %v2100
    %v2117 = vmul.f32 %v2101, 0.796875
    %v2118 = vmul.f32 %v2102, 0.796875
    %v2119 = vmul.f32 %v2103, 0.796875
    %v2120 = vmul.f32 %v2104, 0.796875
    %v2121 = vmul.f32 %v2105, 0.796875
    %v2122 = vmul.f32 %v2106, 0.796875
    %v2123 = vmul.f32 %v2107, 0.796875
    %v2124 = vmul.f32 %v2108, 0.796875
    %v2125 = vmul.f32 %v2109, 0.796875
    %v2126 = vmul.f32 %v2110, 0.796875
    %v2127 = vmul.f32 %v2111, 0.796875
    %v2128 = vmul.f32 %v2112, 0.796875
    %v2129 = vmul.f32 %v2113, 0.796875
    %v2130 = vmul.f32 %v2114, 0.796875
    %v2131 = vmul.f32 %v2115, 0.796875
    %v2132 = vmul.f32 %v2116, 0.796875
    %v2133 = vpack.c.bf16 %v2118, %v2117
    %v2134 = vpack.c.bf16 %v2120, %v2119
    %v2135 = vpack.c.bf16 %v2122, %v2121
    %v2136 = vpack.c.bf16 %v2124, %v2123
    %v2137 = vpack.c.bf16 %v2126, %v2125
    %v2138 = vpack.c.bf16 %v2128, %v2127
    %v2139 = vpack.c.bf16 %v2130, %v2129
    %v2140 = vpack.c.bf16 %v2132, %v2131
    %v2141 = vunpack.c.l.bf16 %v2133
    %v2142 = vunpack.c.h.bf16 %v2133
    %v2143 = vunpack.c.l.bf16 %v2134
    %v2144 = vunpack.c.h.bf16 %v2134
    %v2145 = vunpack.c.l.bf16 %v2135
    %v2146 = vunpack.c.h.bf16 %v2135
    %v2147 = vunpack.c.l.bf16 %v2136
    %v2148 = vunpack.c.h.bf16 %v2136
    %v2149 = vunpack.c.l.bf16 %v2137
    %v2150 = vunpack.c.h.bf16 %v2137
    %v2151 = vunpack.c.l.bf16 %v2138
    %v2152 = vunpack.c.h.bf16 %v2138
    %v2153 = vunpack.c.l.bf16 %v2139
    %v2154 = vunpack.c.h.bf16 %v2139
    %v2155 = vunpack.c.l.bf16 %v2140
    %v2156 = vunpack.c.h.bf16 %v2140
    %v2157 = vtanh.pop %v2141
    %v2158 = vtanh.pop %v2142
    %v2159 = vtanh.pop %v2143
    %v2160 = vtanh.pop %v2144
    %v2161 = vtanh.pop %v2145
    %v2162 = vtanh.pop %v2146
    %v2163 = vtanh.pop %v2147
    %v2164 = vtanh.pop %v2148
    %v2165 = vtanh.pop %v2149
    %v2166 = vtanh.pop %v2150
    %v2167 = vtanh.pop %v2151
    %v2168 = vtanh.pop %v2152
    %v2169 = vtanh.pop %v2153
    %v2170 = vtanh.pop %v2154
    %v2171 = vtanh.pop %v2155
    %v2172 = vtanh.pop %v2156
    %v2173 = vpack.c.bf16 %v2158, %v2157
    %v2174 = vpack.c.bf16 %v2160, %v2159
    %v2175 = vpack.c.bf16 %v2162, %v2161
    %v2176 = vpack.c.bf16 %v2164, %v2163
    %v2177 = vpack.c.bf16 %v2166, %v2165
    %v2178 = vpack.c.bf16 %v2168, %v2167
    %v2179 = vpack.c.bf16 %v2170, %v2169
    %v2180 = vpack.c.bf16 %v2172, %v2171
    %v2181 = vunpack.c.l.bf16 %v2173
    %v2182 = vunpack.c.h.bf16 %v2173
    %v2183 = vunpack.c.l.bf16 %v2174
    %v2184 = vunpack.c.h.bf16 %v2174
    %v2185 = vunpack.c.l.bf16 %v2175
    %v2186 = vunpack.c.h.bf16 %v2175
    %v2187 = vunpack.c.l.bf16 %v2176
    %v2188 = vunpack.c.h.bf16 %v2176
    %v2189 = vunpack.c.l.bf16 %v2177
    %v2190 = vunpack.c.h.bf16 %v2177
    %v2191 = vunpack.c.l.bf16 %v2178
    %v2192 = vunpack.c.h.bf16 %v2178
    %v2193 = vunpack.c.l.bf16 %v2179
    %v2194 = vunpack.c.h.bf16 %v2179
    %v2195 = vunpack.c.l.bf16 %v2180
    %v2196 = vunpack.c.h.bf16 %v2180
    %v2197 = vadd.f32 %v2181, 1.0
    %v2198 = vadd.f32 %v2182, 1.0
    %v2199 = vadd.f32 %v2183, 1.0
    %v2200 = vadd.f32 %v2184, 1.0
    %v2201 = vadd.f32 %v2185, 1.0
    %v2202 = vadd.f32 %v2186, 1.0
    %v2203 = vadd.f32 %v2187, 1.0
    %v2204 = vadd.f32 %v2188, 1.0
    %v2205 = vadd.f32 %v2189, 1.0
    %v2206 = vadd.f32 %v2190, 1.0
    %v2207 = vadd.f32 %v2191, 1.0
    %v2208 = vadd.f32 %v2192, 1.0
    %v2209 = vadd.f32 %v2193, 1.0
    %v2210 = vadd.f32 %v2194, 1.0
    %v2211 = vadd.f32 %v2195, 1.0
    %v2212 = vadd.f32 %v2196, 1.0
    %v2213 = vpack.c.bf16 %v2198, %v2197
    %v2214 = vpack.c.bf16 %v2200, %v2199
    %v2215 = vpack.c.bf16 %v2202, %v2201
    %v2216 = vpack.c.bf16 %v2204, %v2203
    %v2217 = vpack.c.bf16 %v2206, %v2205
    %v2218 = vpack.c.bf16 %v2208, %v2207
    %v2219 = vpack.c.bf16 %v2210, %v2209
    %v2220 = vpack.c.bf16 %v2212, %v2211
    %v2221 = vunpack.c.l.bf16 %v1949
    %v2222 = vunpack.c.h.bf16 %v1949
    %v2223 = vunpack.c.l.bf16 %v1950
    %v2224 = vunpack.c.h.bf16 %v1950
    %v2225 = vunpack.c.l.bf16 %v1951
    %v2226 = vunpack.c.h.bf16 %v1951
    %v2227 = vunpack.c.l.bf16 %v1952
    %v2228 = vunpack.c.h.bf16 %v1952
    %v2229 = vunpack.c.l.bf16 %v1953
    %v2230 = vunpack.c.h.bf16 %v1953
    %v2231 = vunpack.c.l.bf16 %v1954
    %v2232 = vunpack.c.h.bf16 %v1954
    %v2233 = vunpack.c.l.bf16 %v1955
    %v2234 = vunpack.c.h.bf16 %v1955
    %v2235 = vunpack.c.l.bf16 %v1956
    %v2236 = vunpack.c.h.bf16 %v1956
    %v2237 = vunpack.c.l.bf16 %v2213
    %v2238 = vunpack.c.h.bf16 %v2213
    %v2239 = vunpack.c.l.bf16 %v2214
    %v2240 = vunpack.c.h.bf16 %v2214
    %v2241 = vunpack.c.l.bf16 %v2215
    %v2242 = vunpack.c.h.bf16 %v2215
    %v2243 = vunpack.c.l.bf16 %v2216
    %v2244 = vunpack.c.h.bf16 %v2216
    %v2245 = vunpack.c.l.bf16 %v2217
    %v2246 = vunpack.c.h.bf16 %v2217
    %v2247 = vunpack.c.l.bf16 %v2218
    %v2248 = vunpack.c.h.bf16 %v2218
    %v2249 = vunpack.c.l.bf16 %v2219
    %v2250 = vunpack.c.h.bf16 %v2219
    %v2251 = vunpack.c.l.bf16 %v2220
    %v2252 = vunpack.c.h.bf16 %v2220
    %v2253 = vmul.f32 %v2221, %v2237
    %v2254 = vmul.f32 %v2222, %v2238
    %v2255 = vmul.f32 %v2223, %v2239
    %v2256 = vmul.f32 %v2224, %v2240
    %v2257 = vmul.f32 %v2225, %v2241
    %v2258 = vmul.f32 %v2226, %v2242
    %v2259 = vmul.f32 %v2227, %v2243
    %v2260 = vmul.f32 %v2228, %v2244
    %v2261 = vmul.f32 %v2229, %v2245
    %v2262 = vmul.f32 %v2230, %v2246
    %v2263 = vmul.f32 %v2231, %v2247
    %v2264 = vmul.f32 %v2232, %v2248
    %v2265 = vmul.f32 %v2233, %v2249
    %v2266 = vmul.f32 %v2234, %v2250
    %v2267 = vmul.f32 %v2235, %v2251
    %v2268 = vmul.f32 %v2236, %v2252
    %v2269 = vpack.c.bf16 %v2255, %v2253
    %v2270 = vpack.c.bf16 %v2256, %v2254
    %v2271 = vpack.c.bf16 %v2259, %v2257
    %v2272 = vpack.c.bf16 %v2260, %v2258
    %v2273 = vpack.c.bf16 %v2263, %v2261
    %v2274 = vpack.c.bf16 %v2264, %v2262
    %v2275 = vpack.c.bf16 %v2267, %v2265
    %v2276 = vpack.c.bf16 %v2268, %v2266
    %v2277 = vld [vmem:[%s4] sm:$0xf]
    %v2278 = vld [vmem:[%s4 + $0x4] sm:$0xf]
    %v2281 = vunpack.c.l.b16 %v2277
    %v2282 = vunpack.c.l.b16 %v2278
    %v2283 = vpack.c.b16 %v2282, %v2281
    %v2285 = vsel %vm650, %v2283, 0
    %2287 = vmatpush.bf16.msra.mxu0 0
    %2288 = vmatpush.bf16.msra.mxu0 0
    %2289 = vmatpush.bf16.msra.mxu0 0
    %2290 = vmatpush.bf16.msra.mxu0 0
    %2291 = vmatpush.bf16.msra.mxu0 %v2275
    %2292 = vmatpush.bf16.msra.mxu0 %v2273
    %2293 = vmatpush.bf16.msra.mxu0 %v2271
    %2294 = vmatpush.bf16.msra.mxu0 %v2269
    %2295 = vmatmul.bf16.gmra.mxu0 %v2285
    %v2296 = vpop.f32.mrf.mxu0
    %v2297 = vadd.f32 %v639, %v2296
    %v2298 = vpop.f32.mrf.mxu0
    %v2299 = vadd.f32 %v643, %v2298
    %2300 = vdwg.mxu0
    %2301 = vmatpush.bf16.msra.mxu0 0
    %2302 = vmatpush.bf16.msra.mxu0 0
    %2303 = vmatpush.bf16.msra.mxu0 0
    %2304 = vmatpush.bf16.msra.mxu0 0
    %2305 = vmatpush.bf16.msra.mxu0 %v2276
    %2306 = vmatpush.bf16.msra.mxu0 %v2274
    %2307 = vmatpush.bf16.msra.mxu0 %v2272
    %2308 = vmatpush.bf16.msra.mxu0 %v2270
    %2309 = vmatmul.bf16.gmra.mxu0 %v2285
    %v2310 = vpop.f32.mrf.mxu0
    %v2311 = vadd.f32 %v639, %v2310
    %v2312 = vpop.f32.mrf.mxu0
    %v2313 = vadd.f32 %v643, %v2312
    %2314 = vdwg.mxu0
    %v2315 = vmul.f32 %v2297, 0.5
    %v2316 = vmul.f32 %v2311, 0.5
    %v2317 = vmul.f32 %v2299, 0.5
    %v2318 = vmul.f32 %v2313, 0.5
    %v2319 = vmul.f32 %v2297, 0.044715
    %v2320 = vmul.f32 %v2311, 0.044715
    %v2321 = vmul.f32 %v2299, 0.044715
    %v2322 = vmul.f32 %v2313, 0.044715
    %v2323 = vmul.f32 %v2319, %v2297
    %v2324 = vmul.f32 %v2320, %v2311
    %v2325 = vmul.f32 %v2321, %v2299
    %v2326 = vmul.f32 %v2322, %v2313
    %v2327 = vmul.f32 %v2323, %v2297
    %v2328 = vmul.f32 %v2324, %v2311
    %v2329 = vmul.f32 %v2325, %v2299
    %v2330 = vmul.f32 %v2326, %v2313
    %v2331 = vadd.f32 %v2297, %v2327
    %v2332 = vadd.f32 %v2311, %v2328
    %v2333 = vadd.f32 %v2299, %v2329
    %v2334 = vadd.f32 %v2313, %v2330
    %v2335 = vmul.f32 %v2331, 0.7978846
    %v2336 = vmul.f32 %v2332, 0.7978846
    %v2337 = vmul.f32 %v2333, 0.7978846
    %v2338 = vmul.f32 %v2334, 0.7978846
    %v2339 = vtanh.pop %v2335
    %v2340 = vtanh.pop %v2336
    %v2341 = vtanh.pop %v2337
    %v2342 = vtanh.pop %v2338
    %v2343 = vadd.f32 %v2339, 1.0
    %v2344 = vadd.f32 %v2340, 1.0
    %v2345 = vadd.f32 %v2341, 1.0
    %v2346 = vadd.f32 %v2342, 1.0
    %v2347 = vmul.f32 %v2315, %v2343
    %v2348 = vmul.f32 %v2316, %v2344
    %v2349 = vmul.f32 %v2317, %v2345
    %v2350 = vmul.f32 %v2318, %v2346
    %v2351 = vmul.f32 %v720, %v2347
    %v2352 = vmul.f32 %v720, %v2348
    %v2353 = vmul.f32 %v724, %v2349
    %v2354 = vmul.f32 %v724, %v2350
    %v2355 = vadd.f32 %v2351, %v1738
    %v2356 = vadd.f32 %v2352, %v1739
    %v2357 = vadd.f32 %v2353, %v1740
    %v2358 = vadd.f32 %v2354, %v1741
    %v2359 = vadd.f32 %v2355, %v2356
    %v2360 = vadd.f32 %v2359, %v2357
    %v2361 = vadd.f32 %v2360, %v2358
    %2362 = vadd.xlane.f32.xlu0 %v2361
    %v2363 = vpop.xlane.xlu0 %2362
    %v2364 = vrot.slane %v2363, 4
    %v2365 = vadd.f32 %v2363, %v2364
    %v2366 = vrot.slane %v2365, 2
    %v2367 = vadd.f32 %v2365, %v2366
    %v2368 = vrot.slane %v2367, 1
    %v2369 = vadd.f32 %v2367, %v2368
    %s2370 = vtos %v2369
    %v2371 = vstv %s2370
    %v2372 = vmul.f32 %v2371, %v61
    %v2373 = vsub.f32 %v2355, %v2372
    %v2374 = vsub.f32 %v2356, %v2372
    %v2375 = vsub.f32 %v2357, %v2372
    %v2376 = vsub.f32 %v2358, %v2372
    %v2377 = vmul.f32 %v2373, %v2373
    %v2378 = vmul.f32 %v2374, %v2374
    %v2379 = vmul.f32 %v2375, %v2375
    %v2380 = vmul.f32 %v2376, %v2376
    %v2381 = vadd.f32 %v2377, %v2378
    %v2382 = vadd.f32 %v2381, %v2379
    %v2383 = vadd.f32 %v2382, %v2380
    %2384 = vadd.xlane.f32.xlu0 %v2383
    %v2385 = vpop.xlane.xlu0 %2384
    %v2386 = vrot.slane %v2385, 4
    %v2387 = vadd.f32 %v2385, %v2386
    %v2388 = vrot.slane %v2387, 2
    %v2389 = vadd.f32 %v2387, %v2388
    %v2390 = vrot.slane %v2389, 1
    %v2391 = vadd.f32 %v2389, %v2390
    %s2392 = vtos %v2391
    %v2393 = vstv %s2392
    %v2394 = vmul.f32 %v2393, %v61
    %v2395 = vadd.f32 %v2394, 1e-05
    %v2396 = vrsqrt.pop %v2395
    %v2397 = vmul.f32 %v2396, %v2395
    %v2398 = vmul.f32 %v2397, %v2396
    %v2399 = vmul.f32 0.5, %v2398
    %v2400 = vsub.f32 1.5, %v2399
    %v2401 = vmul.f32 %v2396, %v2400
    %vm2402 = vweird.f32 %v2395
    %vm2403 = vweird.f32 %v2396
    %vm2404 = vmor %vm2402, %vm2403
    %v2405 = vsel %vm2404, %v2396, %v2401
    %v2406 = vmul.f32 %v28, %v2405
    %v2407 = vmul.f32 %v29, %v2405
    %2409 = vset.pattern.permute.xlu0 3
    %2410 = vperm.xlu0 %2409, %v2406
    %v2411 = vpop.permute.xlu0 %2410
    %2414 = vset.pattern.permute.xlu0 3
    %2415 = vperm.xlu0 %2414, %v2407
    %v2416 = vpop.permute.xlu0 %2415
    %v2418 = vmul.f32 %v2373, %v2411
    %v2419 = vmul.f32 %v2374, %v2411
    %v2420 = vmul.f32 %v2375, %v2416
    %v2421 = vmul.f32 %v2376, %v2416
    %v2422 = vadd.f32 %v2418, %v799
    %v2423 = vadd.f32 %v2419, %v799
    %v2424 = vadd.f32 %v2420, %v803
    %v2425 = vadd.f32 %v2421, %v803
    %v2426 = vld [vmem:[%s5] sm:$0xf]
    %v2427 = vld [vmem:[%s5 + $0x4] sm:$0xf]
    %v2428 = vld [vmem:[%s5 + $0x8] sm:$0xf]
    %v2429 = vld [vmem:[%s5 + $0xc] sm:$0xf]
    %v2430 = vld [vmem:[%s5 + $0x10] sm:$0xf]
    %v2431 = vld [vmem:[%s5 + $0x14] sm:$0xf]
    %v2432 = vld [vmem:[%s5 + $0x18] sm:$0xf]
    %v2433 = vld [vmem:[%s5 + $0x1c] sm:$0xf]
    %v2434 = vpack.c.bf16 %v2424, %v2422
    %v2435 = vpack.c.bf16 %v2425, %v2423
    %v2444 = vunpack.c.l.b16 %v2426
    %v2445 = vunpack.c.l.b16 %v2427
    %v2446 = vunpack.c.l.b16 %v2428
    %v2447 = vunpack.c.l.b16 %v2429
    %v2448 = vunpack.c.l.b16 %v2430
    %v2449 = vunpack.c.l.b16 %v2431
    %v2450 = vunpack.c.l.b16 %v2432
    %v2451 = vunpack.c.l.b16 %v2433
    %v2452 = vpack.c.b16 %v2445, %v2444
    %v2453 = vpack.c.b16 %v2447, %v2446
    %v2454 = vpack.c.b16 %v2449, %v2448
    %v2455 = vpack.c.b16 %v2451, %v2450
    %v2457 = vsel %vm196, %v2452, 0
    %v2460 = vsel %vm196, %v2453, 0
    %v2463 = vsel %vm196, %v2454, 0
    %v2466 = vsel %vm196, %v2455, 0
    %2468 = vmatpush.bf16.msra.mxu0 0
    %2469 = vmatpush.bf16.msra.mxu0 0
    %2470 = vmatpush.bf16.msra.mxu0 0
    %2471 = vmatpush.bf16.msra.mxu0 0
    %2472 = vmatpush.bf16.msra.mxu0 0
    %2473 = vmatpush.bf16.msra.mxu0 0
    %2474 = vmatpush.bf16.msra.mxu0 0
    %2475 = vmatpush.bf16.msra.mxu0 %v2434
    %2476 = vmatmul.bf16.gmra.mxu0 %v2457
    %v2477 = vpop.f32.mrf.mxu0
    %v2478 = vadd.f32 %v821, %v2477
    %v2479 = vpop.f32.mrf.mxu0
    %v2480 = vadd.f32 %v825, %v2479
    %2481 = vmatmul.bf16.gmra.mxu0 %v2460
    %v2482 = vpop.f32.mrf.mxu0
    %v2483 = vadd.f32 %v829, %v2482
    %v2484 = vpop.f32.mrf.mxu0
    %v2485 = vadd.f32 %v833, %v2484
    %2486 = vmatmul.bf16.gmra.mxu0 %v2463
    %v2487 = vpop.f32.mrf.mxu0
    %v2488 = vadd.f32 %v837, %v2487
    %v2489 = vpop.f32.mrf.mxu0
    %v2490 = vadd.f32 %v841, %v2489
    %2491 = vmatmul.bf16.gmra.mxu0 %v2466
    %v2492 = vpop.f32.mrf.mxu0
    %v2493 = vadd.f32 %v845, %v2492
    %v2494 = vpop.f32.mrf.mxu0
    %v2495 = vadd.f32 %v849, %v2494
    %2496 = vdwg.mxu0
    %2497 = vmatpush.bf16.msra.mxu0 0
    %2498 = vmatpush.bf16.msra.mxu0 0
    %2499 = vmatpush.bf16.msra.mxu0 0
    %2500 = vmatpush.bf16.msra.mxu0 0
    %2501 = vmatpush.bf16.msra.mxu0 0
    %2502 = vmatpush.bf16.msra.mxu0 0
    %2503 = vmatpush.bf16.msra.mxu0 0
    %2504 = vmatpush.bf16.msra.mxu0 %v2435
    %2505 = vmatmul.bf16.gmra.mxu0 %v2457
    %v2506 = vpop.f32.mrf.mxu0
    %v2507 = vadd.f32 %v821, %v2506
    %v2508 = vpop.f32.mrf.mxu0
    %v2509 = vadd.f32 %v825, %v2508
    %2510 = vmatmul.bf16.gmra.mxu0 %v2460
    %v2511 = vpop.f32.mrf.mxu0
    %v2512 = vadd.f32 %v829, %v2511
    %v2513 = vpop.f32.mrf.mxu0
    %v2514 = vadd.f32 %v833, %v2513
    %2515 = vmatmul.bf16.gmra.mxu0 %v2463
    %v2516 = vpop.f32.mrf.mxu0
    %v2517 = vadd.f32 %v837, %v2516
    %v2518 = vpop.f32.mrf.mxu0
    %v2519 = vadd.f32 %v841, %v2518
    %2520 = vmatmul.bf16.gmra.mxu0 %v2466
    %v2521 = vpop.f32.mrf.mxu0
    %v2522 = vadd.f32 %v845, %v2521
    %v2523 = vpop.f32.mrf.mxu0
    %v2524 = vadd.f32 %v849, %v2523
    %2525 = vdwg.mxu0
    %v2526 = vmul.f32 %v2478, 0.5
    %v2527 = vmul.f32 %v2507, 0.5
    %v2528 = vmul.f32 %v2480, 0.5
    %v2529 = vmul.f32 %v2509, 0.5
    %v2530 = vmul.f32 %v2483, 0.5
    %v2531 = vmul.f32 %v2512, 0.5
    %v2532 = vmul.f32 %v2485, 0.5
    %v2533 = vmul.f32 %v2514, 0.5
    %v2534 = vmul.f32 %v2488, 0.5
    %v2535 = vmul.f32 %v2517, 0.5
    %v2536 = vmul.f32 %v2490, 0.5
    %v2537 = vmul.f32 %v2519, 0.5
    %v2538 = vmul.f32 %v2493, 0.5
    %v2539 = vmul.f32 %v2522, 0.5
    %v2540 = vmul.f32 %v2495, 0.5
    %v2541 = vmul.f32 %v2524, 0.5
    %v2542 = vmul.f32 %v2478, 0.044715
    %v2543 = vmul.f32 %v2507, 0.044715
    %v2544 = vmul.f32 %v2480, 0.044715
    %v2545 = vmul.f32 %v2509, 0.044715
    %v2546 = vmul.f32 %v2483, 0.044715
    %v2547 = vmul.f32 %v2512, 0.044715
    %v2548 = vmul.f32 %v2485, 0.044715
    %v2549 = vmul.f32 %v2514, 0.044715
    %v2550 = vmul.f32 %v2488, 0.044715
    %v2551 = vmul.f32 %v2517, 0.044715
    %v2552 = vmul.f32 %v2490, 0.044715
    %v2553 = vmul.f32 %v2519, 0.044715
    %v2554 = vmul.f32 %v2493, 0.044715
    %v2555 = vmul.f32 %v2522, 0.044715
    %v2556 = vmul.f32 %v2495, 0.044715
    %v2557 = vmul.f32 %v2524, 0.044715
    %v2558 = vmul.f32 %v2542, %v2478
    %v2559 = vmul.f32 %v2543, %v2507
    %v2560 = vmul.f32 %v2544, %v2480
    %v2561 = vmul.f32 %v2545, %v2509
    %v2562 = vmul.f32 %v2546, %v2483
    %v2563 = vmul.f32 %v2547, %v2512
    %v2564 = vmul.f32 %v2548, %v2485
    %v2565 = vmul.f32 %v2549, %v2514
    %v2566 = vmul.f32 %v2550, %v2488
    %v2567 = vmul.f32 %v2551, %v2517
    %v2568 = vmul.f32 %v2552, %v2490
    %v2569 = vmul.f32 %v2553, %v2519
    %v2570 = vmul.f32 %v2554, %v2493
    %v2571 = vmul.f32 %v2555, %v2522
    %v2572 = vmul.f32 %v2556, %v2495
    %v2573 = vmul.f32 %v2557, %v2524
    %v2574 = vmul.f32 %v2558, %v2478
    %v2575 = vmul.f32 %v2559, %v2507
    %v2576 = vmul.f32 %v2560, %v2480
    %v2577 = vmul.f32 %v2561, %v2509
    %v2578 = vmul.f32 %v2562, %v2483
    %v2579 = vmul.f32 %v2563, %v2512
    %v2580 = vmul.f32 %v2564, %v2485
    %v2581 = vmul.f32 %v2565, %v2514
    %v2582 = vmul.f32 %v2566, %v2488
    %v2583 = vmul.f32 %v2567, %v2517
    %v2584 = vmul.f32 %v2568, %v2490
    %v2585 = vmul.f32 %v2569, %v2519
    %v2586 = vmul.f32 %v2570, %v2493
    %v2587 = vmul.f32 %v2571, %v2522
    %v2588 = vmul.f32 %v2572, %v2495
    %v2589 = vmul.f32 %v2573, %v2524
    %v2590 = vadd.f32 %v2478, %v2574
    %v2591 = vadd.f32 %v2507, %v2575
    %v2592 = vadd.f32 %v2480, %v2576
    %v2593 = vadd.f32 %v2509, %v2577
    %v2594 = vadd.f32 %v2483, %v2578
    %v2595 = vadd.f32 %v2512, %v2579
    %v2596 = vadd.f32 %v2485, %v2580
    %v2597 = vadd.f32 %v2514, %v2581
    %v2598 = vadd.f32 %v2488, %v2582
    %v2599 = vadd.f32 %v2517, %v2583
    %v2600 = vadd.f32 %v2490, %v2584
    %v2601 = vadd.f32 %v2519, %v2585
    %v2602 = vadd.f32 %v2493, %v2586
    %v2603 = vadd.f32 %v2522, %v2587
    %v2604 = vadd.f32 %v2495, %v2588
    %v2605 = vadd.f32 %v2524, %v2589
    %v2606 = vmul.f32 %v2590, 0.7978846
    %v2607 = vmul.f32 %v2591, 0.7978846
    %v2608 = vmul.f32 %v2592, 0.7978846
    %v2609 = vmul.f32 %v2593, 0.7978846
    %v2610 = vmul.f32 %v2594, 0.7978846
    %v2611 = vmul.f32 %v2595, 0.7978846
    %v2612 = vmul.f32 %v2596, 0.7978846
    %v2613 = vmul.f32 %v2597, 0.7978846
    %v2614 = vmul.f32 %v2598, 0.7978846
    %v2615 = vmul.f32 %v2599, 0.7978846
    %v2616 = vmul.f32 %v2600, 0.7978846
    %v2617 = vmul.f32 %v2601, 0.7978846
    %v2618 = vmul.f32 %v2602, 0.7978846
    %v2619 = vmul.f32 %v2603, 0.7978846
    %v2620 = vmul.f32 %v2604, 0.7978846
    %v2621 = vmul.f32 %v2605, 0.7978846
    %v2622 = vtanh.pop %v2606
    %v2623 = vtanh.pop %v2607
    %v2624 = vtanh.pop %v2608
    %v2625 = vtanh.pop %v2609
    %v2626 = vtanh.pop %v2610
    %v2627 = vtanh.pop %v2611
    %v2628 = vtanh.pop %v2612
    %v2629 = vtanh.pop %v2613
    %v2630 = vtanh.pop %v2614
    %v2631 = vtanh.pop %v2615
    %v2632 = vtanh.pop %v2616
    %v2633 = vtanh.pop %v2617
    %v2634 = vtanh.pop %v2618
    %v2635 = vtanh.pop %v2619
    %v2636 = vtanh.pop %v2620
    %v2637 = vtanh.pop %v2621
    %v2638 = vadd.f32 %v2622, 1.0
    %v2639 = vadd.f32 %v2623, 1.0
    %v2640 = vadd.f32 %v2624, 1.0
    %v2641 = vadd.f32 %v2625, 1.0
    %v2642 = vadd.f32 %v2626, 1.0
    %v2643 = vadd.f32 %v2627, 1.0
    %v2644 = vadd.f32 %v2628, 1.0
    %v2645 = vadd.f32 %v2629, 1.0
    %v2646 = vadd.f32 %v2630, 1.0
    %v2647 = vadd.f32 %v2631, 1.0
    %v2648 = vadd.f32 %v2632, 1.0
    %v2649 = vadd.f32 %v2633, 1.0
    %v2650 = vadd.f32 %v2634, 1.0
    %v2651 = vadd.f32 %v2635, 1.0
    %v2652 = vadd.f32 %v2636, 1.0
    %v2653 = vadd.f32 %v2637, 1.0
    %v2654 = vmul.f32 %v2526, %v2638
    %v2655 = vmul.f32 %v2527, %v2639
    %v2656 = vmul.f32 %v2528, %v2640
    %v2657 = vmul.f32 %v2529, %v2641
    %v2658 = vmul.f32 %v2530, %v2642
    %v2659 = vmul.f32 %v2531, %v2643
    %v2660 = vmul.f32 %v2532, %v2644
    %v2661 = vmul.f32 %v2533, %v2645
    %v2662 = vmul.f32 %v2534, %v2646
    %v2663 = vmul.f32 %v2535, %v2647
    %v2664 = vmul.f32 %v2536, %v2648
    %v2665 = vmul.f32 %v2537, %v2649
    %v2666 = vmul.f32 %v2538, %v2650
    %v2667 = vmul.f32 %v2539, %v2651
    %v2668 = vmul.f32 %v2540, %v2652
    %v2669 = vmul.f32 %v2541, %v2653
    %v2670 = vadd.f32 %v2654, %v2655
    %v2671 = vadd.f32 %v2670, %v2656
    %v2672 = vadd.f32 %v2671, %v2657
    %v2673 = vadd.f32 %v2672, %v2658
    %v2674 = vadd.f32 %v2673, %v2659
    %v2675 = vadd.f32 %v2674, %v2660
    %v2676 = vadd.f32 %v2675, %v2661
    %v2677 = vadd.f32 %v2676, %v2662
    %v2678 = vadd.f32 %v2677, %v2663
    %v2679 = vadd.f32 %v2678, %v2664
    %v2680 = vadd.f32 %v2679, %v2665
    %v2681 = vadd.f32 %v2680, %v2666
    %v2682 = vadd.f32 %v2681, %v2667
    %v2683 = vadd.f32 %v2682, %v2668
    %v2684 = vadd.f32 %v2683, %v2669
    %2685 = vadd.xlane.f32.xlu0 %v2684
    %v2686 = vpop.xlane.xlu0 %2685
    %v2687 = vrot.slane %v2686, 4
    %v2688 = vadd.f32 %v2686, %v2687
    %v2689 = vrot.slane %v2688, 2
    %v2690 = vadd.f32 %v2688, %v2689
    %v2691 = vrot.slane %v2690, 1
    %v2692 = vadd.f32 %v2690, %v2691
    %s2693 = vtos %v2692
    %v2694 = vstv %s2693
    %v2695 = vmul.f32 %v2694, %v1116
    %v2696 = vsub.f32 %v2654, %v2695
    %v2697 = vsub.f32 %v2655, %v2695
    %v2698 = vsub.f32 %v2656, %v2695
    %v2699 = vsub.f32 %v2657, %v2695
    %v2700 = vsub.f32 %v2658, %v2695
    %v2701 = vsub.f32 %v2659, %v2695
    %v2702 = vsub.f32 %v2660, %v2695
    %v2703 = vsub.f32 %v2661, %v2695
    %v2704 = vsub.f32 %v2662, %v2695
    %v2705 = vsub.f32 %v2663, %v2695
    %v2706 = vsub.f32 %v2664, %v2695
    %v2707 = vsub.f32 %v2665, %v2695
    %v2708 = vsub.f32 %v2666, %v2695
    %v2709 = vsub.f32 %v2667, %v2695
    %v2710 = vsub.f32 %v2668, %v2695
    %v2711 = vsub.f32 %v2669, %v2695
    %v2712 = vmul.f32 %v2696, %v2696
    %v2713 = vmul.f32 %v2697, %v2697
    %v2714 = vmul.f32 %v2698, %v2698
    %v2715 = vmul.f32 %v2699, %v2699
    %v2716 = vmul.f32 %v2700, %v2700
    %v2717 = vmul.f32 %v2701, %v2701
    %v2718 = vmul.f32 %v2702, %v2702
    %v2719 = vmul.f32 %v2703, %v2703
    %v2720 = vmul.f32 %v2704, %v2704
    %v2721 = vmul.f32 %v2705, %v2705
    %v2722 = vmul.f32 %v2706, %v2706
    %v2723 = vmul.f32 %v2707, %v2707
    %v2724 = vmul.f32 %v2708, %v2708
    %v2725 = vmul.f32 %v2709, %v2709
    %v2726 = vmul.f32 %v2710, %v2710
    %v2727 = vmul.f32 %v2711, %v2711
    %v2728 = vadd.f32 %v2712, %v2713
    %v2729 = vadd.f32 %v2728, %v2714
    %v2730 = vadd.f32 %v2729, %v2715
    %v2731 = vadd.f32 %v2730, %v2716
    %v2732 = vadd.f32 %v2731, %v2717
    %v2733 = vadd.f32 %v2732, %v2718
    %v2734 = vadd.f32 %v2733, %v2719
    %v2735 = vadd.f32 %v2734, %v2720
    %v2736 = vadd.f32 %v2735, %v2721
    %v2737 = vadd.f32 %v2736, %v2722
    %v2738 = vadd.f32 %v2737, %v2723
    %v2739 = vadd.f32 %v2738, %v2724
    %v2740 = vadd.f32 %v2739, %v2725
    %v2741 = vadd.f32 %v2740, %v2726
    %v2742 = vadd.f32 %v2741, %v2727
    %2743 = vadd.xlane.f32.xlu0 %v2742
    %v2744 = vpop.xlane.xlu0 %2743
    %v2745 = vrot.slane %v2744, 4
    %v2746 = vadd.f32 %v2744, %v2745
    %v2747 = vrot.slane %v2746, 2
    %v2748 = vadd.f32 %v2746, %v2747
    %v2749 = vrot.slane %v2748, 1
    %v2750 = vadd.f32 %v2748, %v2749
    %s2751 = vtos %v2750
    %v2752 = vstv %s2751
    %v2753 = vmul.f32 %v2752, %v1116
    %v2754 = vadd.f32 %v2753, 1e-05
    %v2755 = vrsqrt.pop %v2754
    %v2756 = vmul.f32 %v2755, %v2754
    %v2757 = vmul.f32 %v2756, %v2755
    %v2758 = vmul.f32 0.5, %v2757
    %v2759 = vsub.f32 1.5, %v2758
    %v2760 = vmul.f32 %v2755, %v2759
    %vm2761 = vweird.f32 %v2754
    %vm2762 = vweird.f32 %v2755
    %vm2763 = vmor %vm2761, %vm2762
    %v2764 = vsel %vm2763, %v2755, %v2760
    %v2765 = vmul.f32 %v30, %v2764
    %v2766 = vmul.f32 %v31, %v2764
    %v2767 = vmul.f32 %v32, %v2764
    %v2768 = vmul.f32 %v33, %v2764
    %v2769 = vmul.f32 %v34, %v2764
    %v2770 = vmul.f32 %v35, %v2764
    %v2771 = vmul.f32 %v36, %v2764
    %v2772 = vmul.f32 %v37, %v2764
    %2774 = vset.pattern.permute.xlu0 2
    %2775 = vperm.xlu0 %2774, %v2765
    %v2776 = vpop.permute.xlu0 %2775
    %2779 = vset.pattern.permute.xlu0 2
    %2780 = vperm.xlu0 %2779, %v2766
    %v2781 = vpop.permute.xlu0 %2780
    %2784 = vset.pattern.permute.xlu0 2
    %2785 = vperm.xlu0 %2784, %v2767
    %v2786 = vpop.permute.xlu0 %2785
    %2789 = vset.pattern.permute.xlu0 2
    %2790 = vperm.xlu0 %2789, %v2768
    %v2791 = vpop.permute.xlu0 %2790
    %2794 = vset.pattern.permute.xlu0 2
    %2795 = vperm.xlu0 %2794, %v2769
    %v2796 = vpop.permute.xlu0 %2795
    %2799 = vset.pattern.permute.xlu0 2
    %2800 = vperm.xlu0 %2799, %v2770
    %v2801 = vpop.permute.xlu0 %2800
    %2804 = vset.pattern.permute.xlu0 2
    %2805 = vperm.xlu0 %2804, %v2771
    %v2806 = vpop.permute.xlu0 %2805
    %2809 = vset.pattern.permute.xlu0 2
    %2810 = vperm.xlu0 %2809, %v2772
    %v2811 = vpop.permute.xlu0 %2810
    %v2813 = vmul.f32 %v2696, %v2776
    %v2814 = vmul.f32 %v2697, %v2776
    %v2815 = vmul.f32 %v2698, %v2781
    %v2816 = vmul.f32 %v2699, %v2781
    %v2817 = vmul.f32 %v2700, %v2786
    %v2818 = vmul.f32 %v2701, %v2786
    %v2819 = vmul.f32 %v2702, %v2791
    %v2820 = vmul.f32 %v2703, %v2791
    %v2821 = vmul.f32 %v2704, %v2796
    %v2822 = vmul.f32 %v2705, %v2796
    %v2823 = vmul.f32 %v2706, %v2801
    %v2824 = vmul.f32 %v2707, %v2801
    %v2825 = vmul.f32 %v2708, %v2806
    %v2826 = vmul.f32 %v2709, %v2806
    %v2827 = vmul.f32 %v2710, %v2811
    %v2828 = vmul.f32 %v2711, %v2811
    %v2829 = vadd.f32 %v2813, %v1253
    %v2830 = vadd.f32 %v2814, %v1253
    %v2831 = vadd.f32 %v2815, %v1257
    %v2832 = vadd.f32 %v2816, %v1257
    %v2833 = vadd.f32 %v2817, %v1261
    %v2834 = vadd.f32 %v2818, %v1261
    %v2835 = vadd.f32 %v2819, %v1265
    %v2836 = vadd.f32 %v2820, %v1265
    %v2837 = vadd.f32 %v2821, %v1269
    %v2838 = vadd.f32 %v2822, %v1269
    %v2839 = vadd.f32 %v2823, %v1273
    %v2840 = vadd.f32 %v2824, %v1273
    %v2841 = vadd.f32 %v2825, %v1277
    %v2842 = vadd.f32 %v2826, %v1277
    %v2843 = vadd.f32 %v2827, %v1281
    %v2844 = vadd.f32 %v2828, %v1281
    %v2845 = vpack.c.bf16 %v2830, %v2829
    %v2846 = vpack.c.bf16 %v2832, %v2831
    %v2847 = vpack.c.bf16 %v2834, %v2833
    %v2848 = vpack.c.bf16 %v2836, %v2835
    %v2849 = vpack.c.bf16 %v2838, %v2837
    %v2850 = vpack.c.bf16 %v2840, %v2839
    %v2851 = vpack.c.bf16 %v2842, %v2841
    %v2852 = vpack.c.bf16 %v2844, %v2843
    %v2853 = vunpack.c.l.bf16 %v2845
    %v2854 = vunpack.c.h.bf16 %v2845
    %v2855 = vunpack.c.l.bf16 %v2846
    %v2856 = vunpack.c.h.bf16 %v2846
    %v2857 = vunpack.c.l.bf16 %v2847
    %v2858 = vunpack.c.h.bf16 %v2847
    %v2859 = vunpack.c.l.bf16 %v2848
    %v2860 = vunpack.c.h.bf16 %v2848
    %v2861 = vunpack.c.l.bf16 %v2849
    %v2862 = vunpack.c.h.bf16 %v2849
    %v2863 = vunpack.c.l.bf16 %v2850
    %v2864 = vunpack.c.h.bf16 %v2850
    %v2865 = vunpack.c.l.bf16 %v2851
    %v2866 = vunpack.c.h.bf16 %v2851
    %v2867 = vunpack.c.l.bf16 %v2852
    %v2868 = vunpack.c.h.bf16 %v2852
    %v2869 = vmul.f32 %v2853, 0.5
    %v2870 = vmul.f32 %v2854, 0.5
    %v2871 = vmul.f32 %v2855, 0.5
    %v2872 = vmul.f32 %v2856, 0.5
    %v2873 = vmul.f32 %v2857, 0.5
    %v2874 = vmul.f32 %v2858, 0.5
    %v2875 = vmul.f32 %v2859, 0.5
    %v2876 = vmul.f32 %v2860, 0.5
    %v2877 = vmul.f32 %v2861, 0.5
    %v2878 = vmul.f32 %v2862, 0.5
    %v2879 = vmul.f32 %v2863, 0.5
    %v2880 = vmul.f32 %v2864, 0.5
    %v2881 = vmul.f32 %v2865, 0.5
    %v2882 = vmul.f32 %v2866, 0.5
    %v2883 = vmul.f32 %v2867, 0.5
    %v2884 = vmul.f32 %v2868, 0.5
    %v2885 = vpack.c.bf16 %v2870, %v2869
    %v2886 = vpack.c.bf16 %v2872, %v2871
    %v2887 = vpack.c.bf16 %v2874, %v2873
    %v2888 = vpack.c.bf16 %v2876, %v2875
    %v2889 = vpack.c.bf16 %v2878, %v2877
    %v2890 = vpack.c.bf16 %v2880, %v2879
    %v2891 = vpack.c.bf16 %v2882, %v2881
    %v2892 = vpack.c.bf16 %v2884, %v2883
    %v2893 = vmul.f32 %v2853, 0.044677734
    %v2894 = vmul.f32 %v2854, 0.044677734
    %v2895 = vmul.f32 %v2855, 0.044677734
    %v2896 = vmul.f32 %v2856, 0.044677734
    %v2897 = vmul.f32 %v2857, 0.044677734
    %v2898 = vmul.f32 %v2858, 0.044677734
    %v2899 = vmul.f32 %v2859, 0.044677734
    %v2900 = vmul.f32 %v2860, 0.044677734
    %v2901 = vmul.f32 %v2861, 0.044677734
    %v2902 = vmul.f32 %v2862, 0.044677734
    %v2903 = vmul.f32 %v2863, 0.044677734
    %v2904 = vmul.f32 %v2864, 0.044677734
    %v2905 = vmul.f32 %v2865, 0.044677734
    %v2906 = vmul.f32 %v2866, 0.044677734
    %v2907 = vmul.f32 %v2867, 0.044677734
    %v2908 = vmul.f32 %v2868, 0.044677734
    %v2909 = vpack.c.bf16 %v2894, %v2893
    %v2910 = vpack.c.bf16 %v2896, %v2895
    %v2911 = vpack.c.bf16 %v2898, %v2897
    %v2912 = vpack.c.bf16 %v2900, %v2899
    %v2913 = vpack.c.bf16 %v2902, %v2901
    %v2914 = vpack.c.bf16 %v2904, %v2903
    %v2915 = vpack.c.bf16 %v2906, %v2905
    %v2916 = vpack.c.bf16 %v2908, %v2907
    %v2917 = vunpack.c.l.bf16 %v2909
    %v2918 = vunpack.c.h.bf16 %v2909
    %v2919 = vunpack.c.l.bf16 %v2910
    %v2920 = vunpack.c.h.bf16 %v2910
    %v2921 = vunpack.c.l.bf16 %v2911
    %v2922 = vunpack.c.h.bf16 %v2911
    %v2923 = vunpack.c.l.bf16 %v2912
    %v2924 = vunpack.c.h.bf16 %v2912
    %v2925 = vunpack.c.l.bf16 %v2913
    %v2926 = vunpack.c.h.bf16 %v2913
    %v2927 = vunpack.c.l.bf16 %v2914
    %v2928 = vunpack.c.h.bf16 %v2914
    %v2929 = vunpack.c.l.bf16 %v2915
    %v2930 = vunpack.c.h.bf16 %v2915
    %v2931 = vunpack.c.l.bf16 %v2916
    %v2932 = vunpack.c.h.bf16 %v2916
    %v2933 = vmul.f32 %v2917, %v2853
    %v2934 = vmul.f32 %v2918, %v2854
    %v2935 = vmul.f32 %v2919, %v2855
    %v2936 = vmul.f32 %v2920, %v2856
    %v2937 = vmul.f32 %v2921, %v2857
    %v2938 = vmul.f32 %v2922, %v2858
    %v2939 = vmul.f32 %v2923, %v2859
    %v2940 = vmul.f32 %v2924, %v2860
    %v2941 = vmul.f32 %v2925, %v2861
    %v2942 = vmul.f32 %v2926, %v2862
    %v2943 = vmul.f32 %v2927, %v2863
    %v2944 = vmul.f32 %v2928, %v2864
    %v2945 = vmul.f32 %v2929, %v2865
    %v2946 = vmul.f32 %v2930, %v2866
    %v2947 = vmul.f32 %v2931, %v2867
    %v2948 = vmul.f32 %v2932, %v2868
    %v2949 = vpack.c.bf16 %v2934, %v2933
    %v2950 = vpack.c.bf16 %v2936, %v2935
    %v2951 = vpack.c.bf16 %v2938, %v2937
    %v2952 = vpack.c.bf16 %v2940, %v2939
    %v2953 = vpack.c.bf16 %v2942, %v2941
    %v2954 = vpack.c.bf16 %v2944, %v2943
    %v2955 = vpack.c.bf16 %v2946, %v2945
    %v2956 = vpack.c.bf16 %v2948, %v2947
    %v2957 = vunpack.c.l.bf16 %v2949
    %v2958 = vunpack.c.h.bf16 %v2949
    %v2959 = vunpack.c.l.bf16 %v2950
    %v2960 = vunpack.c.h.bf16 %v2950
    %v2961 = vunpack.c.l.bf16 %v2951
    %v2962 = vunpack.c.h.bf16 %v2951
    %v2963 = vunpack.c.l.bf16 %v2952
    %v2964 = vunpack.c.h.bf16 %v2952
    %v2965 = vunpack.c.l.bf16 %v2953
    %v2966 = vunpack.c.h.bf16 %v2953
    %v2967 = vunpack.c.l.bf16 %v2954
    %v2968 = vunpack.c.h.bf16 %v2954
    %v2969 = vunpack.c.l.bf16 %v2955
    %v2970 = vunpack.c.h.bf16 %v2955
    %v2971 = vunpack.c.l.bf16 %v2956
    %v2972 = vunpack.c.h.bf16 %v2956
    %v2973 = vmul.f32 %v2957, %v2853
    %v2974 = vmul.f32 %v2958, %v2854
    %v2975 = vmul.f32 %v2959, %v2855
    %v2976 = vmul.f32 %v2960, %v2856
    %v2977 = vmul.f32 %v2961, %v2857
    %v2978 = vmul.f32 %v2962, %v2858
    %v2979 = vmul.f32 %v2963, %v2859
    %v2980 = vmul.f32 %v2964, %v2860
    %v2981 = vmul.f32 %v2965, %v2861
    %v2982 = vmul.f32 %v2966, %v2862
    %v2983 = vmul.f32 %v2967, %v2863
    %v2984 = vmul.f32 %v2968, %v2864
    %v2985 = vmul.f32 %v2969, %v2865
    %v2986 = vmul.f32 %v2970, %v2866
    %v2987 = vmul.f32 %v2971, %v2867
    %v2988 = vmul.f32 %v2972, %v2868
    %v2989 = vpack.c.bf16 %v2974, %v2973
    %v2990 = vpack.c.bf16 %v2976, %v2975
    %v2991 = vpack.c.bf16 %v2978, %v2977
    %v2992 = vpack.c.bf16 %v2980, %v2979
    %v2993 = vpack.c.bf16 %v2982, %v2981
    %v2994 = vpack.c.bf16 %v2984, %v2983
    %v2995 = vpack.c.bf16 %v2986, %v2985
    %v2996 = vpack.c.bf16 %v2988, %v2987
    %v2997 = vunpack.c.l.bf16 %v2989
    %v2998 = vunpack.c.h.bf16 %v2989
    %v2999 = vunpack.c.l.bf16 %v2990
    %v3000 = vunpack.c.h.bf16 %v2990
    %v3001 = vunpack.c.l.bf16 %v2991
    %v3002 = vunpack.c.h.bf16 %v2991
    %v3003 = vunpack.c.l.bf16 %v2992
    %v3004 = vunpack.c.h.bf16 %v2992
    %v3005 = vunpack.c.l.bf16 %v2993
    %v3006 = vunpack.c.h.bf16 %v2993
    %v3007 = vunpack.c.l.bf16 %v2994
    %v3008 = vunpack.c.h.bf16 %v2994
    %v3009 = vunpack.c.l.bf16 %v2995
    %v3010 = vunpack.c.h.bf16 %v2995
    %v3011 = vunpack.c.l.bf16 %v2996
    %v3012 = vunpack.c.h.bf16 %v2996
    %v3013 = vadd.f32 %v2853, %v2997
    %v3014 = vadd.f32 %v2854, %v2998
    %v3015 = vadd.f32 %v2855, %v2999
    %v3016 = vadd.f32 %v2856, %v3000
    %v3017 = vadd.f32 %v2857, %v3001
    %v3018 = vadd.f32 %v2858, %v3002
    %v3019 = vadd.f32 %v2859, %v3003
    %v3020 = vadd.f32 %v2860, %v3004
    %v3021 = vadd.f32 %v2861, %v3005
    %v3022 = vadd.f32 %v2862, %v3006
    %v3023 = vadd.f32 %v2863, %v3007
    %v3024 = vadd.f32 %v2864, %v3008
    %v3025 = vadd.f32 %v2865, %v3009
    %v3026 = vadd.f32 %v2866, %v3010
    %v3027 = vadd.f32 %v2867, %v3011
    %v3028 = vadd.f32 %v2868, %v3012
    %v3029 = vpack.c.bf16 %v3014, %v3013
    %v3030 = vpack.c.bf16 %v3016, %v3015
    %v3031 = vpack.c.bf16 %v3018, %v3017
    %v3032 = vpack.c.bf16 %v3020, %v3019
    %v3033 = vpack.c.bf16 %v3022, %v3021
    %v3034 = vpack.c.bf16 %v3024, %v3023
    %v3035 = vpack.c.bf16 %v3026, %v3025
    %v3036 = vpack.c.bf16 %v3028, %v3027
    %v3037 = vunpack.c.l.bf16 %v3029
    %v3038 = vunpack.c.h.bf16 %v3029
    %v3039 = vunpack.c.l.bf16 %v3030
    %v3040 = vunpack.c.h.bf16 %v3030
    %v3041 = vunpack.c.l.bf16 %v3031
    %v3042 = vunpack.c.h.bf16 %v3031
    %v3043 = vunpack.c.l.bf16 %v3032
    %v3044 = vunpack.c.h.bf16 %v3032
    %v3045 = vunpack.c.l.bf16 %v3033
    %v3046 = vunpack.c.h.bf16 %v3033
    %v3047 = vunpack.c.l.bf16 %v3034
    %v3048 = vunpack.c.h.bf16 %v3034
    %v3049 = vunpack.c.l.bf16 %v3035
    %v3050 = vunpack.c.h.bf16 %v3035
    %v3051 = vunpack.c.l.bf16 %v3036
    %v3052 = vunpack.c.h.bf16 %v3036
    %v3053 = vmul.f32 %v3037, 0.796875
    %v3054 = vmul.f32 %v3038, 0.796875
    %v3055 = vmul.f32 %v3039, 0.796875
    %v3056 = vmul.f32 %v3040, 0.796875
    %v3057 = vmul.f32 %v3041, 0.796875
    %v3058 = vmul.f32 %v3042, 0.796875
    %v3059 = vmul.f32 %v3043, 0.796875
    %v3060 = vmul.f32 %v3044, 0.796875
    %v3061 = vmul.f32 %v3045, 0.796875
    %v3062 = vmul.f32 %v3046, 0.796875
    %v3063 = vmul.f32 %v3047, 0.796875
    %v3064 = vmul.f32 %v3048, 0.796875
    %v3065 = vmul.f32 %v3049, 0.796875
    %v3066 = vmul.f32 %v3050, 0.796875
    %v3067 = vmul.f32 %v3051, 0.796875
    %v3068 = vmul.f32 %v3052, 0.796875
    %v3069 = vpack.c.bf16 %v3054, %v3053
    %v3070 = vpack.c.bf16 %v3056, %v3055
    %v3071 = vpack.c.bf16 %v3058, %v3057
    %v3072 = vpack.c.bf16 %v3060, %v3059
    %v3073 = vpack.c.bf16 %v3062, %v3061
    %v3074 = vpack.c.bf16 %v3064, %v3063
    %v3075 = vpack.c.bf16 %v3066, %v3065
    %v3076 = vpack.c.bf16 %v3068, %v3067
    %v3077 = vunpack.c.l.bf16 %v3069
    %v3078 = vunpack.c.h.bf16 %v3069
    %v3079 = vunpack.c.l.bf16 %v3070
    %v3080 = vunpack.c.h.bf16 %v3070
    %v3081 = vunpack.c.l.bf16 %v3071
    %v3082 = vunpack.c.h.bf16 %v3071
    %v3083 = vunpack.c.l.bf16 %v3072
    %v3084 = vunpack.c.h.bf16 %v3072
    %v3085 = vunpack.c.l.bf16 %v3073
    %v3086 = vunpack.c.h.bf16 %v3073
    %v3087 = vunpack.c.l.bf16 %v3074
    %v3088 = vunpack.c.h.bf16 %v3074
    %v3089 = vunpack.c.l.bf16 %v3075
    %v3090 = vunpack.c.h.bf16 %v3075
    %v3091 = vunpack.c.l.bf16 %v3076
    %v3092 = vunpack.c.h.bf16 %v3076
    %v3093 = vtanh.pop %v3077
    %v3094 = vtanh.pop %v3078
    %v3095 = vtanh.pop %v3079
    %v3096 = vtanh.pop %v3080
    %v3097 = vtanh.pop %v3081
    %v3098 = vtanh.pop %v3082
    %v3099 = vtanh.pop %v3083
    %v3100 = vtanh.pop %v3084
    %v3101 = vtanh.pop %v3085
    %v3102 = vtanh.pop %v3086
    %v3103 = vtanh.pop %v3087
    %v3104 = vtanh.pop %v3088
    %v3105 = vtanh.pop %v3089
    %v3106 = vtanh.pop %v3090
    %v3107 = vtanh.pop %v3091
    %v3108 = vtanh.pop %v3092
    %v3109 = vpack.c.bf16 %v3094, %v3093
    %v3110 = vpack.c.bf16 %v3096, %v3095
    %v3111 = vpack.c.bf16 %v3098, %v3097
    %v3112 = vpack.c.bf16 %v3100, %v3099
    %v3113 = vpack.c.bf16 %v3102, %v3101
    %v3114 = vpack.c.bf16 %v3104, %v3103
    %v3115 = vpack.c.bf16 %v3106, %v3105
    %v3116 = vpack.c.bf16 %v3108, %v3107
    %v3117 = vunpack.c.l.bf16 %v3109
    %v3118 = vunpack.c.h.bf16 %v3109
    %v3119 = vunpack.c.l.bf16 %v3110
    %v3120 = vunpack.c.h.bf16 %v3110
    %v3121 = vunpack.c.l.bf16 %v3111
    %v3122 = vunpack.c.h.bf16 %v3111
    %v3123 = vunpack.c.l.bf16 %v3112
    %v3124 = vunpack.c.h.bf16 %v3112
    %v3125 = vunpack.c.l.bf16 %v3113
    %v3126 = vunpack.c.h.bf16 %v3113
    %v3127 = vunpack.c.l.bf16 %v3114
    %v3128 = vunpack.c.h.bf16 %v3114
    %v3129 = vunpack.c.l.bf16 %v3115
    %v3130 = vunpack.c.h.bf16 %v3115
    %v3131 = vunpack.c.l.bf16 %v3116
    %v3132 = vunpack.c.h.bf16 %v3116
    %v3133 = vadd.f32 %v3117, 1.0
    %v3134 = vadd.f32 %v3118, 1.0
    %v3135 = vadd.f32 %v3119, 1.0
    %v3136 = vadd.f32 %v3120, 1.0
    %v3137 = vadd.f32 %v3121, 1.0
    %v3138 = vadd.f32 %v3122, 1.0
    %v3139 = vadd.f32 %v3123, 1.0
    %v3140 = vadd.f32 %v3124, 1.0
    %v3141 = vadd.f32 %v3125, 1.0
    %v3142 = vadd.f32 %v3126, 1.0
    %v3143 = vadd.f32 %v3127, 1.0
    %v3144 = vadd.f32 %v3128, 1.0
    %v3145 = vadd.f32 %v3129, 1.0
    %v3146 = vadd.f32 %v3130, 1.0
    %v3147 = vadd.f32 %v3131, 1.0
    %v3148 = vadd.f32 %v3132, 1.0
    %v3149 = vpack.c.bf16 %v3134, %v3133
    %v3150 = vpack.c.bf16 %v3136, %v3135
    %v3151 = vpack.c.bf16 %v3138, %v3137
    %v3152 = vpack.c.bf16 %v3140, %v3139
    %v3153 = vpack.c.bf16 %v3142, %v3141
    %v3154 = vpack.c.bf16 %v3144, %v3143
    %v3155 = vpack.c.bf16 %v3146, %v3145
    %v3156 = vpack.c.bf16 %v3148, %v3147
    %v3157 = vunpack.c.l.bf16 %v2885
    %v3158 = vunpack.c.h.bf16 %v2885
    %v3159 = vunpack.c.l.bf16 %v2886
    %v3160 = vunpack.c.h.bf16 %v2886
    %v3161 = vunpack.c.l.bf16 %v2887
    %v3162 = vunpack.c.h.bf16 %v2887
    %v3163 = vunpack.c.l.bf16 %v2888
    %v3164 = vunpack.c.h.bf16 %v2888
    %v3165 = vunpack.c.l.bf16 %v2889
    %v3166 = vunpack.c.h.bf16 %v2889
    %v3167 = vunpack.c.l.bf16 %v2890
    %v3168 = vunpack.c.h.bf16 %v2890
    %v3169 = vunpack.c.l.bf16 %v2891
    %v3170 = vunpack.c.h.bf16 %v2891
    %v3171 = vunpack.c.l.bf16 %v2892
    %v3172 = vunpack.c.h.bf16 %v2892
    %v3173 = vunpack.c.l.bf16 %v3149
    %v3174 = vunpack.c.h.bf16 %v3149
    %v3175 = vunpack.c.l.bf16 %v3150
    %v3176 = vunpack.c.h.bf16 %v3150
    %v3177 = vunpack.c.l.bf16 %v3151
    %v3178 = vunpack.c.h.bf16 %v3151
    %v3179 = vunpack.c.l.bf16 %v3152
    %v3180 = vunpack.c.h.bf16 %v3152
    %v3181 = vunpack.c.l.bf16 %v3153
    %v3182 = vunpack.c.h.bf16 %v3153
    %v3183 = vunpack.c.l.bf16 %v3154
    %v3184 = vunpack.c.h.bf16 %v3154
    %v3185 = vunpack.c.l.bf16 %v3155
    %v3186 = vunpack.c.h.bf16 %v3155
    %v3187 = vunpack.c.l.bf16 %v3156
    %v3188 = vunpack.c.h.bf16 %v3156
    %v3189 = vmul.f32 %v3157, %v3173
    %v3190 = vmul.f32 %v3158, %v3174
    %v3191 = vmul.f32 %v3159, %v3175
    %v3192 = vmul.f32 %v3160, %v3176
    %v3193 = vmul.f32 %v3161, %v3177
    %v3194 = vmul.f32 %v3162, %v3178
    %v3195 = vmul.f32 %v3163, %v3179
    %v3196 = vmul.f32 %v3164, %v3180
    %v3197 = vmul.f32 %v3165, %v3181
    %v3198 = vmul.f32 %v3166, %v3182
    %v3199 = vmul.f32 %v3167, %v3183
    %v3200 = vmul.f32 %v3168, %v3184
    %v3201 = vmul.f32 %v3169, %v3185
    %v3202 = vmul.f32 %v3170, %v3186
    %v3203 = vmul.f32 %v3171, %v3187
    %v3204 = vmul.f32 %v3172, %v3188
    %v3205 = vpack.c.bf16 %v3191, %v3189
    %v3206 = vpack.c.bf16 %v3192, %v3190
    %v3207 = vpack.c.bf16 %v3195, %v3193
    %v3208 = vpack.c.bf16 %v3196, %v3194
    %v3209 = vpack.c.bf16 %v3199, %v3197
    %v3210 = vpack.c.bf16 %v3200, %v3198
    %v3211 = vpack.c.bf16 %v3203, %v3201
    %v3212 = vpack.c.bf16 %v3204, %v3202
    %v3213 = vld [vmem:[%s6] sm:$0xf]
    %v3214 = vld [vmem:[%s6 + $0x4] sm:$0xf]
    %v3217 = vunpack.c.l.b16 %v3213
    %v3218 = vunpack.c.l.b16 %v3214
    %v3219 = vpack.c.b16 %v3218, %v3217
    %v3221 = vsel %vm650, %v3219, 0
    %3223 = vmatpush.bf16.msra.mxu0 0
    %3224 = vmatpush.bf16.msra.mxu0 0
    %3225 = vmatpush.bf16.msra.mxu0 0
    %3226 = vmatpush.bf16.msra.mxu0 0
    %3227 = vmatpush.bf16.msra.mxu0 %v3211
    %3228 = vmatpush.bf16.msra.mxu0 %v3209
    %3229 = vmatpush.bf16.msra.mxu0 %v3207
    %3230 = vmatpush.bf16.msra.mxu0 %v3205
    %3231 = vmatmul.bf16.gmra.mxu0 %v3221
    %v3232 = vpop.f32.mrf.mxu0
    %v3233 = vadd.f32 %v1671, %v3232
    %v3234 = vpop.f32.mrf.mxu0
    %v3235 = vadd.f32 %v1675, %v3234
    %3236 = vdwg.mxu0
    %3237 = vmatpush.bf16.msra.mxu0 0
    %3238 = vmatpush.bf16.msra.mxu0 0
    %3239 = vmatpush.bf16.msra.mxu0 0
    %3240 = vmatpush.bf16.msra.mxu0 0
    %3241 = vmatpush.bf16.msra.mxu0 %v3212
    %3242 = vmatpush.bf16.msra.mxu0 %v3210
    %3243 = vmatpush.bf16.msra.mxu0 %v3208
    %3244 = vmatpush.bf16.msra.mxu0 %v3206
    %3245 = vmatmul.bf16.gmra.mxu0 %v3221
    %v3246 = vpop.f32.mrf.mxu0
    %v3247 = vadd.f32 %v1671, %v3246
    %v3248 = vpop.f32.mrf.mxu0
    %v3249 = vadd.f32 %v1675, %v3248
    %3250 = vdwg.mxu0
    %v3251 = vmul.f32 %v1715, %v2355
    %v3252 = vmul.f32 %v1715, %v2356
    %v3253 = vmul.f32 %v1719, %v2357
    %v3254 = vmul.f32 %v1719, %v2358
    %v3255 = vadd.f32 %v3233, %v3251
    %v3256 = vadd.f32 %v3247, %v3252
    %v3257 = vadd.f32 %v3235, %v3253
    %v3258 = vadd.f32 %v3249, %v3254
    %v3259 = vadd.f32 %v3255, %v1738
    %v3260 = vadd.f32 %v3256, %v1739
    %v3261 = vadd.f32 %v3257, %v1740
    %v3262 = vadd.f32 %v3258, %v1741
    %s3263 = scalar_lea.vmem [#allocation2], 32
    %3264 = vst [vmem:[%s3263] sm:$0xff] %v3259
    %3265 = vst [vmem:[%s3263 + $0x8] sm:$0xff] %v3260
    %3266 = vst [vmem:[%s3263 + $0x10] sm:$0xff] %v3261
    %3267 = vst [vmem:[%s3263 + $0x18] sm:$0xff] %v3262
    // Predicated region
    $region30: #{tpu_custom_call.1} parent=1 // pred_check
      _
    $region31: #{tpu_custom_call.1} parent=1 // pred_check_branch
      %3269 = sbr.rel (0) target = $region33
    $region32: #{tpu_custom_call.1} parent=1 // pred_region
      %3271 = vsyncadd [#allocation3], 0
      %s3272 = sshll.u32 [#allocation2], 4
      %s3273 = int_to_ptr.vmem [resolvable:$true] %s3272
      %s3274 = sshll.u32 %s7, 4
      %s3275 = int_to_ptr.hbm [resolvable:$true] %s3274
      %3280 = dma.vmem_to_hbm [thread:$0]  %s3273, 1024, %s3275, [#allocation3], 256, 256, 16
    $region33: #{tpu_custom_call.1} parent=1 // pred_fallthru
      _
    // Predicated region
    $region34: #{tpu_custom_call.1} parent=1 // pred_check
      _
    $region35: #{tpu_custom_call.1} parent=1 // pred_check_branch
      %3282 = sbr.rel (0) target = $region37
    $region36: #{tpu_custom_call.1} parent=1 // pred_region
      %3284 = dma.done [#allocation3], 1024
    $region37: #{tpu_custom_call.1} parent=1 // pred_fallthru
      _
    %3285 = vsyncpa [#allocation3], 1

</llo_original>
